<compile_context>
chip_gen: v7x
topology: tpu7x:2x2x1
jax: 0.10.0
libtpu: 0.0.40
codegen_flags: <defaults>
</compile_context>

<pallas_src>
import jax
import jax.numpy as jnp
from jax.experimental import pallas as pl
from jax.experimental.pallas import tpu as pltpu


# ---------------------------------------------------------------------------
# Fused kernel: [dw3x3 -> 1x1 -> relu] x2 -> 1x1 (fc) -> sigmoid,
# one grid step per batch element.
# ---------------------------------------------------------------------------
def _kan_disc_kernel(x_ref, dw1_ref, pw1_ref, b1_ref,
                     dw2_ref, pw2_ref, b2_ref, fcw_ref, fcb_ref,
                     o_ref, pad1_ref, pad2_ref):
    _, H, W, C1 = x_ref.shape
    C2 = pw1_ref.shape[1]
    HW = H * W

    def depthwise3x3(pad_ref, img, dw_ref):
        """3x3 depthwise cross-correlation, stride 1, zero-pad 1 (bias folded)."""
        C = img.shape[-1]
        # Only the 1-px border needs zeros; the interior is overwritten below.
        pad_ref[0:1, :, :] = jnp.zeros((1, W + 2, C), jnp.float32)
        pad_ref[H + 1:H + 2, :, :] = jnp.zeros((1, W + 2, C), jnp.float32)
        pad_ref[:, 0:1, :] = jnp.zeros((H + 2, 1, C), jnp.float32)
        pad_ref[:, W + 1:W + 2, :] = jnp.zeros((H + 2, 1, C), jnp.float32)
        pad_ref[1:H + 1, 1:W + 1, :] = img
        acc = jnp.zeros((H, W, C), jnp.float32)
        for dy in range(3):                       # 9 shifted MACs on the VPU
            for dx in range(3):
                w_tap = dw_ref[dy, dx]            # (1, C), broadcasts on lanes
                acc = acc + pad_ref[dy:dy + H, dx:dx + W, :] * w_tap
        return acc                                # (H, W, C)

    # conv1: depthwise + pointwise (depthwise bias folded into b1) + ReLU
    a1 = depthwise3x3(pad1_ref, x_ref[0], dw1_ref)                 # (H, W, C1)
    y1 = jnp.dot(a1.reshape(HW, C1), pw1_ref[...],
                 preferred_element_type=jnp.float32) + b1_ref[...]
    y1 = jnp.maximum(y1, 0.0)                                      # (HW, C2)

    # conv2: depthwise + pointwise + ReLU
    a2 = depthwise3x3(pad2_ref, y1.reshape(H, W, C2), dw2_ref)     # (H, W, C2)
    y2 = jnp.dot(a2.reshape(HW, C2), pw2_ref[...],
                 preferred_element_type=jnp.float32) + b2_ref[...]
    y2 = jnp.maximum(y2, 0.0).reshape(H, W, C2)

    # fc: 1x1 conv down to one channel == weighted lane reduce (VPU/XLU),
    # then sigmoid via exp (EUP) + reciprocal.
    logits = jnp.sum(y2 * fcw_ref[...], axis=-1) + fcb_ref[0, 0]   # (H, W)
    probs = pl.reciprocal(1.0 + jnp.exp(-logits), approx=False)
    o_ref[...] = probs.reshape(1, H, W)


# ---------------------------------------------------------------------------
# Wrapper: PyTorch-layout params -> kernel layout, single fused pallas_call.
# ---------------------------------------------------------------------------
def prepare_kernel_params(params):
    """Convert PyTorch Conv2d layouts to kernel layouts and fold dw biases."""
    def prep_ds(dw_w, dw_b, pw_w, pw_b):
        c_out, c_in = pw_w.shape[0], pw_w.shape[1]
        dw_k = jnp.transpose(dw_w, (2, 3, 1, 0))            # (C,1,3,3)->(3,3,1,C)
        pw2d = pw_w.reshape(c_out, c_in)                    # (Cout, Cin)
        b_k = (pw2d @ dw_b + pw_b).reshape(1, c_out)        # folded bias
        return dw_k, pw2d.T, b_k                            # pw kernel: (Cin, Cout)

    dw1, pw1, b1 = prep_ds(*params["conv1"])
    dw2, pw2, b2 = prep_ds(*params["conv2"])
    fc_w, fc_b = params["fc"]                               # (1,C2,1,1), (1,)
    c2 = fc_w.shape[1]
    return dict(dw1=dw1, pw1=pw1, b1=b1, dw2=dw2, pw2=pw2, b2=b2,
                fcw=fc_w.reshape(1, c2), fcb=fc_b.reshape(1, 1))


@jax.jit
def kan_discriminator_forward(x_nchw, params):
    kp = prepare_kernel_params(params)
    N, C1, H, W = x_nchw.shape
    C2 = kp["pw1"].shape[1]
    x_nhwc = jnp.transpose(x_nchw, (0, 2, 3, 1))    # single input-side transpose

    out_hw = pl.pallas_call(
        _kan_disc_kernel,
        out_shape=jax.ShapeDtypeStruct((N, H, W), jnp.float32),
        grid=(N,),
        in_specs=[
            pl.BlockSpec((1, H, W, C1), lambda n: (n, 0, 0, 0)),   # x
            pl.BlockSpec((3, 3, 1, C1), lambda n: (0, 0, 0, 0)),   # dw1
            pl.BlockSpec((C1, C2), lambda n: (0, 0)),              # pw1
            pl.BlockSpec((1, C2), lambda n: (0, 0)),               # b1 (folded)
            pl.BlockSpec((3, 3, 1, C2), lambda n: (0, 0, 0, 0)),   # dw2
            pl.BlockSpec((C2, C2), lambda n: (0, 0)),              # pw2
            pl.BlockSpec((1, C2), lambda n: (0, 0)),               # b2 (folded)
            pl.BlockSpec((1, C2), lambda n: (0, 0)),               # fc weight
            pl.BlockSpec(memory_space=pltpu.MemorySpace.SMEM),     # fc bias
        ],
        out_specs=pl.BlockSpec((1, H, W), lambda n: (n, 0, 0)),
        scratch_shapes=[
            pltpu.VMEM((H + 2, W + 2, C1), jnp.float32),           # pad1
            pltpu.VMEM((H + 2, W + 2, C2), jnp.float32),           # pad2
        ],
        compiler_params=pltpu.CompilerParams(
            dimension_semantics=("parallel",),      # v7x: batch splits over TCs
            vmem_limit_bytes=32 * 1024 * 1024),
    )(x_nhwc, kp["dw1"], kp["pw1"], kp["b1"],
      kp["dw2"], kp["pw2"], kp["b2"], kp["fcw"], kp["fcb"])

    # fc channel dim is 1 -> NHWC->NCHW here is a free reshape (no transpose).
    return out_hw.reshape(N, 1, H, W)


# ---------------------------------------------------------------------------
# Pure-JAX reference, computed directly from the PyTorch-layout parameters.
# ---------------------------------------------------------------------------
def ref_forward(x_nchw, params):
    def dsconv(x, dw_w, dw_b, pw_w, pw_b):
        c = x.shape[1]
        y = jax.lax.conv_general_dilated(
            x, dw_w, (1, 1), ((1, 1), (1, 1)),
            dimension_numbers=("NCHW", "OIHW", "NCHW"),
            feature_group_count=c) + dw_b.reshape(1, -1, 1, 1)
        y = jax.lax.conv_general_dilated(
            y, pw_w, (1, 1), "VALID",
            dimension_numbers=("NCHW", "OIHW", "NCHW")) + pw_b.reshape(1, -1, 1, 1)
        return y

    y = jax.nn.relu(dsconv(x_nchw, *params["conv1"]))
    y = jax.nn.relu(dsconv(y, *params["conv2"]))
    fc_w, fc_b = params["fc"]
    y = jax.lax.conv_general_dilated(
        y, fc_w, (1, 1), "VALID",
        dimension_numbers=("NCHW", "OIHW", "NCHW")) + fc_b.reshape(1, -1, 1, 1)
    return jax.nn.sigmoid(y)


# ---------------------------------------------------------------------------
# Deterministic PyTorch-layout parameter init (shapes follow the nn.Module).
# ---------------------------------------------------------------------------
def init_params(key, c_in, c_out):
    ks = jax.random.split(key, 10)
    n = lambda k, s: jax.random.normal(k, s, jnp.float32) * 0.1
    return {
        # depthwise: (C, 1, 3, 3); pointwise: (Cout, Cin, 1, 1); biases: (C,)
        "conv1": (n(ks[0], (c_in, 1, 3, 3)), n(ks[1], (c_in,)),
                  n(ks[2], (c_out, c_in, 1, 1)), n(ks[3], (c_out,))),
        "conv2": (n(ks[4], (c_out, 1, 3, 3)), n(ks[5], (c_out,)),
                  n(ks[6], (c_out, c_out, 1, 1)), n(ks[7], (c_out,))),
        "fc":    (n(ks[8], (1, c_out, 1, 1)), n(ks[9], (1,))),
    }


if __name__ == "__main__":
    in_channels, num_stems = 1, 4          # conv1 input channels = 4
    out_channels = 8
    n_mels, target_length = 16, 16
    batch = 2
    c1 = in_channels * num_stems

    key = jax.random.PRNGKey(0)
    k_x, k_p = jax.random.split(key)
    x = jax.random.normal(
        k_x, (batch, c1, n_mels, target_length), jnp.float32)   # NCHW input
    params = init_params(k_p, c1, out_channels)

    out = jax.block_until_ready(kan_discriminator_forward(x, params))
    ref = jax.block_until_ready(ref_forward(x, params))

    assert out.shape == (batch, 1, n_mels, target_length), out.shape
    max_err = float(jnp.max(jnp.abs(out - ref)))
    assert jnp.allclose(out, ref, atol=1e-4, rtol=1e-4), max_err
    print("KERNEL_OK")
</pallas_src>

<mosaic_0001>
module attributes {stable_mosaic.version = 11 : i64} {
  func.func @_kan_disc_kernel(%arg0: i32, %arg1: memref<1x16x16x4xf32, #tpu.memory_space<vmem>>, %arg2: memref<3x3x1x4xf32, #tpu.memory_space<vmem>>, %arg3: memref<4x8xf32, #tpu.memory_space<vmem>>, %arg4: memref<1x8xf32, #tpu.memory_space<vmem>>, %arg5: memref<3x3x1x8xf32, #tpu.memory_space<vmem>>, %arg6: memref<8x8xf32, #tpu.memory_space<vmem>>, %arg7: memref<1x8xf32, #tpu.memory_space<vmem>>, %arg8: memref<1x8xf32, #tpu.memory_space<vmem>>, %arg9: memref<1x1xf32, #tpu.memory_space<smem>>, %arg10: memref<1x16x16xf32, #tpu.memory_space<vmem>>, %arg11: memref<18x18x4xf32, #tpu.memory_space<vmem>>, %arg12: memref<18x18x8xf32, #tpu.memory_space<vmem>>) attributes {dimension_semantics = [#tpu.dimension_semantics<parallel>], iteration_bounds = array<i64: 2>, scalar_prefetch = 0 : i64, scratch_operands = 2 : i64, tpu.core_type = #tpu.core_type<tc>, window_params = [{transform_indices = @transform_0, window_bounds = array<i64: 1, 16, 16, 4>}, {pipeline_mode = #tpu.pipeline_mode<synchronous>, transform_indices = @transform_1, window_bounds = array<i64: 3, 3, 1, 4>}, {pipeline_mode = #tpu.pipeline_mode<synchronous>, transform_indices = @transform_2, window_bounds = array<i64: 4, 8>}, {pipeline_mode = #tpu.pipeline_mode<synchronous>, transform_indices = @transform_3, window_bounds = array<i64: 1, 8>}, {pipeline_mode = #tpu.pipeline_mode<synchronous>, transform_indices = @transform_4, window_bounds = array<i64: 3, 3, 1, 8>}, {pipeline_mode = #tpu.pipeline_mode<synchronous>, transform_indices = @transform_5, window_bounds = array<i64: 8, 8>}, {pipeline_mode = #tpu.pipeline_mode<synchronous>, transform_indices = @transform_6, window_bounds = array<i64: 1, 8>}, {pipeline_mode = #tpu.pipeline_mode<synchronous>, transform_indices = @transform_7, window_bounds = array<i64: 1, 8>}, {transform_indices = @transform_8, window_bounds = array<i64: 1, 1>}, {transform_indices = @transform_9, window_bounds = array<i64: 1, 16, 16>}]} {
    %c0 = arith.constant 0 : index
    %c0_0 = arith.constant 0 : index
    %c0_1 = arith.constant 0 : index
    %c0_2 = arith.constant 0 : index
    %0 = vector.load %arg1[%c0, %c0_0, %c0_1, %c0_2] : memref<1x16x16x4xf32, #tpu.memory_space<vmem>>, vector<1x16x16x4xf32>
    %1 = vector.shape_cast %0 : vector<1x16x16x4xf32> to vector<16x16x4xf32>
    %cst = arith.constant 0.000000e+00 : f32
    %2 = vector.broadcast %cst : f32 to vector<1x18x4xf32>
    %c0_3 = arith.constant 0 : index
    %c0_4 = arith.constant 0 : index
    %c0_5 = arith.constant 0 : index
    %3 = vector.load %arg11[%c0_3, %c0_4, %c0_5] : memref<18x18x4xf32, #tpu.memory_space<vmem>>, vector<1x18x4xf32>
    tpu.vector_store %arg11[%c0_3, %c0_4, %c0_5], %2 {strides = array<i32>} : memref<18x18x4xf32, #tpu.memory_space<vmem>>, vector<1x18x4xf32>,
    %cst_6 = arith.constant 0.000000e+00 : f32
    %4 = vector.broadcast %cst_6 : f32 to vector<1x18x4xf32>
    %c17 = arith.constant 17 : index
    %c0_7 = arith.constant 0 : index
    %c0_8 = arith.constant 0 : index
    %5 = vector.load %arg11[%c17, %c0_7, %c0_8] : memref<18x18x4xf32, #tpu.memory_space<vmem>>, vector<1x18x4xf32>
    tpu.vector_store %arg11[%c17, %c0_7, %c0_8], %4 {strides = array<i32>} : memref<18x18x4xf32, #tpu.memory_space<vmem>>, vector<1x18x4xf32>,
    %cst_9 = arith.constant 0.000000e+00 : f32
    %6 = vector.broadcast %cst_9 : f32 to vector<18x1x4xf32>
    %c0_10 = arith.constant 0 : index
    %c0_11 = arith.constant 0 : index
    %c0_12 = arith.constant 0 : index
    %7 = vector.load %arg11[%c0_10, %c0_11, %c0_12] : memref<18x18x4xf32, #tpu.memory_space<vmem>>, vector<18x1x4xf32>
    tpu.vector_store %arg11[%c0_10, %c0_11, %c0_12], %6 {strides = array<i32>} : memref<18x18x4xf32, #tpu.memory_space<vmem>>, vector<18x1x4xf32>,
    %cst_13 = arith.constant 0.000000e+00 : f32
    %8 = vector.broadcast %cst_13 : f32 to vector<18x1x4xf32>
    %c0_14 = arith.constant 0 : index
    %c17_15 = arith.constant 17 : index
    %c0_16 = arith.constant 0 : index
    %9 = vector.load %arg11[%c0_14, %c17_15, %c0_16] : memref<18x18x4xf32, #tpu.memory_space<vmem>>, vector<18x1x4xf32>
    tpu.vector_store %arg11[%c0_14, %c17_15, %c0_16], %8 {strides = array<i32>} : memref<18x18x4xf32, #tpu.memory_space<vmem>>, vector<18x1x4xf32>,
    %c1 = arith.constant 1 : index
    %c1_17 = arith.constant 1 : index
    %c0_18 = arith.constant 0 : index
    %10 = vector.load %arg11[%c1, %c1_17, %c0_18] : memref<18x18x4xf32, #tpu.memory_space<vmem>>, vector<16x16x4xf32>
    tpu.vector_store %arg11[%c1, %c1_17, %c0_18], %1 {strides = array<i32>} : memref<18x18x4xf32, #tpu.memory_space<vmem>>, vector<16x16x4xf32>,
    %cst_19 = arith.constant 0.000000e+00 : f32
    %11 = vector.broadcast %cst_19 : f32 to vector<16x16x4xf32>
    %c0_20 = arith.constant 0 : index
    %c0_21 = arith.constant 0 : index
    %c0_22 = arith.constant 0 : index
    %c0_23 = arith.constant 0 : index
    %12 = vector.load %arg2[%c0_20, %c0_21, %c0_22, %c0_23] : memref<3x3x1x4xf32, #tpu.memory_space<vmem>>, vector<1x1x1x4xf32>
    %13 = vector.shape_cast %12 : vector<1x1x1x4xf32> to vector<1x4xf32>
    %c0_24 = arith.constant 0 : index
    %c0_25 = arith.constant 0 : index
    %c0_26 = arith.constant 0 : index
    %14 = vector.load %arg11[%c0_24, %c0_25, %c0_26] : memref<18x18x4xf32, #tpu.memory_space<vmem>>, vector<16x16x4xf32>
    %15 = vector.shape_cast %13 : vector<1x4xf32> to vector<1x1x4xf32>
    %16 = vector.broadcast %15 : vector<1x1x4xf32> to vector<16x16x4xf32>
    %17 = arith.mulf %14, %16 : vector<16x16x4xf32>
    %18 = arith.addf %11, %17 : vector<16x16x4xf32>
    %c0_27 = arith.constant 0 : index
    %c1_28 = arith.constant 1 : index
    %c0_29 = arith.constant 0 : index
    %c0_30 = arith.constant 0 : index
    %19 = vector.load %arg2[%c0_27, %c1_28, %c0_29, %c0_30] : memref<3x3x1x4xf32, #tpu.memory_space<vmem>>, vector<1x1x1x4xf32>
    %20 = vector.shape_cast %19 : vector<1x1x1x4xf32> to vector<1x4xf32>
    %c0_31 = arith.constant 0 : index
    %c1_32 = arith.constant 1 : index
    %c0_33 = arith.constant 0 : index
    %21 = vector.load %arg11[%c0_31, %c1_32, %c0_33] : memref<18x18x4xf32, #tpu.memory_space<vmem>>, vector<16x16x4xf32>
    %22 = vector.shape_cast %20 : vector<1x4xf32> to vector<1x1x4xf32>
    %23 = vector.broadcast %22 : vector<1x1x4xf32> to vector<16x16x4xf32>
    %24 = arith.mulf %21, %23 : vector<16x16x4xf32>
    %25 = arith.addf %18, %24 : vector<16x16x4xf32>
    %c0_34 = arith.constant 0 : index
    %c2 = arith.constant 2 : index
    %c0_35 = arith.constant 0 : index
    %c0_36 = arith.constant 0 : index
    %26 = vector.load %arg2[%c0_34, %c2, %c0_35, %c0_36] : memref<3x3x1x4xf32, #tpu.memory_space<vmem>>, vector<1x1x1x4xf32>
    %27 = vector.shape_cast %26 : vector<1x1x1x4xf32> to vector<1x4xf32>
    %c0_37 = arith.constant 0 : index
    %c2_38 = arith.constant 2 : index
    %c0_39 = arith.constant 0 : index
    %28 = vector.load %arg11[%c0_37, %c2_38, %c0_39] : memref<18x18x4xf32, #tpu.memory_space<vmem>>, vector<16x16x4xf32>
    %29 = vector.shape_cast %27 : vector<1x4xf32> to vector<1x1x4xf32>
    %30 = vector.broadcast %29 : vector<1x1x4xf32> to vector<16x16x4xf32>
    %31 = arith.mulf %28, %30 : vector<16x16x4xf32>
    %32 = arith.addf %25, %31 : vector<16x16x4xf32>
    %c1_40 = arith.constant 1 : index
    %c0_41 = arith.constant 0 : index
    %c0_42 = arith.constant 0 : index
    %c0_43 = arith.constant 0 : index
    %33 = vector.load %arg2[%c1_40, %c0_41, %c0_42, %c0_43] : memref<3x3x1x4xf32, #tpu.memory_space<vmem>>, vector<1x1x1x4xf32>
    %34 = vector.shape_cast %33 : vector<1x1x1x4xf32> to vector<1x4xf32>
    %c1_44 = arith.constant 1 : index
    %c0_45 = arith.constant 0 : index
    %c0_46 = arith.constant 0 : index
    %35 = vector.load %arg11[%c1_44, %c0_45, %c0_46] : memref<18x18x4xf32, #tpu.memory_space<vmem>>, vector<16x16x4xf32>
    %36 = vector.shape_cast %34 : vector<1x4xf32> to vector<1x1x4xf32>
    %37 = vector.broadcast %36 : vector<1x1x4xf32> to vector<16x16x4xf32>
    %38 = arith.mulf %35, %37 : vector<16x16x4xf32>
    %39 = arith.addf %32, %38 : vector<16x16x4xf32>
    %c1_47 = arith.constant 1 : index
    %c1_48 = arith.constant 1 : index
    %c0_49 = arith.constant 0 : index
    %c0_50 = arith.constant 0 : index
    %40 = vector.load %arg2[%c1_47, %c1_48, %c0_49, %c0_50] : memref<3x3x1x4xf32, #tpu.memory_space<vmem>>, vector<1x1x1x4xf32>
    %41 = vector.shape_cast %40 : vector<1x1x1x4xf32> to vector<1x4xf32>
    %c1_51 = arith.constant 1 : index
    %c1_52 = arith.constant 1 : index
    %c0_53 = arith.constant 0 : index
    %42 = vector.load %arg11[%c1_51, %c1_52, %c0_53] : memref<18x18x4xf32, #tpu.memory_space<vmem>>, vector<16x16x4xf32>
    %43 = vector.shape_cast %41 : vector<1x4xf32> to vector<1x1x4xf32>
    %44 = vector.broadcast %43 : vector<1x1x4xf32> to vector<16x16x4xf32>
    %45 = arith.mulf %42, %44 : vector<16x16x4xf32>
    %46 = arith.addf %39, %45 : vector<16x16x4xf32>
    %c1_54 = arith.constant 1 : index
    %c2_55 = arith.constant 2 : index
    %c0_56 = arith.constant 0 : index
    %c0_57 = arith.constant 0 : index
    %47 = vector.load %arg2[%c1_54, %c2_55, %c0_56, %c0_57] : memref<3x3x1x4xf32, #tpu.memory_space<vmem>>, vector<1x1x1x4xf32>
    %48 = vector.shape_cast %47 : vector<1x1x1x4xf32> to vector<1x4xf32>
    %c1_58 = arith.constant 1 : index
    %c2_59 = arith.constant 2 : index
    %c0_60 = arith.constant 0 : index
    %49 = vector.load %arg11[%c1_58, %c2_59, %c0_60] : memref<18x18x4xf32, #tpu.memory_space<vmem>>, vector<16x16x4xf32>
    %50 = vector.shape_cast %48 : vector<1x4xf32> to vector<1x1x4xf32>
    %51 = vector.broadcast %50 : vector<1x1x4xf32> to vector<16x16x4xf32>
    %52 = arith.mulf %49, %51 : vector<16x16x4xf32>
    %53 = arith.addf %46, %52 : vector<16x16x4xf32>
    %c2_61 = arith.constant 2 : index
    %c0_62 = arith.constant 0 : index
    %c0_63 = arith.constant 0 : index
    %c0_64 = arith.constant 0 : index
    %54 = vector.load %arg2[%c2_61, %c0_62, %c0_63, %c0_64] : memref<3x3x1x4xf32, #tpu.memory_space<vmem>>, vector<1x1x1x4xf32>
    %55 = vector.shape_cast %54 : vector<1x1x1x4xf32> to vector<1x4xf32>
    %c2_65 = arith.constant 2 : index
    %c0_66 = arith.constant 0 : index
    %c0_67 = arith.constant 0 : index
    %56 = vector.load %arg11[%c2_65, %c0_66, %c0_67] : memref<18x18x4xf32, #tpu.memory_space<vmem>>, vector<16x16x4xf32>
    %57 = vector.shape_cast %55 : vector<1x4xf32> to vector<1x1x4xf32>
    %58 = vector.broadcast %57 : vector<1x1x4xf32> to vector<16x16x4xf32>
    %59 = arith.mulf %56, %58 : vector<16x16x4xf32>
    %60 = arith.addf %53, %59 : vector<16x16x4xf32>
    %c2_68 = arith.constant 2 : index
    %c1_69 = arith.constant 1 : index
    %c0_70 = arith.constant 0 : index
    %c0_71 = arith.constant 0 : index
    %61 = vector.load %arg2[%c2_68, %c1_69, %c0_70, %c0_71] : memref<3x3x1x4xf32, #tpu.memory_space<vmem>>, vector<1x1x1x4xf32>
    %62 = vector.shape_cast %61 : vector<1x1x1x4xf32> to vector<1x4xf32>
    %c2_72 = arith.constant 2 : index
    %c1_73 = arith.constant 1 : index
    %c0_74 = arith.constant 0 : index
    %63 = vector.load %arg11[%c2_72, %c1_73, %c0_74] : memref<18x18x4xf32, #tpu.memory_space<vmem>>, vector<16x16x4xf32>
    %64 = vector.shape_cast %62 : vector<1x4xf32> to vector<1x1x4xf32>
    %65 = vector.broadcast %64 : vector<1x1x4xf32> to vector<16x16x4xf32>
    %66 = arith.mulf %63, %65 : vector<16x16x4xf32>
    %67 = arith.addf %60, %66 : vector<16x16x4xf32>
    %c2_75 = arith.constant 2 : index
    %c2_76 = arith.constant 2 : index
    %c0_77 = arith.constant 0 : index
    %c0_78 = arith.constant 0 : index
    %68 = vector.load %arg2[%c2_75, %c2_76, %c0_77, %c0_78] : memref<3x3x1x4xf32, #tpu.memory_space<vmem>>, vector<1x1x1x4xf32>
    %69 = vector.shape_cast %68 : vector<1x1x1x4xf32> to vector<1x4xf32>
    %c2_79 = arith.constant 2 : index
    %c2_80 = arith.constant 2 : index
    %c0_81 = arith.constant 0 : index
    %70 = vector.load %arg11[%c2_79, %c2_80, %c0_81] : memref<18x18x4xf32, #tpu.memory_space<vmem>>, vector<16x16x4xf32>
    %71 = vector.shape_cast %69 : vector<1x4xf32> to vector<1x1x4xf32>
    %72 = vector.broadcast %71 : vector<1x1x4xf32> to vector<16x16x4xf32>
    %73 = arith.mulf %70, %72 : vector<16x16x4xf32>
    %74 = arith.addf %67, %73 : vector<16x16x4xf32>
    %75 = vector.shape_cast %74 : vector<16x16x4xf32> to vector<256x4xf32>
    %c0_82 = arith.constant 0 : index
    %c0_83 = arith.constant 0 : index
    %76 = vector.load %arg3[%c0_82, %c0_83] : memref<4x8xf32, #tpu.memory_space<vmem>>, vector<4x8xf32>
    %cst_84 = arith.constant dense<0.000000e+00> : vector<256x8xf32>
    %77 = tpu.matmul %75, %76, %cst_84 {dimension_numbers = #tpu.dot_dimension_numbers<[1], [0], [0], [1], [0, 0, 1, 1], [], []>} : vector<256x4xf32>, vector<4x8xf32>, vector<256x8xf32> -> vector<256x8xf32>
    %c0_85 = arith.constant 0 : index
    %c0_86 = arith.constant 0 : index
    %78 = vector.load %arg4[%c0_85, %c0_86] : memref<1x8xf32, #tpu.memory_space<vmem>>, vector<1x8xf32>
    %79 = vector.broadcast %78 : vector<1x8xf32> to vector<256x8xf32>
    %80 = arith.addf %77, %79 : vector<256x8xf32>
    %cst_87 = arith.constant 0.000000e+00 : f32
    %81 = vector.broadcast %cst_87 : f32 to vector<256x8xf32>
    %82 = arith.maximumf %80, %81 : vector<256x8xf32>
    %83 = vector.shape_cast %82 : vector<256x8xf32> to vector<16x16x8xf32>
    %cst_88 = arith.constant 0.000000e+00 : f32
    %84 = vector.broadcast %cst_88 : f32 to vector<1x18x8xf32>
    %c0_89 = arith.constant 0 : index
    %c0_90 = arith.constant 0 : index
    %c0_91 = arith.constant 0 : index
    %85 = vector.load %arg12[%c0_89, %c0_90, %c0_91] : memref<18x18x8xf32, #tpu.memory_space<vmem>>, vector<1x18x8xf32>
    tpu.vector_store %arg12[%c0_89, %c0_90, %c0_91], %84 {strides = array<i32>} : memref<18x18x8xf32, #tpu.memory_space<vmem>>, vector<1x18x8xf32>,
    %cst_92 = arith.constant 0.000000e+00 : f32
    %86 = vector.broadcast %cst_92 : f32 to vector<1x18x8xf32>
    %c17_93 = arith.constant 17 : index
    %c0_94 = arith.constant 0 : index
    %c0_95 = arith.constant 0 : index
    %87 = vector.load %arg12[%c17_93, %c0_94, %c0_95] : memref<18x18x8xf32, #tpu.memory_space<vmem>>, vector<1x18x8xf32>
    tpu.vector_store %arg12[%c17_93, %c0_94, %c0_95], %86 {strides = array<i32>} : memref<18x18x8xf32, #tpu.memory_space<vmem>>, vector<1x18x8xf32>,
    %cst_96 = arith.constant 0.000000e+00 : f32
    %88 = vector.broadcast %cst_96 : f32 to vector<18x1x8xf32>
    %c0_97 = arith.constant 0 : index
    %c0_98 = arith.constant 0 : index
    %c0_99 = arith.constant 0 : index
    %89 = vector.load %arg12[%c0_97, %c0_98, %c0_99] : memref<18x18x8xf32, #tpu.memory_space<vmem>>, vector<18x1x8xf32>
    tpu.vector_store %arg12[%c0_97, %c0_98, %c0_99], %88 {strides = array<i32>} : memref<18x18x8xf32, #tpu.memory_space<vmem>>, vector<18x1x8xf32>,
    %cst_100 = arith.constant 0.000000e+00 : f32
    %90 = vector.broadcast %cst_100 : f32 to vector<18x1x8xf32>
    %c0_101 = arith.constant 0 : index
    %c17_102 = arith.constant 17 : index
    %c0_103 = arith.constant 0 : index
    %91 = vector.load %arg12[%c0_101, %c17_102, %c0_103] : memref<18x18x8xf32, #tpu.memory_space<vmem>>, vector<18x1x8xf32>
    tpu.vector_store %arg12[%c0_101, %c17_102, %c0_103], %90 {strides = array<i32>} : memref<18x18x8xf32, #tpu.memory_space<vmem>>, vector<18x1x8xf32>,
    %c1_104 = arith.constant 1 : index
    %c1_105 = arith.constant 1 : index
    %c0_106 = arith.constant 0 : index
    %92 = vector.load %arg12[%c1_104, %c1_105, %c0_106] : memref<18x18x8xf32, #tpu.memory_space<vmem>>, vector<16x16x8xf32>
    tpu.vector_store %arg12[%c1_104, %c1_105, %c0_106], %83 {strides = array<i32>} : memref<18x18x8xf32, #tpu.memory_space<vmem>>, vector<16x16x8xf32>,
    %cst_107 = arith.constant 0.000000e+00 : f32
    %93 = vector.broadcast %cst_107 : f32 to vector<16x16x8xf32>
    %c0_108 = arith.constant 0 : index
    %c0_109 = arith.constant 0 : index
    %c0_110 = arith.constant 0 : index
    %c0_111 = arith.constant 0 : index
    %94 = vector.load %arg5[%c0_108, %c0_109, %c0_110, %c0_111] : memref<3x3x1x8xf32, #tpu.memory_space<vmem>>, vector<1x1x1x8xf32>
    %95 = vector.shape_cast %94 : vector<1x1x1x8xf32> to vector<1x8xf32>
    %c0_112 = arith.constant 0 : index
    %c0_113 = arith.constant 0 : index
    %c0_114 = arith.constant 0 : index
    %96 = vector.load %arg12[%c0_112, %c0_113, %c0_114] : memref<18x18x8xf32, #tpu.memory_space<vmem>>, vector<16x16x8xf32>
    %97 = vector.shape_cast %95 : vector<1x8xf32> to vector<1x1x8xf32>
    %98 = vector.broadcast %97 : vector<1x1x8xf32> to vector<16x16x8xf32>
    %99 = arith.mulf %96, %98 : vector<16x16x8xf32>
    %100 = arith.addf %93, %99 : vector<16x16x8xf32>
    %c0_115 = arith.constant 0 : index
    %c1_116 = arith.constant 1 : index
    %c0_117 = arith.constant 0 : index
    %c0_118 = arith.constant 0 : index
    %101 = vector.load %arg5[%c0_115, %c1_116, %c0_117, %c0_118] : memref<3x3x1x8xf32, #tpu.memory_space<vmem>>, vector<1x1x1x8xf32>
    %102 = vector.shape_cast %101 : vector<1x1x1x8xf32> to vector<1x8xf32>
    %c0_119 = arith.constant 0 : index
    %c1_120 = arith.constant 1 : index
    %c0_121 = arith.constant 0 : index
    %103 = vector.load %arg12[%c0_119, %c1_120, %c0_121] : memref<18x18x8xf32, #tpu.memory_space<vmem>>, vector<16x16x8xf32>
    %104 = vector.shape_cast %102 : vector<1x8xf32> to vector<1x1x8xf32>
    %105 = vector.broadcast %104 : vector<1x1x8xf32> to vector<16x16x8xf32>
    %106 = arith.mulf %103, %105 : vector<16x16x8xf32>
    %107 = arith.addf %100, %106 : vector<16x16x8xf32>
    %c0_122 = arith.constant 0 : index
    %c2_123 = arith.constant 2 : index
    %c0_124 = arith.constant 0 : index
    %c0_125 = arith.constant 0 : index
    %108 = vector.load %arg5[%c0_122, %c2_123, %c0_124, %c0_125] : memref<3x3x1x8xf32, #tpu.memory_space<vmem>>, vector<1x1x1x8xf32>
    %109 = vector.shape_cast %108 : vector<1x1x1x8xf32> to vector<1x8xf32>
    %c0_126 = arith.constant 0 : index
    %c2_127 = arith.constant 2 : index
    %c0_128 = arith.constant 0 : index
    %110 = vector.load %arg12[%c0_126, %c2_127, %c0_128] : memref<18x18x8xf32, #tpu.memory_space<vmem>>, vector<16x16x8xf32>
    %111 = vector.shape_cast %109 : vector<1x8xf32> to vector<1x1x8xf32>
    %112 = vector.broadcast %111 : vector<1x1x8xf32> to vector<16x16x8xf32>
    %113 = arith.mulf %110, %112 : vector<16x16x8xf32>
    %114 = arith.addf %107, %113 : vector<16x16x8xf32>
    %c1_129 = arith.constant 1 : index
    %c0_130 = arith.constant 0 : index
    %c0_131 = arith.constant 0 : index
    %c0_132 = arith.constant 0 : index
    %115 = vector.load %arg5[%c1_129, %c0_130, %c0_131, %c0_132] : memref<3x3x1x8xf32, #tpu.memory_space<vmem>>, vector<1x1x1x8xf32>
    %116 = vector.shape_cast %115 : vector<1x1x1x8xf32> to vector<1x8xf32>
    %c1_133 = arith.constant 1 : index
    %c0_134 = arith.constant 0 : index
    %c0_135 = arith.constant 0 : index
    %117 = vector.load %arg12[%c1_133, %c0_134, %c0_135] : memref<18x18x8xf32, #tpu.memory_space<vmem>>, vector<16x16x8xf32>
    %118 = vector.shape_cast %116 : vector<1x8xf32> to vector<1x1x8xf32>
    %119 = vector.broadcast %118 : vector<1x1x8xf32> to vector<16x16x8xf32>
    %120 = arith.mulf %117, %119 : vector<16x16x8xf32>
    %121 = arith.addf %114, %120 : vector<16x16x8xf32>
    %c1_136 = arith.constant 1 : index
    %c1_137 = arith.constant 1 : index
    %c0_138 = arith.constant 0 : index
    %c0_139 = arith.constant 0 : index
    %122 = vector.load %arg5[%c1_136, %c1_137, %c0_138, %c0_139] : memref<3x3x1x8xf32, #tpu.memory_space<vmem>>, vector<1x1x1x8xf32>
    %123 = vector.shape_cast %122 : vector<1x1x1x8xf32> to vector<1x8xf32>
    %c1_140 = arith.constant 1 : index
    %c1_141 = arith.constant 1 : index
    %c0_142 = arith.constant 0 : index
    %124 = vector.load %arg12[%c1_140, %c1_141, %c0_142] : memref<18x18x8xf32, #tpu.memory_space<vmem>>, vector<16x16x8xf32>
    %125 = vector.shape_cast %123 : vector<1x8xf32> to vector<1x1x8xf32>
    %126 = vector.broadcast %125 : vector<1x1x8xf32> to vector<16x16x8xf32>
    %127 = arith.mulf %124, %126 : vector<16x16x8xf32>
    %128 = arith.addf %121, %127 : vector<16x16x8xf32>
    %c1_143 = arith.constant 1 : index
    %c2_144 = arith.constant 2 : index
    %c0_145 = arith.constant 0 : index
    %c0_146 = arith.constant 0 : index
    %129 = vector.load %arg5[%c1_143, %c2_144, %c0_145, %c0_146] : memref<3x3x1x8xf32, #tpu.memory_space<vmem>>, vector<1x1x1x8xf32>
    %130 = vector.shape_cast %129 : vector<1x1x1x8xf32> to vector<1x8xf32>
    %c1_147 = arith.constant 1 : index
    %c2_148 = arith.constant 2 : index
    %c0_149 = arith.constant 0 : index
    %131 = vector.load %arg12[%c1_147, %c2_148, %c0_149] : memref<18x18x8xf32, #tpu.memory_space<vmem>>, vector<16x16x8xf32>
    %132 = vector.shape_cast %130 : vector<1x8xf32> to vector<1x1x8xf32>
    %133 = vector.broadcast %132 : vector<1x1x8xf32> to vector<16x16x8xf32>
    %134 = arith.mulf %131, %133 : vector<16x16x8xf32>
    %135 = arith.addf %128, %134 : vector<16x16x8xf32>
    %c2_150 = arith.constant 2 : index
    %c0_151 = arith.constant 0 : index
    %c0_152 = arith.constant 0 : index
    %c0_153 = arith.constant 0 : index
    %136 = vector.load %arg5[%c2_150, %c0_151, %c0_152, %c0_153] : memref<3x3x1x8xf32, #tpu.memory_space<vmem>>, vector<1x1x1x8xf32>
    %137 = vector.shape_cast %136 : vector<1x1x1x8xf32> to vector<1x8xf32>
    %c2_154 = arith.constant 2 : index
    %c0_155 = arith.constant 0 : index
    %c0_156 = arith.constant 0 : index
    %138 = vector.load %arg12[%c2_154, %c0_155, %c0_156] : memref<18x18x8xf32, #tpu.memory_space<vmem>>, vector<16x16x8xf32>
    %139 = vector.shape_cast %137 : vector<1x8xf32> to vector<1x1x8xf32>
    %140 = vector.broadcast %139 : vector<1x1x8xf32> to vector<16x16x8xf32>
    %141 = arith.mulf %138, %140 : vector<16x16x8xf32>
    %142 = arith.addf %135, %141 : vector<16x16x8xf32>
    %c2_157 = arith.constant 2 : index
    %c1_158 = arith.constant 1 : index
    %c0_159 = arith.constant 0 : index
    %c0_160 = arith.constant 0 : index
    %143 = vector.load %arg5[%c2_157, %c1_158, %c0_159, %c0_160] : memref<3x3x1x8xf32, #tpu.memory_space<vmem>>, vector<1x1x1x8xf32>
    %144 = vector.shape_cast %143 : vector<1x1x1x8xf32> to vector<1x8xf32>
    %c2_161 = arith.constant 2 : index
    %c1_162 = arith.constant 1 : index
    %c0_163 = arith.constant 0 : index
    %145 = vector.load %arg12[%c2_161, %c1_162, %c0_163] : memref<18x18x8xf32, #tpu.memory_space<vmem>>, vector<16x16x8xf32>
    %146 = vector.shape_cast %144 : vector<1x8xf32> to vector<1x1x8xf32>
    %147 = vector.broadcast %146 : vector<1x1x8xf32> to vector<16x16x8xf32>
    %148 = arith.mulf %145, %147 : vector<16x16x8xf32>
    %149 = arith.addf %142, %148 : vector<16x16x8xf32>
    %c2_164 = arith.constant 2 : index
    %c2_165 = arith.constant 2 : index
    %c0_166 = arith.constant 0 : index
    %c0_167 = arith.constant 0 : index
    %150 = vector.load %arg5[%c2_164, %c2_165, %c0_166, %c0_167] : memref<3x3x1x8xf32, #tpu.memory_space<vmem>>, vector<1x1x1x8xf32>
    %151 = vector.shape_cast %150 : vector<1x1x1x8xf32> to vector<1x8xf32>
    %c2_168 = arith.constant 2 : index
    %c2_169 = arith.constant 2 : index
    %c0_170 = arith.constant 0 : index
    %152 = vector.load %arg12[%c2_168, %c2_169, %c0_170] : memref<18x18x8xf32, #tpu.memory_space<vmem>>, vector<16x16x8xf32>
    %153 = vector.shape_cast %151 : vector<1x8xf32> to vector<1x1x8xf32>
    %154 = vector.broadcast %153 : vector<1x1x8xf32> to vector<16x16x8xf32>
    %155 = arith.mulf %152, %154 : vector<16x16x8xf32>
    %156 = arith.addf %149, %155 : vector<16x16x8xf32>
    %157 = vector.shape_cast %156 : vector<16x16x8xf32> to vector<256x8xf32>
    %c0_171 = arith.constant 0 : index
    %c0_172 = arith.constant 0 : index
    %158 = vector.load %arg6[%c0_171, %c0_172] : memref<8x8xf32, #tpu.memory_space<vmem>>, vector<8x8xf32>
    %cst_173 = arith.constant dense<0.000000e+00> : vector<256x8xf32>
    %159 = tpu.matmul %157, %158, %cst_173 {dimension_numbers = #tpu.dot_dimension_numbers<[1], [0], [0], [1], [0, 0, 1, 1], [], []>} : vector<256x8xf32>, vector<8x8xf32>, vector<256x8xf32> -> vector<256x8xf32>
    %c0_174 = arith.constant 0 : index
    %c0_175 = arith.constant 0 : index
    %160 = vector.load %arg7[%c0_174, %c0_175] : memref<1x8xf32, #tpu.memory_space<vmem>>, vector<1x8xf32>
    %161 = vector.broadcast %160 : vector<1x8xf32> to vector<256x8xf32>
    %162 = arith.addf %159, %161 : vector<256x8xf32>
    %cst_176 = arith.constant 0.000000e+00 : f32
    %163 = vector.broadcast %cst_176 : f32 to vector<256x8xf32>
    %164 = arith.maximumf %162, %163 : vector<256x8xf32>
    %165 = vector.shape_cast %164 : vector<256x8xf32> to vector<16x16x8xf32>
    %c0_177 = arith.constant 0 : index
    %c0_178 = arith.constant 0 : index
    %166 = vector.load %arg8[%c0_177, %c0_178] : memref<1x8xf32, #tpu.memory_space<vmem>>, vector<1x8xf32>
    %167 = vector.shape_cast %166 : vector<1x8xf32> to vector<1x1x8xf32>
    %168 = vector.broadcast %167 : vector<1x1x8xf32> to vector<16x16x8xf32>
    %169 = arith.mulf %165, %168 : vector<16x16x8xf32>
    %cst_179 = arith.constant dense<0.000000e+00> : vector<16x16xf32>
    %170 = vector.multi_reduction <add>, %169, %cst_179 [2] : vector<16x16x8xf32> to vector<16x16xf32>
    %c0_180 = arith.constant 0 : index
    %c0_181 = arith.constant 0 : index
    %171 = memref.load %arg9[%c0_180, %c0_181] : memref<1x1xf32, #tpu.memory_space<smem>>
    %172 = vector.broadcast %171 : f32 to vector<16x16xf32>
    %173 = arith.addf %170, %172 : vector<16x16xf32>
    %cst_182 = arith.constant 0.000000e+00 : f32
    %174 = vector.broadcast %cst_182 : f32 to vector<16x16xf32>
    %175 = arith.subf %174, %173 : vector<16x16xf32>
    %176 = math.exp %175 : vector<16x16xf32>
    %cst_183 = arith.constant 1.000000e+00 : f32
    %177 = vector.broadcast %cst_183 : f32 to vector<16x16xf32>
    %178 = arith.addf %177, %176 : vector<16x16xf32>
    %179 = tpu.reciprocal %178 : vector<16x16xf32> -> vector<16x16xf32>
    %180 = vector.shape_cast %179 : vector<16x16xf32> to vector<1x16x16xf32>
    %c0_184 = arith.constant 0 : index
    %c0_185 = arith.constant 0 : index
    %c0_186 = arith.constant 0 : index
    %181 = vector.load %arg10[%c0_184, %c0_185, %c0_186] : memref<1x16x16xf32, #tpu.memory_space<vmem>>, vector<1x16x16xf32>
    tpu.vector_store %arg10[%c0_184, %c0_185, %c0_186], %180 {strides = array<i32>} : memref<1x16x16xf32, #tpu.memory_space<vmem>>, vector<1x16x16xf32>,
    return
  }
  func.func @transform_0(%arg0: i32) -> (i32, i32, i32, i32) {
    %c0_i32 = arith.constant 0 : i32
    %c0_i32_0 = arith.constant 0 : i32
    %c0_i32_1 = arith.constant 0 : i32
    %c0_i32_2 = arith.constant 0 : i32
    return %arg0, %c0_i32, %c0_i32_0, %c0_i32_1 : i32, i32, i32, i32
  }
  func.func @transform_1(%arg0: i32) -> (i32, i32, i32, i32) {
    %c0_i32 = arith.constant 0 : i32
    %c0_i32_0 = arith.constant 0 : i32
    %c0_i32_1 = arith.constant 0 : i32
    %c0_i32_2 = arith.constant 0 : i32
    %c0_i32_3 = arith.constant 0 : i32
    return %c0_i32, %c0_i32_0, %c0_i32_1, %c0_i32_2 : i32, i32, i32, i32
  }
  func.func @transform_2(%arg0: i32) -> (i32, i32) {
    %c0_i32 = arith.constant 0 : i32
    %c0_i32_0 = arith.constant 0 : i32
    %c0_i32_1 = arith.constant 0 : i32
    return %c0_i32, %c0_i32_0 : i32, i32
  }
  func.func @transform_3(%arg0: i32) -> (i32, i32) {
    %c0_i32 = arith.constant 0 : i32
    %c0_i32_0 = arith.constant 0 : i32
    %c0_i32_1 = arith.constant 0 : i32
    return %c0_i32, %c0_i32_0 : i32, i32
  }
  func.func @transform_4(%arg0: i32) -> (i32, i32, i32, i32) {
    %c0_i32 = arith.constant 0 : i32
    %c0_i32_0 = arith.constant 0 : i32
    %c0_i32_1 = arith.constant 0 : i32
    %c0_i32_2 = arith.constant 0 : i32
    %c0_i32_3 = arith.constant 0 : i32
    return %c0_i32, %c0_i32_0, %c0_i32_1, %c0_i32_2 : i32, i32, i32, i32
  }
  func.func @transform_5(%arg0: i32) -> (i32, i32) {
    %c0_i32 = arith.constant 0 : i32
    %c0_i32_0 = arith.constant 0 : i32
    %c0_i32_1 = arith.constant 0 : i32
    return %c0_i32, %c0_i32_0 : i32, i32
  }
  func.func @transform_6(%arg0: i32) -> (i32, i32) {
    %c0_i32 = arith.constant 0 : i32
    %c0_i32_0 = arith.constant 0 : i32
    %c0_i32_1 = arith.constant 0 : i32
    return %c0_i32, %c0_i32_0 : i32, i32
  }
  func.func @transform_7(%arg0: i32) -> (i32, i32) {
    %c0_i32 = arith.constant 0 : i32
    %c0_i32_0 = arith.constant 0 : i32
    %c0_i32_1 = arith.constant 0 : i32
    return %c0_i32, %c0_i32_0 : i32, i32
  }
  func.func @transform_8(%arg0: i32) -> (i32, i32) {
    %c0_i32 = arith.constant 0 : i32
    %c0_i32_0 = arith.constant 0 : i32
    %c0_i32_1 = arith.constant 0 : i32
    return %c0_i32, %c0_i32_0 : i32, i32
  }
  func.func @transform_9(%arg0: i32) -> (i32, i32, i32) {
    %c0_i32 = arith.constant 0 : i32
    %c0_i32_0 = arith.constant 0 : i32
    %c0_i32_1 = arith.constant 0 : i32
    return %arg0, %c0_i32, %c0_i32_0 : i32, i32, i32
  }
}

</mosaic_0001>

<llo_original>
// kernel: kan_discriminator_forward.1
$region0: #{kan_discriminator_forward.1}
  #allocation0 [shape = 'u32[]', space=smem, size = 0x4, offset = 0x4, fixed_abs, tag = 'smem constant byte address 0x4 - core index']
  #allocation1 [shape = 'u32[144,128]{1,0:T(1,128)}', space=vmem, size = 0x12000, scoped, tag = 'internal scratch']
  #allocation2 [shape = 'f32[18,18,4]{2,1,0:T(8,128)}', space=vmem, size = 0x36000, scoped, tag = 'scratch operand']
  #allocation3 [shape = 'f32[18,18,8]{2,1,0:T(8,128)}', space=vmem, size = 0x36000, scoped, tag = 'scratch operand']
  #allocation4 [shape = 'f32[1,1]{1,0:T(1,128)S(6)}', space=smem, size = 0x200, scoped, tag = 'scoped memory for kan_discriminator_forward.1']
  %s0 = inlined_call_operand.vmem [shape: f32[2,16,16,4], index: 0, kind: input, shape index: {}]
  %s1 = inlined_call_operand.vmem [shape: f32[3,3,1,4], index: 1, kind: input, shape index: {}]
  %s2 = inlined_call_operand.vmem [shape: f32[4,8], index: 2, kind: input, shape index: {}]
  %s3 = inlined_call_operand.vmem [shape: f32[1,8], index: 3, kind: input, shape index: {}]
  %s4 = inlined_call_operand.vmem [shape: f32[3,3,1,8], index: 4, kind: input, shape index: {}]
  %s5 = inlined_call_operand.vmem [shape: f32[8,8], index: 5, kind: input, shape index: {}]
  %s6 = inlined_call_operand.vmem [shape: f32[1,8], index: 6, kind: input, shape index: {}]
  %s7 = inlined_call_operand.vmem [shape: f32[1,8], index: 7, kind: input, shape index: {}]
  %s8 = inlined_call_operand.<no memory space> [shape: f32[1,1], index: 8, kind: input, shape index: {}]
  %s9 = inlined_call_operand.hbm [shape: f32[2,16,16], index: 9, kind: output, shape index: {}]
  %s10 = sld [smem:[#allocation0]]
  $region69: #{kan_discriminator_forward.1} parent=0
    _
  %s12 = ssub.s32 1, %s10
  %s13 = scalar_select 0, %s12, %s10
  %14 = sst [smem:[#allocation4]] %s8
  $region1: #{kan_discriminator_forward.1} parent=0
    #allocation5 [shape = 'u8[16384]{0}', space=vmem, size = 0x4000, scoped, tag = 'output window, operand 0']
    #allocation6 [shape = 's32[2]{0}', space=sflag, size = 0x8, scoped, tag = 'scoped memory for kan_discriminator_forward.1']
    %15 = vsyncpa [#allocation6], 0
    %s16 = scalar_lea.sflag [#allocation6], 1
    %17 = vsyncpa %s16, 0
    loop: start=0, step=1, limit=4
    $region2: #{kan_discriminator_forward.1} parent=1 // loop_pre_header
      _
    $region3: #{kan_discriminator_forward.1} parent=1 // loop_header
      %s19 = sphi 0, %s23
      %p20 = scmp.ge.s32.totalorder %s19, 4
      %s29 = sphi 0, %s31
      %s32 = sphi 0, %s29
      %s33 = sphi 0, %s32
      %s49 = sphi 0, %s33
      %s53 = sphi 0, %s53
      %s55 = sphi 0, %s53
      %s56 = sphi 0, %s55
      %s70 = sphi 0, %s56
      %s74 = sphi 0, %s74
      %s76 = sphi 0, %s74
      %s77 = sphi 0, %s76
      %s91 = sphi 0, %s77
      %s95 = sphi 0, %s95
      %s97 = sphi 0, %s95
      %s98 = sphi 0, %s97
      %s112 = sphi 0, %s98
      %s116 = sphi 0, %s116
      %s118 = sphi 0, %s116
      %s119 = sphi 0, %s118
      %s133 = sphi 0, %s119
      %s137 = sphi 0, %s137
      %s139 = sphi 0, %s137
      %s140 = sphi 0, %s139
      %s154 = sphi 0, %s140
      %s158 = sphi 0, %s158
      %s160 = sphi 0, %s158
      %s161 = sphi 0, %s160
      %s175 = sphi 0, %s161
      %s179 = sphi 0, %s179
      %s181 = sphi 0, %s179
      %s182 = sphi 0, %s181
      %s196 = sphi 0, %s182
      %s200 = sphi 0, %s200
      %s202 = sphi 0, %s200
      %s203 = sphi 0, %s202
      %s217 = sphi 0, %s203
      %s223 = sphi 0, %s225
      %s226 = sphi 0, %s223
      %s227 = sphi 0, %s226
      %s243 = sphi 0, %s227
    $region4: #{kan_discriminator_forward.1} parent=1 // loop_header_branch
      %22 = sbr.rel (%p20) target = $region8
    $region5: #{kan_discriminator_forward.1} parent=1 // loop_body
      %s24 = ssub.s32 %s19, 1
      %s25 = ssub.s32 %s19, 2
      %s26 = sadd.s32 %s19, 1
      %s27 = ssub.s32 %s19, %s26
      %p28 = scmp.eq.s32.totalorder %s27, 0
      %s30 = sadd.s32 %s29, 1
      %s31 = scalar_select %p28, %s29, %s30
      %p34 = pneg %p28
      %p35 = scmp.eq.s32.totalorder %s19, 1
      %p36 = por %p34, %p35
      %p37 = scmp.ne.s32.totalorder %s29, %s32
      %p38 = scmp.eq.s32.totalorder %s19, 0
      %p39 = por %p37, %p38
      %p40 = scmp.ne.s32.totalorder %s29, %s32
      %p41 = scmp.eq.s32.totalorder %s24, 1
      %p42 = por %p40, %p41
      %p43 = scmp.ne.s32.totalorder %s32, %s33
      %p44 = scmp.eq.s32.totalorder %s24, 0
      %p45 = por %p43, %p44
      %p46 = scmp.ne.s32.totalorder %s32, %s33
      %p47 = scmp.eq.s32.totalorder %s25, 1
      %p48 = por %p46, %p47
      %p50 = scmp.ne.s32.totalorder %s33, %s49
      %p51 = scmp.eq.s32.totalorder %s25, 0
      %p52 = por %p50, %p51
      %s54 = sadd.s32 %s53, 1
      %p57 = scmp.eq.s32.totalorder %s19, 1
      %p58 = scmp.ne.s32.totalorder %s53, %s55
      %p59 = scmp.eq.s32.totalorder %s19, 0
      %p60 = por %p58, %p59
      %p61 = scmp.ne.s32.totalorder %s53, %s55
      %p62 = scmp.eq.s32.totalorder %s24, 1
      %p63 = por %p61, %p62
      %p64 = scmp.ne.s32.totalorder %s55, %s56
      %p65 = scmp.eq.s32.totalorder %s24, 0
      %p66 = por %p64, %p65
      %p67 = scmp.ne.s32.totalorder %s55, %s56
      %p68 = scmp.eq.s32.totalorder %s25, 1
      %p69 = por %p67, %p68
      %p71 = scmp.ne.s32.totalorder %s56, %s70
      %p72 = scmp.eq.s32.totalorder %s25, 0
      %p73 = por %p71, %p72
      %s75 = sadd.s32 %s74, 1
      %p78 = scmp.eq.s32.totalorder %s19, 1
      %p79 = scmp.ne.s32.totalorder %s74, %s76
      %p80 = scmp.eq.s32.totalorder %s19, 0
      %p81 = por %p79, %p80
      %p82 = scmp.ne.s32.totalorder %s74, %s76
      %p83 = scmp.eq.s32.totalorder %s24, 1
      %p84 = por %p82, %p83
      %p85 = scmp.ne.s32.totalorder %s76, %s77
      %p86 = scmp.eq.s32.totalorder %s24, 0
      %p87 = por %p85, %p86
      %p88 = scmp.ne.s32.totalorder %s76, %s77
      %p89 = scmp.eq.s32.totalorder %s25, 1
      %p90 = por %p88, %p89
      %p92 = scmp.ne.s32.totalorder %s77, %s91
      %p93 = scmp.eq.s32.totalorder %s25, 0
      %p94 = por %p92, %p93
      %s96 = sadd.s32 %s95, 1
      %p99 = scmp.eq.s32.totalorder %s19, 1
      %p100 = scmp.ne.s32.totalorder %s95, %s97
      %p101 = scmp.eq.s32.totalorder %s19, 0
      %p102 = por %p100, %p101
      %p103 = scmp.ne.s32.totalorder %s95, %s97
      %p104 = scmp.eq.s32.totalorder %s24, 1
      %p105 = por %p103, %p104
      %p106 = scmp.ne.s32.totalorder %s97, %s98
      %p107 = scmp.eq.s32.totalorder %s24, 0
      %p108 = por %p106, %p107
      %p109 = scmp.ne.s32.totalorder %s97, %s98
      %p110 = scmp.eq.s32.totalorder %s25, 1
      %p111 = por %p109, %p110
      %p113 = scmp.ne.s32.totalorder %s98, %s112
      %p114 = scmp.eq.s32.totalorder %s25, 0
      %p115 = por %p113, %p114
      %s117 = sadd.s32 %s116, 1
      %p120 = scmp.eq.s32.totalorder %s19, 1
      %p121 = scmp.ne.s32.totalorder %s116, %s118
      %p122 = scmp.eq.s32.totalorder %s19, 0
      %p123 = por %p121, %p122
      %p124 = scmp.ne.s32.totalorder %s116, %s118
      %p125 = scmp.eq.s32.totalorder %s24, 1
      %p126 = por %p124, %p125
      %p127 = scmp.ne.s32.totalorder %s118, %s119
      %p128 = scmp.eq.s32.totalorder %s24, 0
      %p129 = por %p127, %p128
      %p130 = scmp.ne.s32.totalorder %s118, %s119
      %p131 = scmp.eq.s32.totalorder %s25, 1
      %p132 = por %p130, %p131
      %p134 = scmp.ne.s32.totalorder %s119, %s133
      %p135 = scmp.eq.s32.totalorder %s25, 0
      %p136 = por %p134, %p135
      %s138 = sadd.s32 %s137, 1
      %p141 = scmp.eq.s32.totalorder %s19, 1
      %p142 = scmp.ne.s32.totalorder %s137, %s139
      %p143 = scmp.eq.s32.totalorder %s19, 0
      %p144 = por %p142, %p143
      %p145 = scmp.ne.s32.totalorder %s137, %s139
      %p146 = scmp.eq.s32.totalorder %s24, 1
      %p147 = por %p145, %p146
      %p148 = scmp.ne.s32.totalorder %s139, %s140
      %p149 = scmp.eq.s32.totalorder %s24, 0
      %p150 = por %p148, %p149
      %p151 = scmp.ne.s32.totalorder %s139, %s140
      %p152 = scmp.eq.s32.totalorder %s25, 1
      %p153 = por %p151, %p152
      %p155 = scmp.ne.s32.totalorder %s140, %s154
      %p156 = scmp.eq.s32.totalorder %s25, 0
      %p157 = por %p155, %p156
      %s159 = sadd.s32 %s158, 1
      %p162 = scmp.eq.s32.totalorder %s19, 1
      %p163 = scmp.ne.s32.totalorder %s158, %s160
      %p164 = scmp.eq.s32.totalorder %s19, 0
      %p165 = por %p163, %p164
      %p166 = scmp.ne.s32.totalorder %s158, %s160
      %p167 = scmp.eq.s32.totalorder %s24, 1
      %p168 = por %p166, %p167
      %p169 = scmp.ne.s32.totalorder %s160, %s161
      %p170 = scmp.eq.s32.totalorder %s24, 0
      %p171 = por %p169, %p170
      %p172 = scmp.ne.s32.totalorder %s160, %s161
      %p173 = scmp.eq.s32.totalorder %s25, 1
      %p174 = por %p172, %p173
      %p176 = scmp.ne.s32.totalorder %s161, %s175
      %p177 = scmp.eq.s32.totalorder %s25, 0
      %p178 = por %p176, %p177
      %s180 = sadd.s32 %s179, 1
      %p183 = scmp.eq.s32.totalorder %s19, 1
      %p184 = scmp.ne.s32.totalorder %s179, %s181
      %p185 = scmp.eq.s32.totalorder %s19, 0
      %p186 = por %p184, %p185
      %p187 = scmp.ne.s32.totalorder %s179, %s181
      %p188 = scmp.eq.s32.totalorder %s24, 1
      %p189 = por %p187, %p188
      %p190 = scmp.ne.s32.totalorder %s181, %s182
      %p191 = scmp.eq.s32.totalorder %s24, 0
      %p192 = por %p190, %p191
      %p193 = scmp.ne.s32.totalorder %s181, %s182
      %p194 = scmp.eq.s32.totalorder %s25, 1
      %p195 = por %p193, %p194
      %p197 = scmp.ne.s32.totalorder %s182, %s196
      %p198 = scmp.eq.s32.totalorder %s25, 0
      %p199 = por %p197, %p198
      %s201 = sadd.s32 %s200, 1
      %p204 = scmp.eq.s32.totalorder %s19, 1
      %p205 = scmp.ne.s32.totalorder %s200, %s202
      %p206 = scmp.eq.s32.totalorder %s19, 0
      %p207 = por %p205, %p206
      %p208 = scmp.ne.s32.totalorder %s200, %s202
      %p209 = scmp.eq.s32.totalorder %s24, 1
      %p210 = por %p208, %p209
      %p211 = scmp.ne.s32.totalorder %s202, %s203
      %p212 = scmp.eq.s32.totalorder %s24, 0
      %p213 = por %p211, %p212
      %p214 = scmp.ne.s32.totalorder %s202, %s203
      %p215 = scmp.eq.s32.totalorder %s25, 1
      %p216 = por %p214, %p215
      %p218 = scmp.ne.s32.totalorder %s203, %s217
      %p219 = scmp.eq.s32.totalorder %s25, 0
      %p220 = por %p218, %p219
      %s221 = ssub.s32 %s19, %s26
      %p222 = scmp.eq.s32.totalorder %s221, 0
      %s224 = sadd.s32 %s223, 1
      %s225 = scalar_select %p222, %s223, %s224
      %p228 = pneg %p222
      %p229 = scmp.eq.s32.totalorder %s19, 1
      %p230 = por %p228, %p229
      %p231 = scmp.ne.s32.totalorder %s223, %s226
      %p232 = scmp.eq.s32.totalorder %s19, 0
      %p233 = por %p231, %p232
      %p234 = scmp.ne.s32.totalorder %s223, %s226
      %p235 = scmp.eq.s32.totalorder %s24, 1
      %p236 = por %p234, %p235
      %p237 = scmp.ne.s32.totalorder %s226, %s227
      %p238 = scmp.eq.s32.totalorder %s24, 0
      %p239 = por %p237, %p238
      %p240 = scmp.ne.s32.totalorder %s226, %s227
      %p241 = scmp.eq.s32.totalorder %s25, 1
      %p242 = por %p240, %p241
      %p244 = scmp.ne.s32.totalorder %s227, %s243
      %p245 = scmp.eq.s32.totalorder %s25, 0
      %p246 = por %p244, %p245
      %p247 = scmp.le.s32.totalorder 1, %s19
      %p248 = scmp.lt.s32.totalorder %s19, 3
      %p249 = pnand %p247, %p248
      %p250 = pneg %p249
      // Predicated region
      $region9: #{kan_discriminator_forward.1} parent=5 // pred_check
        _
      $region10: #{kan_discriminator_forward.1} parent=5 // pred_check_branch
        %252 = sbr.rel (%p249) target = $region12
      $region11: #{kan_discriminator_forward.1} parent=5 // pred_region
        %s253 = ssub.s32 %s19, 1
        // Predicated region
        $region13: #{kan_discriminator_forward.1} parent=11 // pred_check
          %p254 = pneg %p66
        $region14: #{kan_discriminator_forward.1} parent=11 // pred_check_branch
          %256 = sbr.rel (%p254) target = $region16
        $region15: #{kan_discriminator_forward.1} parent=11 // pred_region
          _
        $region16: #{kan_discriminator_forward.1} parent=11 // pred_fallthru
          _
        // Predicated region
        $region17: #{kan_discriminator_forward.1} parent=11 // pred_check
          %p257 = pneg %p87
        $region18: #{kan_discriminator_forward.1} parent=11 // pred_check_branch
          %259 = sbr.rel (%p257) target = $region20
        $region19: #{kan_discriminator_forward.1} parent=11 // pred_region
          _
        $region20: #{kan_discriminator_forward.1} parent=11 // pred_fallthru
          _
        // Predicated region
        $region21: #{kan_discriminator_forward.1} parent=11 // pred_check
          %p260 = pneg %p108
        $region22: #{kan_discriminator_forward.1} parent=11 // pred_check_branch
          %262 = sbr.rel (%p260) target = $region24
        $region23: #{kan_discriminator_forward.1} parent=11 // pred_region
          _
        $region24: #{kan_discriminator_forward.1} parent=11 // pred_fallthru
          _
        // Predicated region
        $region25: #{kan_discriminator_forward.1} parent=11 // pred_check
          %p263 = pneg %p129
        $region26: #{kan_discriminator_forward.1} parent=11 // pred_check_branch
          %265 = sbr.rel (%p263) target = $region28
        $region27: #{kan_discriminator_forward.1} parent=11 // pred_region
          _
        $region28: #{kan_discriminator_forward.1} parent=11 // pred_fallthru
          _
        // Predicated region
        $region29: #{kan_discriminator_forward.1} parent=11 // pred_check
          %p266 = pneg %p150
        $region30: #{kan_discriminator_forward.1} parent=11 // pred_check_branch
          %268 = sbr.rel (%p266) target = $region32
        $region31: #{kan_discriminator_forward.1} parent=11 // pred_region
          _
        $region32: #{kan_discriminator_forward.1} parent=11 // pred_fallthru
          _
        // Predicated region
        $region33: #{kan_discriminator_forward.1} parent=11 // pred_check
          %p269 = pneg %p171
        $region34: #{kan_discriminator_forward.1} parent=11 // pred_check_branch
          %271 = sbr.rel (%p269) target = $region36
        $region35: #{kan_discriminator_forward.1} parent=11 // pred_region
          _
        $region36: #{kan_discriminator_forward.1} parent=11 // pred_fallthru
          _
        // Predicated region
        $region37: #{kan_discriminator_forward.1} parent=11 // pred_check
          %p272 = pneg %p192
        $region38: #{kan_discriminator_forward.1} parent=11 // pred_check_branch
          %274 = sbr.rel (%p272) target = $region40
        $region39: #{kan_discriminator_forward.1} parent=11 // pred_region
          _
        $region40: #{kan_discriminator_forward.1} parent=11 // pred_fallthru
          _
        // Predicated region
        $region41: #{kan_discriminator_forward.1} parent=11 // pred_check
          %p275 = pneg %p213
        $region42: #{kan_discriminator_forward.1} parent=11 // pred_check_branch
          %277 = sbr.rel (%p275) target = $region44
        $region43: #{kan_discriminator_forward.1} parent=11 // pred_region
          _
        $region44: #{kan_discriminator_forward.1} parent=11 // pred_fallthru
          _
      $region12: #{kan_discriminator_forward.1} parent=5 // pred_fallthru
        _
      %p278 = scmp.lt.s32.totalorder %s19, 2
      // Predicated region
      $region45: #{kan_discriminator_forward.1} parent=5 // pred_check
        %p279 = pneg %p278
      $region46: #{kan_discriminator_forward.1} parent=5 // pred_check_branch
        %281 = sbr.rel (%p279) target = $region48
      $region47: #{kan_discriminator_forward.1} parent=5 // pred_region
        // Predicated region
        $region49: #{kan_discriminator_forward.1} parent=47 // pred_check
          %p282 = pneg %p39
        $region50: #{kan_discriminator_forward.1} parent=47 // pred_check_branch
          %284 = sbr.rel (%p282) target = $region52
        $region51: #{kan_discriminator_forward.1} parent=47 // pred_region
          %p285 = scmp.lt.s32.totalorder %s19, 1
          %s286 = scalar_select %p285, %s19, 1
          %s287 = smul.addr %s286, 32
          %s288 = smul.addr %s287, 8
          %s289 = scalar_lea.vmem %s0, %s288
        $region52: #{kan_discriminator_forward.1} parent=47 // pred_fallthru
          _
      $region48: #{kan_discriminator_forward.1} parent=5 // pred_fallthru
        _
      %p290 = scmp.le.s32.totalorder 1, %s19
      %p291 = scmp.lt.s32.totalorder %s19, 3
      %p292 = pnand %p290, %p291
      %p293 = pneg %p292
      // Predicated region
      $region53: #{kan_discriminator_forward.1} parent=5 // pred_check
        _
      $region54: #{kan_discriminator_forward.1} parent=5 // pred_check_branch
        %295 = sbr.rel (%p292) target = $region56
      $region55: #{kan_discriminator_forward.1} parent=5 // pred_region
        %s296 = ssub.s32 %s19, 1
        %p297 = scmp.lt.s32.totalorder %s24, 1
        %s298 = scalar_select %p297, %s24, 1
        %s299 = smul.addr %s298, 32
        %s300 = smul.addr %s299, 8
        %s301 = scalar_lea.vmem %s0, %s300
        %p302 = pneg %p45
        %p303 = pneg %p42
        %p304 = pneg %p66
        %p305 = pneg %p63
        %p306 = pneg %p87
        %p307 = pneg %p84
        %p308 = pneg %p108
        %p309 = pneg %p105
        %p310 = pneg %p129
        %p311 = pneg %p126
        %p312 = pneg %p150
        %p313 = pneg %p147
        %p314 = pneg %p171
        %p315 = pneg %p168
        %p316 = pneg %p192
        %p317 = pneg %p189
        %p318 = pneg %p213
        %p319 = pneg %p210
        %p320 = pneg %p239
        %p321 = pneg %p236
        %s322 = sand.u32 %s226, 1
        %s323 = scalar_lea.sflag [#allocation6], %s322
        %s324 = sand.u32 %s226, 1
        %s325 = smul.addr %s324, 16
        %s326 = scalar_lea.vmem [#allocation5], %s325
        %p327 = scmp.lt.s32.totalorder %s24, 1
        %s328 = scalar_select %p327, %s24, 1
        %s329 = smul.addr %s328, 32
        %s330 = smul.addr %s329, 8
        %s331 = scalar_lea.vmem %s0, %s330
        %v332 = vld [vmem:[%s331] sm:$0xff]
        %v333 = vld [vmem:[%s331 + $0x8] sm:$0xff]
        %v334 = vld [vmem:[%s331 + $0x10] sm:$0xff]
        %v335 = vld [vmem:[%s331 + $0x18] sm:$0xff]
        %v336 = vld [vmem:[%s331 + $0x20] sm:$0xff]
        %v337 = vld [vmem:[%s331 + $0x28] sm:$0xff]
        %v338 = vld [vmem:[%s331 + $0x30] sm:$0xff]
        %v339 = vld [vmem:[%s331 + $0x38] sm:$0xff]
        %v340 = vld [vmem:[%s331 + $0x40] sm:$0xff]
        %v341 = vld [vmem:[%s331 + $0x48] sm:$0xff]
        %v342 = vld [vmem:[%s331 + $0x50] sm:$0xff]
        %v343 = vld [vmem:[%s331 + $0x58] sm:$0xff]
        %v344 = vld [vmem:[%s331 + $0x60] sm:$0xff]
        %v345 = vld [vmem:[%s331 + $0x68] sm:$0xff]
        %v346 = vld [vmem:[%s331 + $0x70] sm:$0xff]
        %v347 = vld [vmem:[%s331 + $0x78] sm:$0xff]
        %v348 = vld [vmem:[%s331 + $0x80] sm:$0xff]
        %v349 = vld [vmem:[%s331 + $0x88] sm:$0xff]
        %v350 = vld [vmem:[%s331 + $0x90] sm:$0xff]
        %v351 = vld [vmem:[%s331 + $0x98] sm:$0xff]
        %v352 = vld [vmem:[%s331 + $0xa0] sm:$0xff]
        %v353 = vld [vmem:[%s331 + $0xa8] sm:$0xff]
        %v354 = vld [vmem:[%s331 + $0xb0] sm:$0xff]
        %v355 = vld [vmem:[%s331 + $0xb8] sm:$0xff]
        %v356 = vld [vmem:[%s331 + $0xc0] sm:$0xff]
        %v357 = vld [vmem:[%s331 + $0xc8] sm:$0xff]
        %v358 = vld [vmem:[%s331 + $0xd0] sm:$0xff]
        %v359 = vld [vmem:[%s331 + $0xd8] sm:$0xff]
        %v360 = vld [vmem:[%s331 + $0xe0] sm:$0xff]
        %v361 = vld [vmem:[%s331 + $0xe8] sm:$0xff]
        %v362 = vld [vmem:[%s331 + $0xf0] sm:$0xff]
        %v363 = vld [vmem:[%s331 + $0xf8] sm:$0xff]
        %vm364 = vcmask 31744
        %365 = vst.msk [vmem:[#allocation2] sm:$0xff] %vm364, 0.0
        %366 = vst.msk [vmem:[#allocation2 + $0x8] sm:$0xff] %vm364, 0.0
        %vm367 = vcmask 25600
        %368 = vst.msk [vmem:[#allocation2 + $0x10] sm:$0x3] %vm367, 0.0
        %s369 = scalar_lea.vmem [#allocation2], 408
        %370 = vst.msk [vmem:[%s369] sm:$0xff] %vm364, 0.0
        %371 = vst.msk [vmem:[%s369 + $0x8] sm:$0xff] %vm364, 0.0
        %372 = vst.msk [vmem:[%s369 + $0x10] sm:$0x3] %vm367, 0.0
        %vm373 = vcmask 24576
        %374 = vst.msk [vmem:[#allocation2] sm:$0x1] %vm373, 0.0
        %375 = vst.msk [vmem:[#allocation2 + $0x18] sm:$0x1] %vm373, 0.0
        %376 = vst.msk [vmem:[#allocation2 + $0x30] sm:$0x1] %vm373, 0.0
        %377 = vst.msk [vmem:[#allocation2 + $0x48] sm:$0x1] %vm373, 0.0
        %378 = vst.msk [vmem:[#allocation2 + $0x60] sm:$0x1] %vm373, 0.0
        %379 = vst.msk [vmem:[#allocation2 + $0x78] sm:$0x1] %vm373, 0.0
        %380 = vst.msk [vmem:[#allocation2 + $0x90] sm:$0x1] %vm373, 0.0
        %381 = vst.msk [vmem:[#allocation2 + $0xa8] sm:$0x1] %vm373, 0.0
        %382 = vst.msk [vmem:[#allocation2 + $0xc0] sm:$0x1] %vm373, 0.0
        %383 = vst.msk [vmem:[#allocation2 + $0xd8] sm:$0x1] %vm373, 0.0
        %384 = vst.msk [vmem:[#allocation2 + $0xf0] sm:$0x1] %vm373, 0.0
        %385 = vst.msk [vmem:[#allocation2 + $0x108] sm:$0x1] %vm373, 0.0
        %386 = vst.msk [vmem:[#allocation2 + $0x120] sm:$0x1] %vm373, 0.0
        %387 = vst.msk [vmem:[#allocation2 + $0x138] sm:$0x1] %vm373, 0.0
        %388 = vst.msk [vmem:[#allocation2 + $0x150] sm:$0x1] %vm373, 0.0
        %389 = vst.msk [vmem:[#allocation2 + $0x168] sm:$0x1] %vm373, 0.0
        %390 = vst.msk [vmem:[#allocation2 + $0x180] sm:$0x1] %vm373, 0.0
        %391 = vst.msk [vmem:[#allocation2 + $0x198] sm:$0x1] %vm373, 0.0
        %392 = vst.msk [vmem:[#allocation2 + $0x11] sm:$0x1] %vm373, 0.0
        %393 = vst.msk [vmem:[#allocation2 + $0x29] sm:$0x1] %vm373, 0.0
        %394 = vst.msk [vmem:[#allocation2 + $0x41] sm:$0x1] %vm373, 0.0
        %395 = vst.msk [vmem:[#allocation2 + $0x59] sm:$0x1] %vm373, 0.0
        %396 = vst.msk [vmem:[#allocation2 + $0x71] sm:$0x1] %vm373, 0.0
        %397 = vst.msk [vmem:[#allocation2 + $0x89] sm:$0x1] %vm373, 0.0
        %398 = vst.msk [vmem:[#allocation2 + $0xa1] sm:$0x1] %vm373, 0.0
        %399 = vst.msk [vmem:[#allocation2 + $0xb9] sm:$0x1] %vm373, 0.0
        %400 = vst.msk [vmem:[#allocation2 + $0xd1] sm:$0x1] %vm373, 0.0
        %401 = vst.msk [vmem:[#allocation2 + $0xe9] sm:$0x1] %vm373, 0.0
        %402 = vst.msk [vmem:[#allocation2 + $0x101] sm:$0x1] %vm373, 0.0
        %403 = vst.msk [vmem:[#allocation2 + $0x119] sm:$0x1] %vm373, 0.0
        %404 = vst.msk [vmem:[#allocation2 + $0x131] sm:$0x1] %vm373, 0.0
        %405 = vst.msk [vmem:[#allocation2 + $0x149] sm:$0x1] %vm373, 0.0
        %406 = vst.msk [vmem:[#allocation2 + $0x161] sm:$0x1] %vm373, 0.0
        %407 = vst.msk [vmem:[#allocation2 + $0x179] sm:$0x1] %vm373, 0.0
        %408 = vst.msk [vmem:[#allocation2 + $0x191] sm:$0x1] %vm373, 0.0
        %409 = vst.msk [vmem:[#allocation2 + $0x1a9] sm:$0x1] %vm373, 0.0
        %s410 = scalar_lea.vmem [#allocation2], 24
        %411 = vst.msk [vmem:[%s410 + $0x1] sm:$0xff] %vm364, %v332
        %412 = vst.msk [vmem:[%s410 + $0x9] sm:$0xff] %vm364, %v333
        %413 = vst.msk [vmem:[%s410 + $0x19] sm:$0xff] %vm364, %v334
        %414 = vst.msk [vmem:[%s410 + $0x21] sm:$0xff] %vm364, %v335
        %415 = vst.msk [vmem:[%s410 + $0x31] sm:$0xff] %vm364, %v336
        %416 = vst.msk [vmem:[%s410 + $0x39] sm:$0xff] %vm364, %v337
        %417 = vst.msk [vmem:[%s410 + $0x49] sm:$0xff] %vm364, %v338
        %418 = vst.msk [vmem:[%s410 + $0x51] sm:$0xff] %vm364, %v339
        %419 = vst.msk [vmem:[%s410 + $0x61] sm:$0xff] %vm364, %v340
        %420 = vst.msk [vmem:[%s410 + $0x69] sm:$0xff] %vm364, %v341
        %421 = vst.msk [vmem:[%s410 + $0x79] sm:$0xff] %vm364, %v342
        %422 = vst.msk [vmem:[%s410 + $0x81] sm:$0xff] %vm364, %v343
        %423 = vst.msk [vmem:[%s410 + $0x91] sm:$0xff] %vm364, %v344
        %424 = vst.msk [vmem:[%s410 + $0x99] sm:$0xff] %vm364, %v345
        %425 = vst.msk [vmem:[%s410 + $0xa9] sm:$0xff] %vm364, %v346
        %426 = vst.msk [vmem:[%s410 + $0xb1] sm:$0xff] %vm364, %v347
        %427 = vst.msk [vmem:[%s410 + $0xc1] sm:$0xff] %vm364, %v348
        %428 = vst.msk [vmem:[%s410 + $0xc9] sm:$0xff] %vm364, %v349
        %429 = vst.msk [vmem:[%s410 + $0xd9] sm:$0xff] %vm364, %v350
        %430 = vst.msk [vmem:[%s410 + $0xe1] sm:$0xff] %vm364, %v351
        %431 = vst.msk [vmem:[%s410 + $0xf1] sm:$0xff] %vm364, %v352
        %432 = vst.msk [vmem:[%s410 + $0xf9] sm:$0xff] %vm364, %v353
        %433 = vst.msk [vmem:[%s410 + $0x109] sm:$0xff] %vm364, %v354
        %434 = vst.msk [vmem:[%s410 + $0x111] sm:$0xff] %vm364, %v355
        %435 = vst.msk [vmem:[%s410 + $0x121] sm:$0xff] %vm364, %v356
        %436 = vst.msk [vmem:[%s410 + $0x129] sm:$0xff] %vm364, %v357
        %437 = vst.msk [vmem:[%s410 + $0x139] sm:$0xff] %vm364, %v358
        %438 = vst.msk [vmem:[%s410 + $0x141] sm:$0xff] %vm364, %v359
        %439 = vst.msk [vmem:[%s410 + $0x151] sm:$0xff] %vm364, %v360
        %440 = vst.msk [vmem:[%s410 + $0x159] sm:$0xff] %vm364, %v361
        %441 = vst.msk [vmem:[%s410 + $0x169] sm:$0xff] %vm364, %v362
        %442 = vst.msk [vmem:[%s410 + $0x171] sm:$0xff] %vm364, %v363
        %v443 = vld [vmem:[%s1] sm:$0x1]
        %v444 = vld [vmem:[#allocation2] sm:$0xff]
        %v445 = vld [vmem:[#allocation2 + $0x8] sm:$0xff]
        %v446 = vld [vmem:[#allocation2 + $0x18] sm:$0xff]
        %v447 = vld [vmem:[#allocation2 + $0x20] sm:$0xff]
        %v448 = vld [vmem:[#allocation2 + $0x30] sm:$0xff]
        %v449 = vld [vmem:[#allocation2 + $0x38] sm:$0xff]
        %v450 = vld [vmem:[#allocation2 + $0x48] sm:$0xff]
        %v451 = vld [vmem:[#allocation2 + $0x50] sm:$0xff]
        %v452 = vld [vmem:[#allocation2 + $0x60] sm:$0xff]
        %v453 = vld [vmem:[#allocation2 + $0x68] sm:$0xff]
        %v454 = vld [vmem:[#allocation2 + $0x78] sm:$0xff]
        %v455 = vld [vmem:[#allocation2 + $0x80] sm:$0xff]
        %v456 = vld [vmem:[#allocation2 + $0x90] sm:$0xff]
        %v457 = vld [vmem:[#allocation2 + $0x98] sm:$0xff]
        %v458 = vld [vmem:[#allocation2 + $0xa8] sm:$0xff]
        %v459 = vld [vmem:[#allocation2 + $0xb0] sm:$0xff]
        %v460 = vld [vmem:[#allocation2 + $0xc0] sm:$0xff]
        %v461 = vld [vmem:[#allocation2 + $0xc8] sm:$0xff]
        %v462 = vld [vmem:[#allocation2 + $0xd8] sm:$0xff]
        %v463 = vld [vmem:[#allocation2 + $0xe0] sm:$0xff]
        %v464 = vld [vmem:[#allocation2 + $0xf0] sm:$0xff]
        %v465 = vld [vmem:[#allocation2 + $0xf8] sm:$0xff]
        %v466 = vld [vmem:[#allocation2 + $0x108] sm:$0xff]
        %v467 = vld [vmem:[#allocation2 + $0x110] sm:$0xff]
        %v468 = vld [vmem:[#allocation2 + $0x120] sm:$0xff]
        %v469 = vld [vmem:[#allocation2 + $0x128] sm:$0xff]
        %v470 = vld [vmem:[#allocation2 + $0x138] sm:$0xff]
        %v471 = vld [vmem:[#allocation2 + $0x140] sm:$0xff]
        %v472 = vld [vmem:[#allocation2 + $0x150] sm:$0xff]
        %v473 = vld [vmem:[#allocation2 + $0x158] sm:$0xff]
        %v474 = vld [vmem:[#allocation2 + $0x168] sm:$0xff]
        %v475 = vld [vmem:[#allocation2 + $0x170] sm:$0xff]
        %v477 = vlaneseq
        %v478 = vshrl.u32 %v477, 7
        %v479 = vsub.s32 0, %v478
        %v480 = vrot.slane %v443, %v479
        %v482 = vmul.f32 %v444, %v480
        %v483 = vmul.f32 %v445, %v480
        %v484 = vmul.f32 %v446, %v480
        %v485 = vmul.f32 %v447, %v480
        %v486 = vmul.f32 %v448, %v480
        %v487 = vmul.f32 %v449, %v480
        %v488 = vmul.f32 %v450, %v480
        %v489 = vmul.f32 %v451, %v480
        %v490 = vmul.f32 %v452, %v480
        %v491 = vmul.f32 %v453, %v480
        %v492 = vmul.f32 %v454, %v480
        %v493 = vmul.f32 %v455, %v480
        %v494 = vmul.f32 %v456, %v480
        %v495 = vmul.f32 %v457, %v480
        %v496 = vmul.f32 %v458, %v480
        %v497 = vmul.f32 %v459, %v480
        %v498 = vmul.f32 %v460, %v480
        %v499 = vmul.f32 %v461, %v480
        %v500 = vmul.f32 %v462, %v480
        %v501 = vmul.f32 %v463, %v480
        %v502 = vmul.f32 %v464, %v480
        %v503 = vmul.f32 %v465, %v480
        %v504 = vmul.f32 %v466, %v480
        %v505 = vmul.f32 %v467, %v480
        %v506 = vmul.f32 %v468, %v480
        %v507 = vmul.f32 %v469, %v480
        %v508 = vmul.f32 %v470, %v480
        %v509 = vmul.f32 %v471, %v480
        %v510 = vmul.f32 %v472, %v480
        %v511 = vmul.f32 %v473, %v480
        %v512 = vmul.f32 %v474, %v480
        %v513 = vmul.f32 %v475, %v480
        %v514 = vadd.f32 %v482, 0.0
        %v515 = vadd.f32 %v483, 0.0
        %v516 = vadd.f32 %v484, 0.0
        %v517 = vadd.f32 %v485, 0.0
        %v518 = vadd.f32 %v486, 0.0
        %v519 = vadd.f32 %v487, 0.0
        %v520 = vadd.f32 %v488, 0.0
        %v521 = vadd.f32 %v489, 0.0
        %v522 = vadd.f32 %v490, 0.0
        %v523 = vadd.f32 %v491, 0.0
        %v524 = vadd.f32 %v492, 0.0
        %v525 = vadd.f32 %v493, 0.0
        %v526 = vadd.f32 %v494, 0.0
        %v527 = vadd.f32 %v495, 0.0
        %v528 = vadd.f32 %v496, 0.0
        %v529 = vadd.f32 %v497, 0.0
        %v530 = vadd.f32 %v498, 0.0
        %v531 = vadd.f32 %v499, 0.0
        %v532 = vadd.f32 %v500, 0.0
        %v533 = vadd.f32 %v501, 0.0
        %v534 = vadd.f32 %v502, 0.0
        %v535 = vadd.f32 %v503, 0.0
        %v536 = vadd.f32 %v504, 0.0
        %v537 = vadd.f32 %v505, 0.0
        %v538 = vadd.f32 %v506, 0.0
        %v539 = vadd.f32 %v507, 0.0
        %v540 = vadd.f32 %v508, 0.0
        %v541 = vadd.f32 %v509, 0.0
        %v542 = vadd.f32 %v510, 0.0
        %v543 = vadd.f32 %v511, 0.0
        %v544 = vadd.f32 %v512, 0.0
        %v545 = vadd.f32 %v513, 0.0
        %s546 = scalar_lea.vmem %s1, 1
        %v547 = vld [vmem:[%s546] sm:$0x1]
        %v548 = vld [vmem:[#allocation2 + $0x1] sm:$0xff]
        %v549 = vld [vmem:[#allocation2 + $0x9] sm:$0xff]
        %v550 = vld [vmem:[#allocation2 + $0x19] sm:$0xff]
        %v551 = vld [vmem:[#allocation2 + $0x21] sm:$0xff]
        %v552 = vld [vmem:[#allocation2 + $0x31] sm:$0xff]
        %v553 = vld [vmem:[#allocation2 + $0x39] sm:$0xff]
        %v554 = vld [vmem:[#allocation2 + $0x49] sm:$0xff]
        %v555 = vld [vmem:[#allocation2 + $0x51] sm:$0xff]
        %v556 = vld [vmem:[#allocation2 + $0x61] sm:$0xff]
        %v557 = vld [vmem:[#allocation2 + $0x69] sm:$0xff]
        %v558 = vld [vmem:[#allocation2 + $0x79] sm:$0xff]
        %v559 = vld [vmem:[#allocation2 + $0x81] sm:$0xff]
        %v560 = vld [vmem:[#allocation2 + $0x91] sm:$0xff]
        %v561 = vld [vmem:[#allocation2 + $0x99] sm:$0xff]
        %v562 = vld [vmem:[#allocation2 + $0xa9] sm:$0xff]
        %v563 = vld [vmem:[#allocation2 + $0xb1] sm:$0xff]
        %v564 = vld [vmem:[#allocation2 + $0xc1] sm:$0xff]
        %v565 = vld [vmem:[#allocation2 + $0xc9] sm:$0xff]
        %v566 = vld [vmem:[#allocation2 + $0xd9] sm:$0xff]
        %v567 = vld [vmem:[#allocation2 + $0xe1] sm:$0xff]
        %v568 = vld [vmem:[#allocation2 + $0xf1] sm:$0xff]
        %v569 = vld [vmem:[#allocation2 + $0xf9] sm:$0xff]
        %v570 = vld [vmem:[#allocation2 + $0x109] sm:$0xff]
        %v571 = vld [vmem:[#allocation2 + $0x111] sm:$0xff]
        %v572 = vld [vmem:[#allocation2 + $0x121] sm:$0xff]
        %v573 = vld [vmem:[#allocation2 + $0x129] sm:$0xff]
        %v574 = vld [vmem:[#allocation2 + $0x139] sm:$0xff]
        %v575 = vld [vmem:[#allocation2 + $0x141] sm:$0xff]
        %v576 = vld [vmem:[#allocation2 + $0x151] sm:$0xff]
        %v577 = vld [vmem:[#allocation2 + $0x159] sm:$0xff]
        %v578 = vld [vmem:[#allocation2 + $0x169] sm:$0xff]
        %v579 = vld [vmem:[#allocation2 + $0x171] sm:$0xff]
        %v581 = vlaneseq
        %v582 = vshrl.u32 %v581, 7
        %v583 = vsub.s32 0, %v582
        %v584 = vrot.slane %v547, %v583
        %v586 = vmul.f32 %v548, %v584
        %v587 = vmul.f32 %v549, %v584
        %v588 = vmul.f32 %v550, %v584
        %v589 = vmul.f32 %v551, %v584
        %v590 = vmul.f32 %v552, %v584
        %v591 = vmul.f32 %v553, %v584
        %v592 = vmul.f32 %v554, %v584
        %v593 = vmul.f32 %v555, %v584
        %v594 = vmul.f32 %v556, %v584
        %v595 = vmul.f32 %v557, %v584
        %v596 = vmul.f32 %v558, %v584
        %v597 = vmul.f32 %v559, %v584
        %v598 = vmul.f32 %v560, %v584
        %v599 = vmul.f32 %v561, %v584
        %v600 = vmul.f32 %v562, %v584
        %v601 = vmul.f32 %v563, %v584
        %v602 = vmul.f32 %v564, %v584
        %v603 = vmul.f32 %v565, %v584
        %v604 = vmul.f32 %v566, %v584
        %v605 = vmul.f32 %v567, %v584
        %v606 = vmul.f32 %v568, %v584
        %v607 = vmul.f32 %v569, %v584
        %v608 = vmul.f32 %v570, %v584
        %v609 = vmul.f32 %v571, %v584
        %v610 = vmul.f32 %v572, %v584
        %v611 = vmul.f32 %v573, %v584
        %v612 = vmul.f32 %v574, %v584
        %v613 = vmul.f32 %v575, %v584
        %v614 = vmul.f32 %v576, %v584
        %v615 = vmul.f32 %v577, %v584
        %v616 = vmul.f32 %v578, %v584
        %v617 = vmul.f32 %v579, %v584
        %v618 = vadd.f32 %v514, %v586
        %v619 = vadd.f32 %v515, %v587
        %v620 = vadd.f32 %v516, %v588
        %v621 = vadd.f32 %v517, %v589
        %v622 = vadd.f32 %v518, %v590
        %v623 = vadd.f32 %v519, %v591
        %v624 = vadd.f32 %v520, %v592
        %v625 = vadd.f32 %v521, %v593
        %v626 = vadd.f32 %v522, %v594
        %v627 = vadd.f32 %v523, %v595
        %v628 = vadd.f32 %v524, %v596
        %v629 = vadd.f32 %v525, %v597
        %v630 = vadd.f32 %v526, %v598
        %v631 = vadd.f32 %v527, %v599
        %v632 = vadd.f32 %v528, %v600
        %v633 = vadd.f32 %v529, %v601
        %v634 = vadd.f32 %v530, %v602
        %v635 = vadd.f32 %v531, %v603
        %v636 = vadd.f32 %v532, %v604
        %v637 = vadd.f32 %v533, %v605
        %v638 = vadd.f32 %v534, %v606
        %v639 = vadd.f32 %v535, %v607
        %v640 = vadd.f32 %v536, %v608
        %v641 = vadd.f32 %v537, %v609
        %v642 = vadd.f32 %v538, %v610
        %v643 = vadd.f32 %v539, %v611
        %v644 = vadd.f32 %v540, %v612
        %v645 = vadd.f32 %v541, %v613
        %v646 = vadd.f32 %v542, %v614
        %v647 = vadd.f32 %v543, %v615
        %v648 = vadd.f32 %v544, %v616
        %v649 = vadd.f32 %v545, %v617
        %s650 = scalar_lea.vmem %s1, 2
        %v651 = vld [vmem:[%s650] sm:$0x1]
        %v652 = vld [vmem:[#allocation2 + $0x2] sm:$0xff]
        %v653 = vld [vmem:[#allocation2 + $0xa] sm:$0xff]
        %v654 = vld [vmem:[#allocation2 + $0x1a] sm:$0xff]
        %v655 = vld [vmem:[#allocation2 + $0x22] sm:$0xff]
        %v656 = vld [vmem:[#allocation2 + $0x32] sm:$0xff]
        %v657 = vld [vmem:[#allocation2 + $0x3a] sm:$0xff]
        %v658 = vld [vmem:[#allocation2 + $0x4a] sm:$0xff]
        %v659 = vld [vmem:[#allocation2 + $0x52] sm:$0xff]
        %v660 = vld [vmem:[#allocation2 + $0x62] sm:$0xff]
        %v661 = vld [vmem:[#allocation2 + $0x6a] sm:$0xff]
        %v662 = vld [vmem:[#allocation2 + $0x7a] sm:$0xff]
        %v663 = vld [vmem:[#allocation2 + $0x82] sm:$0xff]
        %v664 = vld [vmem:[#allocation2 + $0x92] sm:$0xff]
        %v665 = vld [vmem:[#allocation2 + $0x9a] sm:$0xff]
        %v666 = vld [vmem:[#allocation2 + $0xaa] sm:$0xff]
        %v667 = vld [vmem:[#allocation2 + $0xb2] sm:$0xff]
        %v668 = vld [vmem:[#allocation2 + $0xc2] sm:$0xff]
        %v669 = vld [vmem:[#allocation2 + $0xca] sm:$0xff]
        %v670 = vld [vmem:[#allocation2 + $0xda] sm:$0xff]
        %v671 = vld [vmem:[#allocation2 + $0xe2] sm:$0xff]
        %v672 = vld [vmem:[#allocation2 + $0xf2] sm:$0xff]
        %v673 = vld [vmem:[#allocation2 + $0xfa] sm:$0xff]
        %v674 = vld [vmem:[#allocation2 + $0x10a] sm:$0xff]
        %v675 = vld [vmem:[#allocation2 + $0x112] sm:$0xff]
        %v676 = vld [vmem:[#allocation2 + $0x122] sm:$0xff]
        %v677 = vld [vmem:[#allocation2 + $0x12a] sm:$0xff]
        %v678 = vld [vmem:[#allocation2 + $0x13a] sm:$0xff]
        %v679 = vld [vmem:[#allocation2 + $0x142] sm:$0xff]
        %v680 = vld [vmem:[#allocation2 + $0x152] sm:$0xff]
        %v681 = vld [vmem:[#allocation2 + $0x15a] sm:$0xff]
        %v682 = vld [vmem:[#allocation2 + $0x16a] sm:$0xff]
        %v683 = vld [vmem:[#allocation2 + $0x172] sm:$0xff]
        %v685 = vlaneseq
        %v686 = vshrl.u32 %v685, 7
        %v687 = vsub.s32 0, %v686
        %v688 = vrot.slane %v651, %v687
        %v690 = vmul.f32 %v652, %v688
        %v691 = vmul.f32 %v653, %v688
        %v692 = vmul.f32 %v654, %v688
        %v693 = vmul.f32 %v655, %v688
        %v694 = vmul.f32 %v656, %v688
        %v695 = vmul.f32 %v657, %v688
        %v696 = vmul.f32 %v658, %v688
        %v697 = vmul.f32 %v659, %v688
        %v698 = vmul.f32 %v660, %v688
        %v699 = vmul.f32 %v661, %v688
        %v700 = vmul.f32 %v662, %v688
        %v701 = vmul.f32 %v663, %v688
        %v702 = vmul.f32 %v664, %v688
        %v703 = vmul.f32 %v665, %v688
        %v704 = vmul.f32 %v666, %v688
        %v705 = vmul.f32 %v667, %v688
        %v706 = vmul.f32 %v668, %v688
        %v707 = vmul.f32 %v669, %v688
        %v708 = vmul.f32 %v670, %v688
        %v709 = vmul.f32 %v671, %v688
        %v710 = vmul.f32 %v672, %v688
        %v711 = vmul.f32 %v673, %v688
        %v712 = vmul.f32 %v674, %v688
        %v713 = vmul.f32 %v675, %v688
        %v714 = vmul.f32 %v676, %v688
        %v715 = vmul.f32 %v677, %v688
        %v716 = vmul.f32 %v678, %v688
        %v717 = vmul.f32 %v679, %v688
        %v718 = vmul.f32 %v680, %v688
        %v719 = vmul.f32 %v681, %v688
        %v720 = vmul.f32 %v682, %v688
        %v721 = vmul.f32 %v683, %v688
        %v722 = vadd.f32 %v618, %v690
        %v723 = vadd.f32 %v619, %v691
        %v724 = vadd.f32 %v620, %v692
        %v725 = vadd.f32 %v621, %v693
        %v726 = vadd.f32 %v622, %v694
        %v727 = vadd.f32 %v623, %v695
        %v728 = vadd.f32 %v624, %v696
        %v729 = vadd.f32 %v625, %v697
        %v730 = vadd.f32 %v626, %v698
        %v731 = vadd.f32 %v627, %v699
        %v732 = vadd.f32 %v628, %v700
        %v733 = vadd.f32 %v629, %v701
        %v734 = vadd.f32 %v630, %v702
        %v735 = vadd.f32 %v631, %v703
        %v736 = vadd.f32 %v632, %v704
        %v737 = vadd.f32 %v633, %v705
        %v738 = vadd.f32 %v634, %v706
        %v739 = vadd.f32 %v635, %v707
        %v740 = vadd.f32 %v636, %v708
        %v741 = vadd.f32 %v637, %v709
        %v742 = vadd.f32 %v638, %v710
        %v743 = vadd.f32 %v639, %v711
        %v744 = vadd.f32 %v640, %v712
        %v745 = vadd.f32 %v641, %v713
        %v746 = vadd.f32 %v642, %v714
        %v747 = vadd.f32 %v643, %v715
        %v748 = vadd.f32 %v644, %v716
        %v749 = vadd.f32 %v645, %v717
        %v750 = vadd.f32 %v646, %v718
        %v751 = vadd.f32 %v647, %v719
        %v752 = vadd.f32 %v648, %v720
        %v753 = vadd.f32 %v649, %v721
        %s754 = scalar_lea.vmem %s1, 3
        %v755 = vld [vmem:[%s754] sm:$0x1]
        %v756 = vld [vmem:[%s410] sm:$0xff]
        %v757 = vld [vmem:[%s410 + $0x8] sm:$0xff]
        %v758 = vld [vmem:[%s410 + $0x18] sm:$0xff]
        %v759 = vld [vmem:[%s410 + $0x20] sm:$0xff]
        %v760 = vld [vmem:[%s410 + $0x30] sm:$0xff]
        %v761 = vld [vmem:[%s410 + $0x38] sm:$0xff]
        %v762 = vld [vmem:[%s410 + $0x48] sm:$0xff]
        %v763 = vld [vmem:[%s410 + $0x50] sm:$0xff]
        %v764 = vld [vmem:[%s410 + $0x60] sm:$0xff]
        %v765 = vld [vmem:[%s410 + $0x68] sm:$0xff]
        %v766 = vld [vmem:[%s410 + $0x78] sm:$0xff]
        %v767 = vld [vmem:[%s410 + $0x80] sm:$0xff]
        %v768 = vld [vmem:[%s410 + $0x90] sm:$0xff]
        %v769 = vld [vmem:[%s410 + $0x98] sm:$0xff]
        %v770 = vld [vmem:[%s410 + $0xa8] sm:$0xff]
        %v771 = vld [vmem:[%s410 + $0xb0] sm:$0xff]
        %v772 = vld [vmem:[%s410 + $0xc0] sm:$0xff]
        %v773 = vld [vmem:[%s410 + $0xc8] sm:$0xff]
        %v774 = vld [vmem:[%s410 + $0xd8] sm:$0xff]
        %v775 = vld [vmem:[%s410 + $0xe0] sm:$0xff]
        %v776 = vld [vmem:[%s410 + $0xf0] sm:$0xff]
        %v777 = vld [vmem:[%s410 + $0xf8] sm:$0xff]
        %v778 = vld [vmem:[%s410 + $0x108] sm:$0xff]
        %v779 = vld [vmem:[%s410 + $0x110] sm:$0xff]
        %v780 = vld [vmem:[%s410 + $0x120] sm:$0xff]
        %v781 = vld [vmem:[%s410 + $0x128] sm:$0xff]
        %v782 = vld [vmem:[%s410 + $0x138] sm:$0xff]
        %v783 = vld [vmem:[%s410 + $0x140] sm:$0xff]
        %v784 = vld [vmem:[%s410 + $0x150] sm:$0xff]
        %v785 = vld [vmem:[%s410 + $0x158] sm:$0xff]
        %v786 = vld [vmem:[%s410 + $0x168] sm:$0xff]
        %v787 = vld [vmem:[%s410 + $0x170] sm:$0xff]
        %v789 = vlaneseq
        %v790 = vshrl.u32 %v789, 7
        %v791 = vsub.s32 0, %v790
        %v792 = vrot.slane %v755, %v791
        %v794 = vmul.f32 %v756, %v792
        %v795 = vmul.f32 %v757, %v792
        %v796 = vmul.f32 %v758, %v792
        %v797 = vmul.f32 %v759, %v792
        %v798 = vmul.f32 %v760, %v792
        %v799 = vmul.f32 %v761, %v792
        %v800 = vmul.f32 %v762, %v792
        %v801 = vmul.f32 %v763, %v792
        %v802 = vmul.f32 %v764, %v792
        %v803 = vmul.f32 %v765, %v792
        %v804 = vmul.f32 %v766, %v792
        %v805 = vmul.f32 %v767, %v792
        %v806 = vmul.f32 %v768, %v792
        %v807 = vmul.f32 %v769, %v792
        %v808 = vmul.f32 %v770, %v792
        %v809 = vmul.f32 %v771, %v792
        %v810 = vmul.f32 %v772, %v792
        %v811 = vmul.f32 %v773, %v792
        %v812 = vmul.f32 %v774, %v792
        %v813 = vmul.f32 %v775, %v792
        %v814 = vmul.f32 %v776, %v792
        %v815 = vmul.f32 %v777, %v792
        %v816 = vmul.f32 %v778, %v792
        %v817 = vmul.f32 %v779, %v792
        %v818 = vmul.f32 %v780, %v792
        %v819 = vmul.f32 %v781, %v792
        %v820 = vmul.f32 %v782, %v792
        %v821 = vmul.f32 %v783, %v792
        %v822 = vmul.f32 %v784, %v792
        %v823 = vmul.f32 %v785, %v792
        %v824 = vmul.f32 %v786, %v792
        %v825 = vmul.f32 %v787, %v792
        %v826 = vadd.f32 %v722, %v794
        %v827 = vadd.f32 %v723, %v795
        %v828 = vadd.f32 %v724, %v796
        %v829 = vadd.f32 %v725, %v797
        %v830 = vadd.f32 %v726, %v798
        %v831 = vadd.f32 %v727, %v799
        %v832 = vadd.f32 %v728, %v800
        %v833 = vadd.f32 %v729, %v801
        %v834 = vadd.f32 %v730, %v802
        %v835 = vadd.f32 %v731, %v803
        %v836 = vadd.f32 %v732, %v804
        %v837 = vadd.f32 %v733, %v805
        %v838 = vadd.f32 %v734, %v806
        %v839 = vadd.f32 %v735, %v807
        %v840 = vadd.f32 %v736, %v808
        %v841 = vadd.f32 %v737, %v809
        %v842 = vadd.f32 %v738, %v810
        %v843 = vadd.f32 %v739, %v811
        %v844 = vadd.f32 %v740, %v812
        %v845 = vadd.f32 %v741, %v813
        %v846 = vadd.f32 %v742, %v814
        %v847 = vadd.f32 %v743, %v815
        %v848 = vadd.f32 %v744, %v816
        %v849 = vadd.f32 %v745, %v817
        %v850 = vadd.f32 %v746, %v818
        %v851 = vadd.f32 %v747, %v819
        %v852 = vadd.f32 %v748, %v820
        %v853 = vadd.f32 %v749, %v821
        %v854 = vadd.f32 %v750, %v822
        %v855 = vadd.f32 %v751, %v823
        %v856 = vadd.f32 %v752, %v824
        %v857 = vadd.f32 %v753, %v825
        %s858 = scalar_lea.vmem %s1, 4
        %v859 = vld [vmem:[%s858] sm:$0x1]
        %v860 = vld [vmem:[%s410 + $0x1] sm:$0xff]
        %v861 = vld [vmem:[%s410 + $0x9] sm:$0xff]
        %v862 = vld [vmem:[%s410 + $0x19] sm:$0xff]
        %v863 = vld [vmem:[%s410 + $0x21] sm:$0xff]
        %v864 = vld [vmem:[%s410 + $0x31] sm:$0xff]
        %v865 = vld [vmem:[%s410 + $0x39] sm:$0xff]
        %v866 = vld [vmem:[%s410 + $0x49] sm:$0xff]
        %v867 = vld [vmem:[%s410 + $0x51] sm:$0xff]
        %v868 = vld [vmem:[%s410 + $0x61] sm:$0xff]
        %v869 = vld [vmem:[%s410 + $0x69] sm:$0xff]
        %v870 = vld [vmem:[%s410 + $0x79] sm:$0xff]
        %v871 = vld [vmem:[%s410 + $0x81] sm:$0xff]
        %v872 = vld [vmem:[%s410 + $0x91] sm:$0xff]
        %v873 = vld [vmem:[%s410 + $0x99] sm:$0xff]
        %v874 = vld [vmem:[%s410 + $0xa9] sm:$0xff]
        %v875 = vld [vmem:[%s410 + $0xb1] sm:$0xff]
        %v876 = vld [vmem:[%s410 + $0xc1] sm:$0xff]
        %v877 = vld [vmem:[%s410 + $0xc9] sm:$0xff]
        %v878 = vld [vmem:[%s410 + $0xd9] sm:$0xff]
        %v879 = vld [vmem:[%s410 + $0xe1] sm:$0xff]
        %v880 = vld [vmem:[%s410 + $0xf1] sm:$0xff]
        %v881 = vld [vmem:[%s410 + $0xf9] sm:$0xff]
        %v882 = vld [vmem:[%s410 + $0x109] sm:$0xff]
        %v883 = vld [vmem:[%s410 + $0x111] sm:$0xff]
        %v884 = vld [vmem:[%s410 + $0x121] sm:$0xff]
        %v885 = vld [vmem:[%s410 + $0x129] sm:$0xff]
        %v886 = vld [vmem:[%s410 + $0x139] sm:$0xff]
        %v887 = vld [vmem:[%s410 + $0x141] sm:$0xff]
        %v888 = vld [vmem:[%s410 + $0x151] sm:$0xff]
        %v889 = vld [vmem:[%s410 + $0x159] sm:$0xff]
        %v890 = vld [vmem:[%s410 + $0x169] sm:$0xff]
        %v891 = vld [vmem:[%s410 + $0x171] sm:$0xff]
        %v893 = vlaneseq
        %v894 = vshrl.u32 %v893, 7
        %v895 = vsub.s32 0, %v894
        %v896 = vrot.slane %v859, %v895
        %v898 = vmul.f32 %v860, %v896
        %v899 = vmul.f32 %v861, %v896
        %v900 = vmul.f32 %v862, %v896
        %v901 = vmul.f32 %v863, %v896
        %v902 = vmul.f32 %v864, %v896
        %v903 = vmul.f32 %v865, %v896
        %v904 = vmul.f32 %v866, %v896
        %v905 = vmul.f32 %v867, %v896
        %v906 = vmul.f32 %v868, %v896
        %v907 = vmul.f32 %v869, %v896
        %v908 = vmul.f32 %v870, %v896
        %v909 = vmul.f32 %v871, %v896
        %v910 = vmul.f32 %v872, %v896
        %v911 = vmul.f32 %v873, %v896
        %v912 = vmul.f32 %v874, %v896
        %v913 = vmul.f32 %v875, %v896
        %v914 = vmul.f32 %v876, %v896
        %v915 = vmul.f32 %v877, %v896
        %v916 = vmul.f32 %v878, %v896
        %v917 = vmul.f32 %v879, %v896
        %v918 = vmul.f32 %v880, %v896
        %v919 = vmul.f32 %v881, %v896
        %v920 = vmul.f32 %v882, %v896
        %v921 = vmul.f32 %v883, %v896
        %v922 = vmul.f32 %v884, %v896
        %v923 = vmul.f32 %v885, %v896
        %v924 = vmul.f32 %v886, %v896
        %v925 = vmul.f32 %v887, %v896
        %v926 = vmul.f32 %v888, %v896
        %v927 = vmul.f32 %v889, %v896
        %v928 = vmul.f32 %v890, %v896
        %v929 = vmul.f32 %v891, %v896
        %v930 = vadd.f32 %v826, %v898
        %v931 = vadd.f32 %v827, %v899
        %v932 = vadd.f32 %v828, %v900
        %v933 = vadd.f32 %v829, %v901
        %v934 = vadd.f32 %v830, %v902
        %v935 = vadd.f32 %v831, %v903
        %v936 = vadd.f32 %v832, %v904
        %v937 = vadd.f32 %v833, %v905
        %v938 = vadd.f32 %v834, %v906
        %v939 = vadd.f32 %v835, %v907
        %v940 = vadd.f32 %v836, %v908
        %v941 = vadd.f32 %v837, %v909
        %v942 = vadd.f32 %v838, %v910
        %v943 = vadd.f32 %v839, %v911
        %v944 = vadd.f32 %v840, %v912
        %v945 = vadd.f32 %v841, %v913
        %v946 = vadd.f32 %v842, %v914
        %v947 = vadd.f32 %v843, %v915
        %v948 = vadd.f32 %v844, %v916
        %v949 = vadd.f32 %v845, %v917
        %v950 = vadd.f32 %v846, %v918
        %v951 = vadd.f32 %v847, %v919
        %v952 = vadd.f32 %v848, %v920
        %v953 = vadd.f32 %v849, %v921
        %v954 = vadd.f32 %v850, %v922
        %v955 = vadd.f32 %v851, %v923
        %v956 = vadd.f32 %v852, %v924
        %v957 = vadd.f32 %v853, %v925
        %v958 = vadd.f32 %v854, %v926
        %v959 = vadd.f32 %v855, %v927
        %v960 = vadd.f32 %v856, %v928
        %v961 = vadd.f32 %v857, %v929
        %s962 = scalar_lea.vmem %s1, 5
        %v963 = vld [vmem:[%s962] sm:$0x1]
        %v964 = vld [vmem:[%s410 + $0x2] sm:$0xff]
        %v965 = vld [vmem:[%s410 + $0xa] sm:$0xff]
        %v966 = vld [vmem:[%s410 + $0x1a] sm:$0xff]
        %v967 = vld [vmem:[%s410 + $0x22] sm:$0xff]
        %v968 = vld [vmem:[%s410 + $0x32] sm:$0xff]
        %v969 = vld [vmem:[%s410 + $0x3a] sm:$0xff]
        %v970 = vld [vmem:[%s410 + $0x4a] sm:$0xff]
        %v971 = vld [vmem:[%s410 + $0x52] sm:$0xff]
        %v972 = vld [vmem:[%s410 + $0x62] sm:$0xff]
        %v973 = vld [vmem:[%s410 + $0x6a] sm:$0xff]
        %v974 = vld [vmem:[%s410 + $0x7a] sm:$0xff]
        %v975 = vld [vmem:[%s410 + $0x82] sm:$0xff]
        %v976 = vld [vmem:[%s410 + $0x92] sm:$0xff]
        %v977 = vld [vmem:[%s410 + $0x9a] sm:$0xff]
        %v978 = vld [vmem:[%s410 + $0xaa] sm:$0xff]
        %v979 = vld [vmem:[%s410 + $0xb2] sm:$0xff]
        %v980 = vld [vmem:[%s410 + $0xc2] sm:$0xff]
        %v981 = vld [vmem:[%s410 + $0xca] sm:$0xff]
        %v982 = vld [vmem:[%s410 + $0xda] sm:$0xff]
        %v983 = vld [vmem:[%s410 + $0xe2] sm:$0xff]
        %v984 = vld [vmem:[%s410 + $0xf2] sm:$0xff]
        %v985 = vld [vmem:[%s410 + $0xfa] sm:$0xff]
        %v986 = vld [vmem:[%s410 + $0x10a] sm:$0xff]
        %v987 = vld [vmem:[%s410 + $0x112] sm:$0xff]
        %v988 = vld [vmem:[%s410 + $0x122] sm:$0xff]
        %v989 = vld [vmem:[%s410 + $0x12a] sm:$0xff]
        %v990 = vld [vmem:[%s410 + $0x13a] sm:$0xff]
        %v991 = vld [vmem:[%s410 + $0x142] sm:$0xff]
        %v992 = vld [vmem:[%s410 + $0x152] sm:$0xff]
        %v993 = vld [vmem:[%s410 + $0x15a] sm:$0xff]
        %v994 = vld [vmem:[%s410 + $0x16a] sm:$0xff]
        %v995 = vld [vmem:[%s410 + $0x172] sm:$0xff]
        %v997 = vlaneseq
        %v998 = vshrl.u32 %v997, 7
        %v999 = vsub.s32 0, %v998
        %v1000 = vrot.slane %v963, %v999
        %v1002 = vmul.f32 %v964, %v1000
        %v1003 = vmul.f32 %v965, %v1000
        %v1004 = vmul.f32 %v966, %v1000
        %v1005 = vmul.f32 %v967, %v1000
        %v1006 = vmul.f32 %v968, %v1000
        %v1007 = vmul.f32 %v969, %v1000
        %v1008 = vmul.f32 %v970, %v1000
        %v1009 = vmul.f32 %v971, %v1000
        %v1010 = vmul.f32 %v972, %v1000
        %v1011 = vmul.f32 %v973, %v1000
        %v1012 = vmul.f32 %v974, %v1000
        %v1013 = vmul.f32 %v975, %v1000
        %v1014 = vmul.f32 %v976, %v1000
        %v1015 = vmul.f32 %v977, %v1000
        %v1016 = vmul.f32 %v978, %v1000
        %v1017 = vmul.f32 %v979, %v1000
        %v1018 = vmul.f32 %v980, %v1000
        %v1019 = vmul.f32 %v981, %v1000
        %v1020 = vmul.f32 %v982, %v1000
        %v1021 = vmul.f32 %v983, %v1000
        %v1022 = vmul.f32 %v984, %v1000
        %v1023 = vmul.f32 %v985, %v1000
        %v1024 = vmul.f32 %v986, %v1000
        %v1025 = vmul.f32 %v987, %v1000
        %v1026 = vmul.f32 %v988, %v1000
        %v1027 = vmul.f32 %v989, %v1000
        %v1028 = vmul.f32 %v990, %v1000
        %v1029 = vmul.f32 %v991, %v1000
        %v1030 = vmul.f32 %v992, %v1000
        %v1031 = vmul.f32 %v993, %v1000
        %v1032 = vmul.f32 %v994, %v1000
        %v1033 = vmul.f32 %v995, %v1000
        %v1034 = vadd.f32 %v930, %v1002
        %v1035 = vadd.f32 %v931, %v1003
        %v1036 = vadd.f32 %v932, %v1004
        %v1037 = vadd.f32 %v933, %v1005
        %v1038 = vadd.f32 %v934, %v1006
        %v1039 = vadd.f32 %v935, %v1007
        %v1040 = vadd.f32 %v936, %v1008
        %v1041 = vadd.f32 %v937, %v1009
        %v1042 = vadd.f32 %v938, %v1010
        %v1043 = vadd.f32 %v939, %v1011
        %v1044 = vadd.f32 %v940, %v1012
        %v1045 = vadd.f32 %v941, %v1013
        %v1046 = vadd.f32 %v942, %v1014
        %v1047 = vadd.f32 %v943, %v1015
        %v1048 = vadd.f32 %v944, %v1016
        %v1049 = vadd.f32 %v945, %v1017
        %v1050 = vadd.f32 %v946, %v1018
        %v1051 = vadd.f32 %v947, %v1019
        %v1052 = vadd.f32 %v948, %v1020
        %v1053 = vadd.f32 %v949, %v1021
        %v1054 = vadd.f32 %v950, %v1022
        %v1055 = vadd.f32 %v951, %v1023
        %v1056 = vadd.f32 %v952, %v1024
        %v1057 = vadd.f32 %v953, %v1025
        %v1058 = vadd.f32 %v954, %v1026
        %v1059 = vadd.f32 %v955, %v1027
        %v1060 = vadd.f32 %v956, %v1028
        %v1061 = vadd.f32 %v957, %v1029
        %v1062 = vadd.f32 %v958, %v1030
        %v1063 = vadd.f32 %v959, %v1031
        %v1064 = vadd.f32 %v960, %v1032
        %v1065 = vadd.f32 %v961, %v1033
        %s1066 = scalar_lea.vmem %s1, 6
        %v1067 = vld [vmem:[%s1066] sm:$0x1]
        %s1068 = scalar_lea.vmem [#allocation2], 48
        %v1069 = vld [vmem:[%s1068] sm:$0xff]
        %v1070 = vld [vmem:[%s1068 + $0x8] sm:$0xff]
        %v1071 = vld [vmem:[%s1068 + $0x18] sm:$0xff]
        %v1072 = vld [vmem:[%s1068 + $0x20] sm:$0xff]
        %v1073 = vld [vmem:[%s1068 + $0x30] sm:$0xff]
        %v1074 = vld [vmem:[%s1068 + $0x38] sm:$0xff]
        %v1075 = vld [vmem:[%s1068 + $0x48] sm:$0xff]
        %v1076 = vld [vmem:[%s1068 + $0x50] sm:$0xff]
        %v1077 = vld [vmem:[%s1068 + $0x60] sm:$0xff]
        %v1078 = vld [vmem:[%s1068 + $0x68] sm:$0xff]
        %v1079 = vld [vmem:[%s1068 + $0x78] sm:$0xff]
        %v1080 = vld [vmem:[%s1068 + $0x80] sm:$0xff]
        %v1081 = vld [vmem:[%s1068 + $0x90] sm:$0xff]
        %v1082 = vld [vmem:[%s1068 + $0x98] sm:$0xff]
        %v1083 = vld [vmem:[%s1068 + $0xa8] sm:$0xff]
        %v1084 = vld [vmem:[%s1068 + $0xb0] sm:$0xff]
        %v1085 = vld [vmem:[%s1068 + $0xc0] sm:$0xff]
        %v1086 = vld [vmem:[%s1068 + $0xc8] sm:$0xff]
        %v1087 = vld [vmem:[%s1068 + $0xd8] sm:$0xff]
        %v1088 = vld [vmem:[%s1068 + $0xe0] sm:$0xff]
        %v1089 = vld [vmem:[%s1068 + $0xf0] sm:$0xff]
        %v1090 = vld [vmem:[%s1068 + $0xf8] sm:$0xff]
        %v1091 = vld [vmem:[%s1068 + $0x108] sm:$0xff]
        %v1092 = vld [vmem:[%s1068 + $0x110] sm:$0xff]
        %v1093 = vld [vmem:[%s1068 + $0x120] sm:$0xff]
        %v1094 = vld [vmem:[%s1068 + $0x128] sm:$0xff]
        %v1095 = vld [vmem:[%s1068 + $0x138] sm:$0xff]
        %v1096 = vld [vmem:[%s1068 + $0x140] sm:$0xff]
        %v1097 = vld [vmem:[%s1068 + $0x150] sm:$0xff]
        %v1098 = vld [vmem:[%s1068 + $0x158] sm:$0xff]
        %v1099 = vld [vmem:[%s1068 + $0x168] sm:$0xff]
        %v1100 = vld [vmem:[%s1068 + $0x170] sm:$0xff]
        %v1102 = vlaneseq
        %v1103 = vshrl.u32 %v1102, 7
        %v1104 = vsub.s32 0, %v1103
        %v1105 = vrot.slane %v1067, %v1104
        %v1107 = vmul.f32 %v1069, %v1105
        %v1108 = vmul.f32 %v1070, %v1105
        %v1109 = vmul.f32 %v1071, %v1105
        %v1110 = vmul.f32 %v1072, %v1105
        %v1111 = vmul.f32 %v1073, %v1105
        %v1112 = vmul.f32 %v1074, %v1105
        %v1113 = vmul.f32 %v1075, %v1105
        %v1114 = vmul.f32 %v1076, %v1105
        %v1115 = vmul.f32 %v1077, %v1105
        %v1116 = vmul.f32 %v1078, %v1105
        %v1117 = vmul.f32 %v1079, %v1105
        %v1118 = vmul.f32 %v1080, %v1105
        %v1119 = vmul.f32 %v1081, %v1105
        %v1120 = vmul.f32 %v1082, %v1105
        %v1121 = vmul.f32 %v1083, %v1105
        %v1122 = vmul.f32 %v1084, %v1105
        %v1123 = vmul.f32 %v1085, %v1105
        %v1124 = vmul.f32 %v1086, %v1105
        %v1125 = vmul.f32 %v1087, %v1105
        %v1126 = vmul.f32 %v1088, %v1105
        %v1127 = vmul.f32 %v1089, %v1105
        %v1128 = vmul.f32 %v1090, %v1105
        %v1129 = vmul.f32 %v1091, %v1105
        %v1130 = vmul.f32 %v1092, %v1105
        %v1131 = vmul.f32 %v1093, %v1105
        %v1132 = vmul.f32 %v1094, %v1105
        %v1133 = vmul.f32 %v1095, %v1105
        %v1134 = vmul.f32 %v1096, %v1105
        %v1135 = vmul.f32 %v1097, %v1105
        %v1136 = vmul.f32 %v1098, %v1105
        %v1137 = vmul.f32 %v1099, %v1105
        %v1138 = vmul.f32 %v1100, %v1105
        %v1139 = vadd.f32 %v1034, %v1107
        %v1140 = vadd.f32 %v1035, %v1108
        %v1141 = vadd.f32 %v1036, %v1109
        %v1142 = vadd.f32 %v1037, %v1110
        %v1143 = vadd.f32 %v1038, %v1111
        %v1144 = vadd.f32 %v1039, %v1112
        %v1145 = vadd.f32 %v1040, %v1113
        %v1146 = vadd.f32 %v1041, %v1114
        %v1147 = vadd.f32 %v1042, %v1115
        %v1148 = vadd.f32 %v1043, %v1116
        %v1149 = vadd.f32 %v1044, %v1117
        %v1150 = vadd.f32 %v1045, %v1118
        %v1151 = vadd.f32 %v1046, %v1119
        %v1152 = vadd.f32 %v1047, %v1120
        %v1153 = vadd.f32 %v1048, %v1121
        %v1154 = vadd.f32 %v1049, %v1122
        %v1155 = vadd.f32 %v1050, %v1123
        %v1156 = vadd.f32 %v1051, %v1124
        %v1157 = vadd.f32 %v1052, %v1125
        %v1158 = vadd.f32 %v1053, %v1126
        %v1159 = vadd.f32 %v1054, %v1127
        %v1160 = vadd.f32 %v1055, %v1128
        %v1161 = vadd.f32 %v1056, %v1129
        %v1162 = vadd.f32 %v1057, %v1130
        %v1163 = vadd.f32 %v1058, %v1131
        %v1164 = vadd.f32 %v1059, %v1132
        %v1165 = vadd.f32 %v1060, %v1133
        %v1166 = vadd.f32 %v1061, %v1134
        %v1167 = vadd.f32 %v1062, %v1135
        %v1168 = vadd.f32 %v1063, %v1136
        %v1169 = vadd.f32 %v1064, %v1137
        %v1170 = vadd.f32 %v1065, %v1138
        %s1171 = scalar_lea.vmem %s1, 7
        %v1172 = vld [vmem:[%s1171] sm:$0x1]
        %v1173 = vld [vmem:[%s1068 + $0x1] sm:$0xff]
        %v1174 = vld [vmem:[%s1068 + $0x9] sm:$0xff]
        %v1175 = vld [vmem:[%s1068 + $0x19] sm:$0xff]
        %v1176 = vld [vmem:[%s1068 + $0x21] sm:$0xff]
        %v1177 = vld [vmem:[%s1068 + $0x31] sm:$0xff]
        %v1178 = vld [vmem:[%s1068 + $0x39] sm:$0xff]
        %v1179 = vld [vmem:[%s1068 + $0x49] sm:$0xff]
        %v1180 = vld [vmem:[%s1068 + $0x51] sm:$0xff]
        %v1181 = vld [vmem:[%s1068 + $0x61] sm:$0xff]
        %v1182 = vld [vmem:[%s1068 + $0x69] sm:$0xff]
        %v1183 = vld [vmem:[%s1068 + $0x79] sm:$0xff]
        %v1184 = vld [vmem:[%s1068 + $0x81] sm:$0xff]
        %v1185 = vld [vmem:[%s1068 + $0x91] sm:$0xff]
        %v1186 = vld [vmem:[%s1068 + $0x99] sm:$0xff]
        %v1187 = vld [vmem:[%s1068 + $0xa9] sm:$0xff]
        %v1188 = vld [vmem:[%s1068 + $0xb1] sm:$0xff]
        %v1189 = vld [vmem:[%s1068 + $0xc1] sm:$0xff]
        %v1190 = vld [vmem:[%s1068 + $0xc9] sm:$0xff]
        %v1191 = vld [vmem:[%s1068 + $0xd9] sm:$0xff]
        %v1192 = vld [vmem:[%s1068 + $0xe1] sm:$0xff]
        %v1193 = vld [vmem:[%s1068 + $0xf1] sm:$0xff]
        %v1194 = vld [vmem:[%s1068 + $0xf9] sm:$0xff]
        %v1195 = vld [vmem:[%s1068 + $0x109] sm:$0xff]
        %v1196 = vld [vmem:[%s1068 + $0x111] sm:$0xff]
        %v1197 = vld [vmem:[%s1068 + $0x121] sm:$0xff]
        %v1198 = vld [vmem:[%s1068 + $0x129] sm:$0xff]
        %v1199 = vld [vmem:[%s1068 + $0x139] sm:$0xff]
        %v1200 = vld [vmem:[%s1068 + $0x141] sm:$0xff]
        %v1201 = vld [vmem:[%s1068 + $0x151] sm:$0xff]
        %v1202 = vld [vmem:[%s1068 + $0x159] sm:$0xff]
        %v1203 = vld [vmem:[%s1068 + $0x169] sm:$0xff]
        %v1204 = vld [vmem:[%s1068 + $0x171] sm:$0xff]
        %v1206 = vlaneseq
        %v1207 = vshrl.u32 %v1206, 7
        %v1208 = vsub.s32 0, %v1207
        %v1209 = vrot.slane %v1172, %v1208
        %v1211 = vmul.f32 %v1173, %v1209
        %v1212 = vmul.f32 %v1174, %v1209
        %v1213 = vmul.f32 %v1175, %v1209
        %v1214 = vmul.f32 %v1176, %v1209
        %v1215 = vmul.f32 %v1177, %v1209
        %v1216 = vmul.f32 %v1178, %v1209
        %v1217 = vmul.f32 %v1179, %v1209
        %v1218 = vmul.f32 %v1180, %v1209
        %v1219 = vmul.f32 %v1181, %v1209
        %v1220 = vmul.f32 %v1182, %v1209
        %v1221 = vmul.f32 %v1183, %v1209
        %v1222 = vmul.f32 %v1184, %v1209
        %v1223 = vmul.f32 %v1185, %v1209
        %v1224 = vmul.f32 %v1186, %v1209
        %v1225 = vmul.f32 %v1187, %v1209
        %v1226 = vmul.f32 %v1188, %v1209
        %v1227 = vmul.f32 %v1189, %v1209
        %v1228 = vmul.f32 %v1190, %v1209
        %v1229 = vmul.f32 %v1191, %v1209
        %v1230 = vmul.f32 %v1192, %v1209
        %v1231 = vmul.f32 %v1193, %v1209
        %v1232 = vmul.f32 %v1194, %v1209
        %v1233 = vmul.f32 %v1195, %v1209
        %v1234 = vmul.f32 %v1196, %v1209
        %v1235 = vmul.f32 %v1197, %v1209
        %v1236 = vmul.f32 %v1198, %v1209
        %v1237 = vmul.f32 %v1199, %v1209
        %v1238 = vmul.f32 %v1200, %v1209
        %v1239 = vmul.f32 %v1201, %v1209
        %v1240 = vmul.f32 %v1202, %v1209
        %v1241 = vmul.f32 %v1203, %v1209
        %v1242 = vmul.f32 %v1204, %v1209
        %v1243 = vadd.f32 %v1139, %v1211
        %v1244 = vadd.f32 %v1140, %v1212
        %v1245 = vadd.f32 %v1141, %v1213
        %v1246 = vadd.f32 %v1142, %v1214
        %v1247 = vadd.f32 %v1143, %v1215
        %v1248 = vadd.f32 %v1144, %v1216
        %v1249 = vadd.f32 %v1145, %v1217
        %v1250 = vadd.f32 %v1146, %v1218
        %v1251 = vadd.f32 %v1147, %v1219
        %v1252 = vadd.f32 %v1148, %v1220
        %v1253 = vadd.f32 %v1149, %v1221
        %v1254 = vadd.f32 %v1150, %v1222
        %v1255 = vadd.f32 %v1151, %v1223
        %v1256 = vadd.f32 %v1152, %v1224
        %v1257 = vadd.f32 %v1153, %v1225
        %v1258 = vadd.f32 %v1154, %v1226
        %v1259 = vadd.f32 %v1155, %v1227
        %v1260 = vadd.f32 %v1156, %v1228
        %v1261 = vadd.f32 %v1157, %v1229
        %v1262 = vadd.f32 %v1158, %v1230
        %v1263 = vadd.f32 %v1159, %v1231
        %v1264 = vadd.f32 %v1160, %v1232
        %v1265 = vadd.f32 %v1161, %v1233
        %v1266 = vadd.f32 %v1162, %v1234
        %v1267 = vadd.f32 %v1163, %v1235
        %v1268 = vadd.f32 %v1164, %v1236
        %v1269 = vadd.f32 %v1165, %v1237
        %v1270 = vadd.f32 %v1166, %v1238
        %v1271 = vadd.f32 %v1167, %v1239
        %v1272 = vadd.f32 %v1168, %v1240
        %v1273 = vadd.f32 %v1169, %v1241
        %v1274 = vadd.f32 %v1170, %v1242
        %s1275 = scalar_lea.vmem %s1, 8
        %v1276 = vld [vmem:[%s1275] sm:$0x1]
        %v1277 = vld [vmem:[%s1068 + $0x2] sm:$0xff]
        %v1278 = vld [vmem:[%s1068 + $0xa] sm:$0xff]
        %v1279 = vld [vmem:[%s1068 + $0x1a] sm:$0xff]
        %v1280 = vld [vmem:[%s1068 + $0x22] sm:$0xff]
        %v1281 = vld [vmem:[%s1068 + $0x32] sm:$0xff]
        %v1282 = vld [vmem:[%s1068 + $0x3a] sm:$0xff]
        %v1283 = vld [vmem:[%s1068 + $0x4a] sm:$0xff]
        %v1284 = vld [vmem:[%s1068 + $0x52] sm:$0xff]
        %v1285 = vld [vmem:[%s1068 + $0x62] sm:$0xff]
        %v1286 = vld [vmem:[%s1068 + $0x6a] sm:$0xff]
        %v1287 = vld [vmem:[%s1068 + $0x7a] sm:$0xff]
        %v1288 = vld [vmem:[%s1068 + $0x82] sm:$0xff]
        %v1289 = vld [vmem:[%s1068 + $0x92] sm:$0xff]
        %v1290 = vld [vmem:[%s1068 + $0x9a] sm:$0xff]
        %v1291 = vld [vmem:[%s1068 + $0xaa] sm:$0xff]
        %v1292 = vld [vmem:[%s1068 + $0xb2] sm:$0xff]
        %v1293 = vld [vmem:[%s1068 + $0xc2] sm:$0xff]
        %v1294 = vld [vmem:[%s1068 + $0xca] sm:$0xff]
        %v1295 = vld [vmem:[%s1068 + $0xda] sm:$0xff]
        %v1296 = vld [vmem:[%s1068 + $0xe2] sm:$0xff]
        %v1297 = vld [vmem:[%s1068 + $0xf2] sm:$0xff]
        %v1298 = vld [vmem:[%s1068 + $0xfa] sm:$0xff]
        %v1299 = vld [vmem:[%s1068 + $0x10a] sm:$0xff]
        %v1300 = vld [vmem:[%s1068 + $0x112] sm:$0xff]
        %v1301 = vld [vmem:[%s1068 + $0x122] sm:$0xff]
        %v1302 = vld [vmem:[%s1068 + $0x12a] sm:$0xff]
        %v1303 = vld [vmem:[%s1068 + $0x13a] sm:$0xff]
        %v1304 = vld [vmem:[%s1068 + $0x142] sm:$0xff]
        %v1305 = vld [vmem:[%s1068 + $0x152] sm:$0xff]
        %v1306 = vld [vmem:[%s1068 + $0x15a] sm:$0xff]
        %v1307 = vld [vmem:[%s1068 + $0x16a] sm:$0xff]
        %v1308 = vld [vmem:[%s1068 + $0x172] sm:$0xff]
        %v1310 = vlaneseq
        %v1311 = vshrl.u32 %v1310, 7
        %v1312 = vsub.s32 0, %v1311
        %v1313 = vrot.slane %v1276, %v1312
        %v1315 = vmul.f32 %v1277, %v1313
        %v1316 = vmul.f32 %v1278, %v1313
        %v1317 = vmul.f32 %v1279, %v1313
        %v1318 = vmul.f32 %v1280, %v1313
        %v1319 = vmul.f32 %v1281, %v1313
        %v1320 = vmul.f32 %v1282, %v1313
        %v1321 = vmul.f32 %v1283, %v1313
        %v1322 = vmul.f32 %v1284, %v1313
        %v1323 = vmul.f32 %v1285, %v1313
        %v1324 = vmul.f32 %v1286, %v1313
        %v1325 = vmul.f32 %v1287, %v1313
        %v1326 = vmul.f32 %v1288, %v1313
        %v1327 = vmul.f32 %v1289, %v1313
        %v1328 = vmul.f32 %v1290, %v1313
        %v1329 = vmul.f32 %v1291, %v1313
        %v1330 = vmul.f32 %v1292, %v1313
        %v1331 = vmul.f32 %v1293, %v1313
        %v1332 = vmul.f32 %v1294, %v1313
        %v1333 = vmul.f32 %v1295, %v1313
        %v1334 = vmul.f32 %v1296, %v1313
        %v1335 = vmul.f32 %v1297, %v1313
        %v1336 = vmul.f32 %v1298, %v1313
        %v1337 = vmul.f32 %v1299, %v1313
        %v1338 = vmul.f32 %v1300, %v1313
        %v1339 = vmul.f32 %v1301, %v1313
        %v1340 = vmul.f32 %v1302, %v1313
        %v1341 = vmul.f32 %v1303, %v1313
        %v1342 = vmul.f32 %v1304, %v1313
        %v1343 = vmul.f32 %v1305, %v1313
        %v1344 = vmul.f32 %v1306, %v1313
        %v1345 = vmul.f32 %v1307, %v1313
        %v1346 = vmul.f32 %v1308, %v1313
        %v1347 = vadd.f32 %v1243, %v1315
        %v1348 = vadd.f32 %v1244, %v1316
        %v1349 = vadd.f32 %v1245, %v1317
        %v1350 = vadd.f32 %v1246, %v1318
        %v1351 = vadd.f32 %v1247, %v1319
        %v1352 = vadd.f32 %v1248, %v1320
        %v1353 = vadd.f32 %v1249, %v1321
        %v1354 = vadd.f32 %v1250, %v1322
        %v1355 = vadd.f32 %v1251, %v1323
        %v1356 = vadd.f32 %v1252, %v1324
        %v1357 = vadd.f32 %v1253, %v1325
        %v1358 = vadd.f32 %v1254, %v1326
        %v1359 = vadd.f32 %v1255, %v1327
        %v1360 = vadd.f32 %v1256, %v1328
        %v1361 = vadd.f32 %v1257, %v1329
        %v1362 = vadd.f32 %v1258, %v1330
        %v1363 = vadd.f32 %v1259, %v1331
        %v1364 = vadd.f32 %v1260, %v1332
        %v1365 = vadd.f32 %v1261, %v1333
        %v1366 = vadd.f32 %v1262, %v1334
        %v1367 = vadd.f32 %v1263, %v1335
        %v1368 = vadd.f32 %v1264, %v1336
        %v1369 = vadd.f32 %v1265, %v1337
        %v1370 = vadd.f32 %v1266, %v1338
        %v1371 = vadd.f32 %v1267, %v1339
        %v1372 = vadd.f32 %v1268, %v1340
        %v1373 = vadd.f32 %v1269, %v1341
        %v1374 = vadd.f32 %v1270, %v1342
        %v1375 = vadd.f32 %v1271, %v1343
        %v1376 = vadd.f32 %v1272, %v1344
        %v1377 = vadd.f32 %v1273, %v1345
        %v1378 = vadd.f32 %v1274, %v1346
        %v1379 = vld [vmem:[%s2] sm:$0xf]
        %v1380 = vld [vmem:[%s3] sm:$0x1]
        %v1382 = vlaneseq
        %v1383 = vshrl.u32 %v1382, 7
        %v1384 = vsub.s32 0, %v1383
        %v1385 = vrot.slane %v1380, %v1384
        %v1388 = vsel %vm364, %v1347, 0
        %v1391 = vsel %vm364, %v1348, 0
        %v1394 = vsel %vm364, %v1349, 0
        %v1397 = vsel %vm364, %v1350, 0
        %v1400 = vsel %vm364, %v1351, 0
        %v1403 = vsel %vm364, %v1352, 0
        %v1406 = vsel %vm364, %v1353, 0
        %v1409 = vsel %vm364, %v1354, 0
        %v1412 = vsel %vm364, %v1355, 0
        %v1415 = vsel %vm364, %v1356, 0
        %v1418 = vsel %vm364, %v1357, 0
        %v1421 = vsel %vm364, %v1358, 0
        %v1424 = vsel %vm364, %v1359, 0
        %v1427 = vsel %vm364, %v1360, 0
        %v1430 = vsel %vm364, %v1361, 0
        %v1433 = vsel %vm364, %v1362, 0
        %v1436 = vsel %vm364, %v1363, 0
        %v1439 = vsel %vm364, %v1364, 0
        %v1442 = vsel %vm364, %v1365, 0
        %v1445 = vsel %vm364, %v1366, 0
        %v1448 = vsel %vm364, %v1367, 0
        %v1451 = vsel %vm364, %v1368, 0
        %v1454 = vsel %vm364, %v1369, 0
        %v1457 = vsel %vm364, %v1370, 0
        %v1460 = vsel %vm364, %v1371, 0
        %v1463 = vsel %vm364, %v1372, 0
        %v1466 = vsel %vm364, %v1373, 0
        %v1469 = vsel %vm364, %v1374, 0
        %v1472 = vsel %vm364, %v1375, 0
        %v1475 = vsel %vm364, %v1376, 0
        %v1478 = vsel %vm364, %v1377, 0
        %v1481 = vsel %vm364, %v1378, 0
        %vm1483 = vcmask 1043456
        %v1485 = vsel %vm1483, %v1379, 0
        %1487 = vmatprep.subr.mxu0 0.0
        %1488 = vmatpush1.msra.mxu0 %v1485
        %1489 = vmatprep.subr.mxu0 0.0
        %1490 = vmatpush1.msra.mxu0 0.0
        %1491 = vmatprep.subr.mxu0 0.0
        %1492 = vmatpush1.msra.mxu0 0.0
        %1493 = vmatprep.subr.mxu0 0.0
        %1494 = vmatpush1.msra.mxu0 0.0
        %1495 = vmatprep.subr.mxu0 0.0
        %1496 = vmatpush1.msra.mxu0 0.0
        %1497 = vmatprep.subr.mxu0 0.0
        %1498 = vmatpush1.msra.mxu0 0.0
        %1499 = vmatprep.subr.mxu0 0.0
        %1500 = vmatpush1.msra.mxu0 0.0
        %1501 = vmatprep.subr.mxu0 0.0
        %1502 = vmatpush1.msra.mxu0 0.0
        %1503 = vmatprep.subr.mxu0 0.0
        %1504 = vmatpush1.msra.mxu0 0.0
        %1505 = vmatprep.subr.mxu0 0.0
        %1506 = vmatpush1.msra.mxu0 0.0
        %1507 = vmatprep.subr.mxu0 0.0
        %1508 = vmatpush1.msra.mxu0 0.0
        %1509 = vmatprep.subr.mxu0 0.0
        %1510 = vmatpush1.msra.mxu0 0.0
        %1511 = vmatprep.subr.mxu0 0.0
        %1512 = vmatpush1.msra.mxu0 0.0
        %1513 = vmatprep.subr.mxu0 0.0
        %1514 = vmatpush1.msra.mxu0 0.0
        %1515 = vmatprep.subr.mxu0 0.0
        %1516 = vmatpush1.msra.mxu0 0.0
        %1517 = vmatprep.subr.mxu0 0.0
        %1518 = vmatpush1.msra.mxu0 0.0
        %1519 = vmatprep.subr.mxu0 0.0
        %1520 = vmatpush1.msra.mxu0 0.0
        %1521 = vmatprep.subr.mxu0 0.0
        %1522 = vmatpush1.msra.mxu0 0.0
        %1523 = vmatprep.subr.mxu0 0.0
        %1524 = vmatpush1.msra.mxu0 0.0
        %1525 = vmatprep.subr.mxu0 0.0
        %1526 = vmatpush1.msra.mxu0 0.0
        %1527 = vmatprep.subr.mxu0 0.0
        %1528 = vmatpush1.msra.mxu0 0.0
        %1529 = vmatprep.subr.mxu0 0.0
        %1530 = vmatpush1.msra.mxu0 0.0
        %1531 = vmatprep.subr.mxu0 0.0
        %1532 = vmatpush1.msra.mxu0 0.0
        %1533 = vmatprep.subr.mxu0 0.0
        %1534 = vmatpush1.msra.mxu0 0.0
        %1535 = vmatprep.subr.mxu0 0.0
        %1536 = vmatpush1.msra.mxu0 0.0
        %1537 = vmatprep.subr.mxu0 0.0
        %1538 = vmatpush1.msra.mxu0 0.0
        %1539 = vmatprep.subr.mxu0 0.0
        %1540 = vmatpush1.msra.mxu0 0.0
        %1541 = vmatprep.subr.mxu0 0.0
        %1542 = vmatpush1.msra.mxu0 0.0
        %1543 = vmatprep.subr.mxu0 0.0
        %1544 = vmatpush1.msra.mxu0 0.0
        %1545 = vmatprep.subr.mxu0 0.0
        %1546 = vmatpush1.msra.mxu0 0.0
        %1547 = vmatprep.subr.mxu0 0.0
        %1548 = vmatpush1.msra.mxu0 0.0
        %1549 = vmatprep.subr.mxu0 0.0
        %1550 = vmatpush1.msra.mxu0 0.0
        %1551 = vmatprep.mubr.f32.mxu0 0.0
        %1552 = vmatmul.mubr.f32.gmra.mrb[0].mxu0 %v1388
        %v1553 = vpop.f32.mrb[0].mxu0
        %v1554 = vadd.f32 %v1385, %v1553
        %v1555 = vpop.f32.mrb[0].mxu0
        %1556 = vmatprep.mubr.f32.mxu0 0.0
        %1557 = vmatmul.mubr.f32.gmra.mrb[0].mxu0 %v1391
        %v1558 = vpop.f32.mrb[0].mxu0
        %v1559 = vadd.f32 %v1385, %v1558
        %v1560 = vpop.f32.mrb[0].mxu0
        %1561 = vmatprep.mubr.f32.mxu0 0.0
        %1562 = vmatmul.mubr.f32.gmra.mrb[0].mxu0 %v1394
        %v1563 = vpop.f32.mrb[0].mxu0
        %v1564 = vadd.f32 %v1385, %v1563
        %v1565 = vpop.f32.mrb[0].mxu0
        %1566 = vmatprep.mubr.f32.mxu0 0.0
        %1567 = vmatmul.mubr.f32.gmra.mrb[0].mxu0 %v1397
        %v1568 = vpop.f32.mrb[0].mxu0
        %v1569 = vadd.f32 %v1385, %v1568
        %v1570 = vpop.f32.mrb[0].mxu0
        %1571 = vmatprep.mubr.f32.mxu0 0.0
        %1572 = vmatmul.mubr.f32.gmra.mrb[0].mxu0 %v1400
        %v1573 = vpop.f32.mrb[0].mxu0
        %v1574 = vadd.f32 %v1385, %v1573
        %v1575 = vpop.f32.mrb[0].mxu0
        %1576 = vmatprep.mubr.f32.mxu0 0.0
        %1577 = vmatmul.mubr.f32.gmra.mrb[0].mxu0 %v1403
        %v1578 = vpop.f32.mrb[0].mxu0
        %v1579 = vadd.f32 %v1385, %v1578
        %v1580 = vpop.f32.mrb[0].mxu0
        %1581 = vmatprep.mubr.f32.mxu0 0.0
        %1582 = vmatmul.mubr.f32.gmra.mrb[0].mxu0 %v1406
        %v1583 = vpop.f32.mrb[0].mxu0
        %v1584 = vadd.f32 %v1385, %v1583
        %v1585 = vpop.f32.mrb[0].mxu0
        %1586 = vmatprep.mubr.f32.mxu0 0.0
        %1587 = vmatmul.mubr.f32.gmra.mrb[0].mxu0 %v1409
        %v1588 = vpop.f32.mrb[0].mxu0
        %v1589 = vadd.f32 %v1385, %v1588
        %v1590 = vpop.f32.mrb[0].mxu0
        %1591 = vmatprep.mubr.f32.mxu0 0.0
        %1592 = vmatmul.mubr.f32.gmra.mrb[0].mxu0 %v1412
        %v1593 = vpop.f32.mrb[0].mxu0
        %v1594 = vadd.f32 %v1385, %v1593
        %v1595 = vpop.f32.mrb[0].mxu0
        %1596 = vmatprep.mubr.f32.mxu0 0.0
        %1597 = vmatmul.mubr.f32.gmra.mrb[0].mxu0 %v1415
        %v1598 = vpop.f32.mrb[0].mxu0
        %v1599 = vadd.f32 %v1385, %v1598
        %v1600 = vpop.f32.mrb[0].mxu0
        %1601 = vmatprep.mubr.f32.mxu0 0.0
        %1602 = vmatmul.mubr.f32.gmra.mrb[0].mxu0 %v1418
        %v1603 = vpop.f32.mrb[0].mxu0
        %v1604 = vadd.f32 %v1385, %v1603
        %v1605 = vpop.f32.mrb[0].mxu0
        %1606 = vmatprep.mubr.f32.mxu0 0.0
        %1607 = vmatmul.mubr.f32.gmra.mrb[0].mxu0 %v1421
        %v1608 = vpop.f32.mrb[0].mxu0
        %v1609 = vadd.f32 %v1385, %v1608
        %v1610 = vpop.f32.mrb[0].mxu0
        %1611 = vmatprep.mubr.f32.mxu0 0.0
        %1612 = vmatmul.mubr.f32.gmra.mrb[0].mxu0 %v1424
        %v1613 = vpop.f32.mrb[0].mxu0
        %v1614 = vadd.f32 %v1385, %v1613
        %v1615 = vpop.f32.mrb[0].mxu0
        %1616 = vmatprep.mubr.f32.mxu0 0.0
        %1617 = vmatmul.mubr.f32.gmra.mrb[0].mxu0 %v1427
        %v1618 = vpop.f32.mrb[0].mxu0
        %v1619 = vadd.f32 %v1385, %v1618
        %v1620 = vpop.f32.mrb[0].mxu0
        %1621 = vmatprep.mubr.f32.mxu0 0.0
        %1622 = vmatmul.mubr.f32.gmra.mrb[0].mxu0 %v1430
        %v1623 = vpop.f32.mrb[0].mxu0
        %v1624 = vadd.f32 %v1385, %v1623
        %v1625 = vpop.f32.mrb[0].mxu0
        %1626 = vmatprep.mubr.f32.mxu0 0.0
        %1627 = vmatmul.mubr.f32.gmra.mrb[0].mxu0 %v1433
        %v1628 = vpop.f32.mrb[0].mxu0
        %v1629 = vadd.f32 %v1385, %v1628
        %v1630 = vpop.f32.mrb[0].mxu0
        %1631 = vmatprep.mubr.f32.mxu0 0.0
        %1632 = vmatmul.mubr.f32.gmra.mrb[0].mxu0 %v1436
        %v1633 = vpop.f32.mrb[0].mxu0
        %v1634 = vadd.f32 %v1385, %v1633
        %v1635 = vpop.f32.mrb[0].mxu0
        %1636 = vmatprep.mubr.f32.mxu0 0.0
        %1637 = vmatmul.mubr.f32.gmra.mrb[0].mxu0 %v1439
        %v1638 = vpop.f32.mrb[0].mxu0
        %v1639 = vadd.f32 %v1385, %v1638
        %v1640 = vpop.f32.mrb[0].mxu0
        %1641 = vmatprep.mubr.f32.mxu0 0.0
        %1642 = vmatmul.mubr.f32.gmra.mrb[0].mxu0 %v1442
        %v1643 = vpop.f32.mrb[0].mxu0
        %v1644 = vadd.f32 %v1385, %v1643
        %v1645 = vpop.f32.mrb[0].mxu0
        %1646 = vmatprep.mubr.f32.mxu0 0.0
        %1647 = vmatmul.mubr.f32.gmra.mrb[0].mxu0 %v1445
        %v1648 = vpop.f32.mrb[0].mxu0
        %v1649 = vadd.f32 %v1385, %v1648
        %v1650 = vpop.f32.mrb[0].mxu0
        %1651 = vmatprep.mubr.f32.mxu0 0.0
        %1652 = vmatmul.mubr.f32.gmra.mrb[0].mxu0 %v1448
        %v1653 = vpop.f32.mrb[0].mxu0
        %v1654 = vadd.f32 %v1385, %v1653
        %v1655 = vpop.f32.mrb[0].mxu0
        %1656 = vmatprep.mubr.f32.mxu0 0.0
        %1657 = vmatmul.mubr.f32.gmra.mrb[0].mxu0 %v1451
        %v1658 = vpop.f32.mrb[0].mxu0
        %v1659 = vadd.f32 %v1385, %v1658
        %v1660 = vpop.f32.mrb[0].mxu0
        %1661 = vmatprep.mubr.f32.mxu0 0.0
        %1662 = vmatmul.mubr.f32.gmra.mrb[0].mxu0 %v1454
        %v1663 = vpop.f32.mrb[0].mxu0
        %v1664 = vadd.f32 %v1385, %v1663
        %v1665 = vpop.f32.mrb[0].mxu0
        %1666 = vmatprep.mubr.f32.mxu0 0.0
        %1667 = vmatmul.mubr.f32.gmra.mrb[0].mxu0 %v1457
        %v1668 = vpop.f32.mrb[0].mxu0
        %v1669 = vadd.f32 %v1385, %v1668
        %v1670 = vpop.f32.mrb[0].mxu0
        %1671 = vmatprep.mubr.f32.mxu0 0.0
        %1672 = vmatmul.mubr.f32.gmra.mrb[0].mxu0 %v1460
        %v1673 = vpop.f32.mrb[0].mxu0
        %v1674 = vadd.f32 %v1385, %v1673
        %v1675 = vpop.f32.mrb[0].mxu0
        %1676 = vmatprep.mubr.f32.mxu0 0.0
        %1677 = vmatmul.mubr.f32.gmra.mrb[0].mxu0 %v1463
        %v1678 = vpop.f32.mrb[0].mxu0
        %v1679 = vadd.f32 %v1385, %v1678
        %v1680 = vpop.f32.mrb[0].mxu0
        %1681 = vmatprep.mubr.f32.mxu0 0.0
        %1682 = vmatmul.mubr.f32.gmra.mrb[0].mxu0 %v1466
        %v1683 = vpop.f32.mrb[0].mxu0
        %v1684 = vadd.f32 %v1385, %v1683
        %v1685 = vpop.f32.mrb[0].mxu0
        %1686 = vmatprep.mubr.f32.mxu0 0.0
        %1687 = vmatmul.mubr.f32.gmra.mrb[0].mxu0 %v1469
        %v1688 = vpop.f32.mrb[0].mxu0
        %v1689 = vadd.f32 %v1385, %v1688
        %v1690 = vpop.f32.mrb[0].mxu0
        %1691 = vmatprep.mubr.f32.mxu0 0.0
        %1692 = vmatmul.mubr.f32.gmra.mrb[0].mxu0 %v1472
        %v1693 = vpop.f32.mrb[0].mxu0
        %v1694 = vadd.f32 %v1385, %v1693
        %v1695 = vpop.f32.mrb[0].mxu0
        %1696 = vmatprep.mubr.f32.mxu0 0.0
        %1697 = vmatmul.mubr.f32.gmra.mrb[0].mxu0 %v1475
        %v1698 = vpop.f32.mrb[0].mxu0
        %v1699 = vadd.f32 %v1385, %v1698
        %v1700 = vpop.f32.mrb[0].mxu0
        %1701 = vmatprep.mubr.f32.mxu0 0.0
        %1702 = vmatmul.mubr.f32.gmra.mrb[0].mxu0 %v1478
        %v1703 = vpop.f32.mrb[0].mxu0
        %v1704 = vadd.f32 %v1385, %v1703
        %v1705 = vpop.f32.mrb[0].mxu0
        %1706 = vmatprep.mubr.f32.mxu0 0.0
        %1707 = vmatmul.mubr.f32.gmra.mrb[0].mxu0 %v1481
        %v1708 = vpop.f32.mrb[0].mxu0
        %v1709 = vadd.f32 %v1385, %v1708
        %v1710 = vpop.f32.mrb[0].mxu0
        %1711 = vdwg.mxu0
        %v1712 = vmax.f32 %v1554, 0.0
        %v1713 = vmax.f32 %v1559, 0.0
        %v1714 = vmax.f32 %v1564, 0.0
        %v1715 = vmax.f32 %v1569, 0.0
        %v1716 = vmax.f32 %v1574, 0.0
        %v1717 = vmax.f32 %v1579, 0.0
        %v1718 = vmax.f32 %v1584, 0.0
        %v1719 = vmax.f32 %v1589, 0.0
        %v1720 = vmax.f32 %v1594, 0.0
        %v1721 = vmax.f32 %v1599, 0.0
        %v1722 = vmax.f32 %v1604, 0.0
        %v1723 = vmax.f32 %v1609, 0.0
        %v1724 = vmax.f32 %v1614, 0.0
        %v1725 = vmax.f32 %v1619, 0.0
        %v1726 = vmax.f32 %v1624, 0.0
        %v1727 = vmax.f32 %v1629, 0.0
        %v1728 = vmax.f32 %v1634, 0.0
        %v1729 = vmax.f32 %v1639, 0.0
        %v1730 = vmax.f32 %v1644, 0.0
        %v1731 = vmax.f32 %v1649, 0.0
        %v1732 = vmax.f32 %v1654, 0.0
        %v1733 = vmax.f32 %v1659, 0.0
        %v1734 = vmax.f32 %v1664, 0.0
        %v1735 = vmax.f32 %v1669, 0.0
        %v1736 = vmax.f32 %v1674, 0.0
        %v1737 = vmax.f32 %v1679, 0.0
        %v1738 = vmax.f32 %v1684, 0.0
        %v1739 = vmax.f32 %v1689, 0.0
        %v1740 = vmax.f32 %v1694, 0.0
        %v1741 = vmax.f32 %v1699, 0.0
        %v1742 = vmax.f32 %v1704, 0.0
        %v1743 = vmax.f32 %v1709, 0.0
        %vm1744 = vcmask 64512
        %1745 = vst.msk [vmem:[#allocation3] sm:$0xff] %vm1744, 0.0
        %1746 = vst.msk [vmem:[#allocation3 + $0x8] sm:$0xff] %vm1744, 0.0
        %vm1747 = vcmask 58368
        %1748 = vst.msk [vmem:[#allocation3 + $0x10] sm:$0x3] %vm1747, 0.0
        %s1749 = scalar_lea.vmem [#allocation3], 408
        %1750 = vst.msk [vmem:[%s1749] sm:$0xff] %vm1744, 0.0
        %1751 = vst.msk [vmem:[%s1749 + $0x8] sm:$0xff] %vm1744, 0.0
        %1752 = vst.msk [vmem:[%s1749 + $0x10] sm:$0x3] %vm1747, 0.0
        %vm1753 = vcmask 57344
        %1754 = vst.msk [vmem:[#allocation3] sm:$0x1] %vm1753, 0.0
        %1755 = vst.msk [vmem:[#allocation3 + $0x18] sm:$0x1] %vm1753, 0.0
        %1756 = vst.msk [vmem:[#allocation3 + $0x30] sm:$0x1] %vm1753, 0.0
        %1757 = vst.msk [vmem:[#allocation3 + $0x48] sm:$0x1] %vm1753, 0.0
        %1758 = vst.msk [vmem:[#allocation3 + $0x60] sm:$0x1] %vm1753, 0.0
        %1759 = vst.msk [vmem:[#allocation3 + $0x78] sm:$0x1] %vm1753, 0.0
        %1760 = vst.msk [vmem:[#allocation3 + $0x90] sm:$0x1] %vm1753, 0.0
        %1761 = vst.msk [vmem:[#allocation3 + $0xa8] sm:$0x1] %vm1753, 0.0
        %1762 = vst.msk [vmem:[#allocation3 + $0xc0] sm:$0x1] %vm1753, 0.0
        %1763 = vst.msk [vmem:[#allocation3 + $0xd8] sm:$0x1] %vm1753, 0.0
        %1764 = vst.msk [vmem:[#allocation3 + $0xf0] sm:$0x1] %vm1753, 0.0
        %1765 = vst.msk [vmem:[#allocation3 + $0x108] sm:$0x1] %vm1753, 0.0
        %1766 = vst.msk [vmem:[#allocation3 + $0x120] sm:$0x1] %vm1753, 0.0
        %1767 = vst.msk [vmem:[#allocation3 + $0x138] sm:$0x1] %vm1753, 0.0
        %1768 = vst.msk [vmem:[#allocation3 + $0x150] sm:$0x1] %vm1753, 0.0
        %1769 = vst.msk [vmem:[#allocation3 + $0x168] sm:$0x1] %vm1753, 0.0
        %1770 = vst.msk [vmem:[#allocation3 + $0x180] sm:$0x1] %vm1753, 0.0
        %1771 = vst.msk [vmem:[#allocation3 + $0x198] sm:$0x1] %vm1753, 0.0
        %1772 = vst.msk [vmem:[#allocation3 + $0x11] sm:$0x1] %vm1753, 0.0
        %1773 = vst.msk [vmem:[#allocation3 + $0x29] sm:$0x1] %vm1753, 0.0
        %1774 = vst.msk [vmem:[#allocation3 + $0x41] sm:$0x1] %vm1753, 0.0
        %1775 = vst.msk [vmem:[#allocation3 + $0x59] sm:$0x1] %vm1753, 0.0
        %1776 = vst.msk [vmem:[#allocation3 + $0x71] sm:$0x1] %vm1753, 0.0
        %1777 = vst.msk [vmem:[#allocation3 + $0x89] sm:$0x1] %vm1753, 0.0
        %1778 = vst.msk [vmem:[#allocation3 + $0xa1] sm:$0x1] %vm1753, 0.0
        %1779 = vst.msk [vmem:[#allocation3 + $0xb9] sm:$0x1] %vm1753, 0.0
        %1780 = vst.msk [vmem:[#allocation3 + $0xd1] sm:$0x1] %vm1753, 0.0
        %1781 = vst.msk [vmem:[#allocation3 + $0xe9] sm:$0x1] %vm1753, 0.0
        %1782 = vst.msk [vmem:[#allocation3 + $0x101] sm:$0x1] %vm1753, 0.0
        %1783 = vst.msk [vmem:[#allocation3 + $0x119] sm:$0x1] %vm1753, 0.0
        %1784 = vst.msk [vmem:[#allocation3 + $0x131] sm:$0x1] %vm1753, 0.0
        %1785 = vst.msk [vmem:[#allocation3 + $0x149] sm:$0x1] %vm1753, 0.0
        %1786 = vst.msk [vmem:[#allocation3 + $0x161] sm:$0x1] %vm1753, 0.0
        %1787 = vst.msk [vmem:[#allocation3 + $0x179] sm:$0x1] %vm1753, 0.0
        %1788 = vst.msk [vmem:[#allocation3 + $0x191] sm:$0x1] %vm1753, 0.0
        %1789 = vst.msk [vmem:[#allocation3 + $0x1a9] sm:$0x1] %vm1753, 0.0
        %s1790 = scalar_lea.vmem [#allocation3], 24
        %1791 = vst.msk [vmem:[%s1790 + $0x1] sm:$0xff] %vm1744, %v1712
        %1792 = vst.msk [vmem:[%s1790 + $0x9] sm:$0xff] %vm1744, %v1713
        %1793 = vst.msk [vmem:[%s1790 + $0x19] sm:$0xff] %vm1744, %v1714
        %1794 = vst.msk [vmem:[%s1790 + $0x21] sm:$0xff] %vm1744, %v1715
        %1795 = vst.msk [vmem:[%s1790 + $0x31] sm:$0xff] %vm1744, %v1716
        %1796 = vst.msk [vmem:[%s1790 + $0x39] sm:$0xff] %vm1744, %v1717
        %1797 = vst.msk [vmem:[%s1790 + $0x49] sm:$0xff] %vm1744, %v1718
        %1798 = vst.msk [vmem:[%s1790 + $0x51] sm:$0xff] %vm1744, %v1719
        %1799 = vst.msk [vmem:[%s1790 + $0x61] sm:$0xff] %vm1744, %v1720
        %1800 = vst.msk [vmem:[%s1790 + $0x69] sm:$0xff] %vm1744, %v1721
        %1801 = vst.msk [vmem:[%s1790 + $0x79] sm:$0xff] %vm1744, %v1722
        %1802 = vst.msk [vmem:[%s1790 + $0x81] sm:$0xff] %vm1744, %v1723
        %1803 = vst.msk [vmem:[%s1790 + $0x91] sm:$0xff] %vm1744, %v1724
        %1804 = vst.msk [vmem:[%s1790 + $0x99] sm:$0xff] %vm1744, %v1725
        %1805 = vst.msk [vmem:[%s1790 + $0xa9] sm:$0xff] %vm1744, %v1726
        %1806 = vst.msk [vmem:[%s1790 + $0xb1] sm:$0xff] %vm1744, %v1727
        %1807 = vst.msk [vmem:[%s1790 + $0xc1] sm:$0xff] %vm1744, %v1728
        %1808 = vst.msk [vmem:[%s1790 + $0xc9] sm:$0xff] %vm1744, %v1729
        %1809 = vst.msk [vmem:[%s1790 + $0xd9] sm:$0xff] %vm1744, %v1730
        %1810 = vst.msk [vmem:[%s1790 + $0xe1] sm:$0xff] %vm1744, %v1731
        %1811 = vst.msk [vmem:[%s1790 + $0xf1] sm:$0xff] %vm1744, %v1732
        %1812 = vst.msk [vmem:[%s1790 + $0xf9] sm:$0xff] %vm1744, %v1733
        %1813 = vst.msk [vmem:[%s1790 + $0x109] sm:$0xff] %vm1744, %v1734
        %1814 = vst.msk [vmem:[%s1790 + $0x111] sm:$0xff] %vm1744, %v1735
        %1815 = vst.msk [vmem:[%s1790 + $0x121] sm:$0xff] %vm1744, %v1736
        %1816 = vst.msk [vmem:[%s1790 + $0x129] sm:$0xff] %vm1744, %v1737
        %1817 = vst.msk [vmem:[%s1790 + $0x139] sm:$0xff] %vm1744, %v1738
        %1818 = vst.msk [vmem:[%s1790 + $0x141] sm:$0xff] %vm1744, %v1739
        %1819 = vst.msk [vmem:[%s1790 + $0x151] sm:$0xff] %vm1744, %v1740
        %1820 = vst.msk [vmem:[%s1790 + $0x159] sm:$0xff] %vm1744, %v1741
        %1821 = vst.msk [vmem:[%s1790 + $0x169] sm:$0xff] %vm1744, %v1742
        %1822 = vst.msk [vmem:[%s1790 + $0x171] sm:$0xff] %vm1744, %v1743
        %v1823 = vld [vmem:[%s4] sm:$0x1]
        %v1824 = vld [vmem:[#allocation3] sm:$0xff]
        %v1825 = vld [vmem:[#allocation3 + $0x8] sm:$0xff]
        %v1826 = vld [vmem:[#allocation3 + $0x18] sm:$0xff]
        %v1827 = vld [vmem:[#allocation3 + $0x20] sm:$0xff]
        %v1828 = vld [vmem:[#allocation3 + $0x30] sm:$0xff]
        %v1829 = vld [vmem:[#allocation3 + $0x38] sm:$0xff]
        %v1830 = vld [vmem:[#allocation3 + $0x48] sm:$0xff]
        %v1831 = vld [vmem:[#allocation3 + $0x50] sm:$0xff]
        %v1832 = vld [vmem:[#allocation3 + $0x60] sm:$0xff]
        %v1833 = vld [vmem:[#allocation3 + $0x68] sm:$0xff]
        %v1834 = vld [vmem:[#allocation3 + $0x78] sm:$0xff]
        %v1835 = vld [vmem:[#allocation3 + $0x80] sm:$0xff]
        %v1836 = vld [vmem:[#allocation3 + $0x90] sm:$0xff]
        %v1837 = vld [vmem:[#allocation3 + $0x98] sm:$0xff]
        %v1838 = vld [vmem:[#allocation3 + $0xa8] sm:$0xff]
        %v1839 = vld [vmem:[#allocation3 + $0xb0] sm:$0xff]
        %v1840 = vld [vmem:[#allocation3 + $0xc0] sm:$0xff]
        %v1841 = vld [vmem:[#allocation3 + $0xc8] sm:$0xff]
        %v1842 = vld [vmem:[#allocation3 + $0xd8] sm:$0xff]
        %v1843 = vld [vmem:[#allocation3 + $0xe0] sm:$0xff]
        %v1844 = vld [vmem:[#allocation3 + $0xf0] sm:$0xff]
        %v1845 = vld [vmem:[#allocation3 + $0xf8] sm:$0xff]
        %v1846 = vld [vmem:[#allocation3 + $0x108] sm:$0xff]
        %v1847 = vld [vmem:[#allocation3 + $0x110] sm:$0xff]
        %v1848 = vld [vmem:[#allocation3 + $0x120] sm:$0xff]
        %v1849 = vld [vmem:[#allocation3 + $0x128] sm:$0xff]
        %v1850 = vld [vmem:[#allocation3 + $0x138] sm:$0xff]
        %v1851 = vld [vmem:[#allocation3 + $0x140] sm:$0xff]
        %v1852 = vld [vmem:[#allocation3 + $0x150] sm:$0xff]
        %v1853 = vld [vmem:[#allocation3 + $0x158] sm:$0xff]
        %v1854 = vld [vmem:[#allocation3 + $0x168] sm:$0xff]
        %v1855 = vld [vmem:[#allocation3 + $0x170] sm:$0xff]
        %v1857 = vlaneseq
        %v1858 = vshrl.u32 %v1857, 7
        %v1859 = vsub.s32 0, %v1858
        %v1860 = vrot.slane %v1823, %v1859
        %v1862 = vmul.f32 %v1824, %v1860
        %v1863 = vmul.f32 %v1825, %v1860
        %v1864 = vmul.f32 %v1826, %v1860
        %v1865 = vmul.f32 %v1827, %v1860
        %v1866 = vmul.f32 %v1828, %v1860
        %v1867 = vmul.f32 %v1829, %v1860
        %v1868 = vmul.f32 %v1830, %v1860
        %v1869 = vmul.f32 %v1831, %v1860
        %v1870 = vmul.f32 %v1832, %v1860
        %v1871 = vmul.f32 %v1833, %v1860
        %v1872 = vmul.f32 %v1834, %v1860
        %v1873 = vmul.f32 %v1835, %v1860
        %v1874 = vmul.f32 %v1836, %v1860
        %v1875 = vmul.f32 %v1837, %v1860
        %v1876 = vmul.f32 %v1838, %v1860
        %v1877 = vmul.f32 %v1839, %v1860
        %v1878 = vmul.f32 %v1840, %v1860
        %v1879 = vmul.f32 %v1841, %v1860
        %v1880 = vmul.f32 %v1842, %v1860
        %v1881 = vmul.f32 %v1843, %v1860
        %v1882 = vmul.f32 %v1844, %v1860
        %v1883 = vmul.f32 %v1845, %v1860
        %v1884 = vmul.f32 %v1846, %v1860
        %v1885 = vmul.f32 %v1847, %v1860
        %v1886 = vmul.f32 %v1848, %v1860
        %v1887 = vmul.f32 %v1849, %v1860
        %v1888 = vmul.f32 %v1850, %v1860
        %v1889 = vmul.f32 %v1851, %v1860
        %v1890 = vmul.f32 %v1852, %v1860
        %v1891 = vmul.f32 %v1853, %v1860
        %v1892 = vmul.f32 %v1854, %v1860
        %v1893 = vmul.f32 %v1855, %v1860
        %v1894 = vadd.f32 %v1862, 0.0
        %v1895 = vadd.f32 %v1863, 0.0
        %v1896 = vadd.f32 %v1864, 0.0
        %v1897 = vadd.f32 %v1865, 0.0
        %v1898 = vadd.f32 %v1866, 0.0
        %v1899 = vadd.f32 %v1867, 0.0
        %v1900 = vadd.f32 %v1868, 0.0
        %v1901 = vadd.f32 %v1869, 0.0
        %v1902 = vadd.f32 %v1870, 0.0
        %v1903 = vadd.f32 %v1871, 0.0
        %v1904 = vadd.f32 %v1872, 0.0
        %v1905 = vadd.f32 %v1873, 0.0
        %v1906 = vadd.f32 %v1874, 0.0
        %v1907 = vadd.f32 %v1875, 0.0
        %v1908 = vadd.f32 %v1876, 0.0
        %v1909 = vadd.f32 %v1877, 0.0
        %v1910 = vadd.f32 %v1878, 0.0
        %v1911 = vadd.f32 %v1879, 0.0
        %v1912 = vadd.f32 %v1880, 0.0
        %v1913 = vadd.f32 %v1881, 0.0
        %v1914 = vadd.f32 %v1882, 0.0
        %v1915 = vadd.f32 %v1883, 0.0
        %v1916 = vadd.f32 %v1884, 0.0
        %v1917 = vadd.f32 %v1885, 0.0
        %v1918 = vadd.f32 %v1886, 0.0
        %v1919 = vadd.f32 %v1887, 0.0
        %v1920 = vadd.f32 %v1888, 0.0
        %v1921 = vadd.f32 %v1889, 0.0
        %v1922 = vadd.f32 %v1890, 0.0
        %v1923 = vadd.f32 %v1891, 0.0
        %v1924 = vadd.f32 %v1892, 0.0
        %v1925 = vadd.f32 %v1893, 0.0
        %s1926 = scalar_lea.vmem %s4, 1
        %v1927 = vld [vmem:[%s1926] sm:$0x1]
        %v1928 = vld [vmem:[#allocation3 + $0x1] sm:$0xff]
        %v1929 = vld [vmem:[#allocation3 + $0x9] sm:$0xff]
        %v1930 = vld [vmem:[#allocation3 + $0x19] sm:$0xff]
        %v1931 = vld [vmem:[#allocation3 + $0x21] sm:$0xff]
        %v1932 = vld [vmem:[#allocation3 + $0x31] sm:$0xff]
        %v1933 = vld [vmem:[#allocation3 + $0x39] sm:$0xff]
        %v1934 = vld [vmem:[#allocation3 + $0x49] sm:$0xff]
        %v1935 = vld [vmem:[#allocation3 + $0x51] sm:$0xff]
        %v1936 = vld [vmem:[#allocation3 + $0x61] sm:$0xff]
        %v1937 = vld [vmem:[#allocation3 + $0x69] sm:$0xff]
        %v1938 = vld [vmem:[#allocation3 + $0x79] sm:$0xff]
        %v1939 = vld [vmem:[#allocation3 + $0x81] sm:$0xff]
        %v1940 = vld [vmem:[#allocation3 + $0x91] sm:$0xff]
        %v1941 = vld [vmem:[#allocation3 + $0x99] sm:$0xff]
        %v1942 = vld [vmem:[#allocation3 + $0xa9] sm:$0xff]
        %v1943 = vld [vmem:[#allocation3 + $0xb1] sm:$0xff]
        %v1944 = vld [vmem:[#allocation3 + $0xc1] sm:$0xff]
        %v1945 = vld [vmem:[#allocation3 + $0xc9] sm:$0xff]
        %v1946 = vld [vmem:[#allocation3 + $0xd9] sm:$0xff]
        %v1947 = vld [vmem:[#allocation3 + $0xe1] sm:$0xff]
        %v1948 = vld [vmem:[#allocation3 + $0xf1] sm:$0xff]
        %v1949 = vld [vmem:[#allocation3 + $0xf9] sm:$0xff]
        %v1950 = vld [vmem:[#allocation3 + $0x109] sm:$0xff]
        %v1951 = vld [vmem:[#allocation3 + $0x111] sm:$0xff]
        %v1952 = vld [vmem:[#allocation3 + $0x121] sm:$0xff]
        %v1953 = vld [vmem:[#allocation3 + $0x129] sm:$0xff]
        %v1954 = vld [vmem:[#allocation3 + $0x139] sm:$0xff]
        %v1955 = vld [vmem:[#allocation3 + $0x141] sm:$0xff]
        %v1956 = vld [vmem:[#allocation3 + $0x151] sm:$0xff]
        %v1957 = vld [vmem:[#allocation3 + $0x159] sm:$0xff]
        %v1958 = vld [vmem:[#allocation3 + $0x169] sm:$0xff]
        %v1959 = vld [vmem:[#allocation3 + $0x171] sm:$0xff]
        %v1961 = vlaneseq
        %v1962 = vshrl.u32 %v1961, 7
        %v1963 = vsub.s32 0, %v1962
        %v1964 = vrot.slane %v1927, %v1963
        %v1966 = vmul.f32 %v1928, %v1964
        %v1967 = vmul.f32 %v1929, %v1964
        %v1968 = vmul.f32 %v1930, %v1964
        %v1969 = vmul.f32 %v1931, %v1964
        %v1970 = vmul.f32 %v1932, %v1964
        %v1971 = vmul.f32 %v1933, %v1964
        %v1972 = vmul.f32 %v1934, %v1964
        %v1973 = vmul.f32 %v1935, %v1964
        %v1974 = vmul.f32 %v1936, %v1964
        %v1975 = vmul.f32 %v1937, %v1964
        %v1976 = vmul.f32 %v1938, %v1964
        %v1977 = vmul.f32 %v1939, %v1964
        %v1978 = vmul.f32 %v1940, %v1964
        %v1979 = vmul.f32 %v1941, %v1964
        %v1980 = vmul.f32 %v1942, %v1964
        %v1981 = vmul.f32 %v1943, %v1964
        %v1982 = vmul.f32 %v1944, %v1964
        %v1983 = vmul.f32 %v1945, %v1964
        %v1984 = vmul.f32 %v1946, %v1964
        %v1985 = vmul.f32 %v1947, %v1964
        %v1986 = vmul.f32 %v1948, %v1964
        %v1987 = vmul.f32 %v1949, %v1964
        %v1988 = vmul.f32 %v1950, %v1964
        %v1989 = vmul.f32 %v1951, %v1964
        %v1990 = vmul.f32 %v1952, %v1964
        %v1991 = vmul.f32 %v1953, %v1964
        %v1992 = vmul.f32 %v1954, %v1964
        %v1993 = vmul.f32 %v1955, %v1964
        %v1994 = vmul.f32 %v1956, %v1964
        %v1995 = vmul.f32 %v1957, %v1964
        %v1996 = vmul.f32 %v1958, %v1964
        %v1997 = vmul.f32 %v1959, %v1964
        %v1998 = vadd.f32 %v1894, %v1966
        %v1999 = vadd.f32 %v1895, %v1967
        %v2000 = vadd.f32 %v1896, %v1968
        %v2001 = vadd.f32 %v1897, %v1969
        %v2002 = vadd.f32 %v1898, %v1970
        %v2003 = vadd.f32 %v1899, %v1971
        %v2004 = vadd.f32 %v1900, %v1972
        %v2005 = vadd.f32 %v1901, %v1973
        %v2006 = vadd.f32 %v1902, %v1974
        %v2007 = vadd.f32 %v1903, %v1975
        %v2008 = vadd.f32 %v1904, %v1976
        %v2009 = vadd.f32 %v1905, %v1977
        %v2010 = vadd.f32 %v1906, %v1978
        %v2011 = vadd.f32 %v1907, %v1979
        %v2012 = vadd.f32 %v1908, %v1980
        %v2013 = vadd.f32 %v1909, %v1981
        %v2014 = vadd.f32 %v1910, %v1982
        %v2015 = vadd.f32 %v1911, %v1983
        %v2016 = vadd.f32 %v1912, %v1984
        %v2017 = vadd.f32 %v1913, %v1985
        %v2018 = vadd.f32 %v1914, %v1986
        %v2019 = vadd.f32 %v1915, %v1987
        %v2020 = vadd.f32 %v1916, %v1988
        %v2021 = vadd.f32 %v1917, %v1989
        %v2022 = vadd.f32 %v1918, %v1990
        %v2023 = vadd.f32 %v1919, %v1991
        %v2024 = vadd.f32 %v1920, %v1992
        %v2025 = vadd.f32 %v1921, %v1993
        %v2026 = vadd.f32 %v1922, %v1994
        %v2027 = vadd.f32 %v1923, %v1995
        %v2028 = vadd.f32 %v1924, %v1996
        %v2029 = vadd.f32 %v1925, %v1997
        %s2030 = scalar_lea.vmem %s4, 2
        %v2031 = vld [vmem:[%s2030] sm:$0x1]
        %v2032 = vld [vmem:[#allocation3 + $0x2] sm:$0xff]
        %v2033 = vld [vmem:[#allocation3 + $0xa] sm:$0xff]
        %v2034 = vld [vmem:[#allocation3 + $0x1a] sm:$0xff]
        %v2035 = vld [vmem:[#allocation3 + $0x22] sm:$0xff]
        %v2036 = vld [vmem:[#allocation3 + $0x32] sm:$0xff]
        %v2037 = vld [vmem:[#allocation3 + $0x3a] sm:$0xff]
        %v2038 = vld [vmem:[#allocation3 + $0x4a] sm:$0xff]
        %v2039 = vld [vmem:[#allocation3 + $0x52] sm:$0xff]
        %v2040 = vld [vmem:[#allocation3 + $0x62] sm:$0xff]
        %v2041 = vld [vmem:[#allocation3 + $0x6a] sm:$0xff]
        %v2042 = vld [vmem:[#allocation3 + $0x7a] sm:$0xff]
        %v2043 = vld [vmem:[#allocation3 + $0x82] sm:$0xff]
        %v2044 = vld [vmem:[#allocation3 + $0x92] sm:$0xff]
        %v2045 = vld [vmem:[#allocation3 + $0x9a] sm:$0xff]
        %v2046 = vld [vmem:[#allocation3 + $0xaa] sm:$0xff]
        %v2047 = vld [vmem:[#allocation3 + $0xb2] sm:$0xff]
        %v2048 = vld [vmem:[#allocation3 + $0xc2] sm:$0xff]
        %v2049 = vld [vmem:[#allocation3 + $0xca] sm:$0xff]
        %v2050 = vld [vmem:[#allocation3 + $0xda] sm:$0xff]
        %v2051 = vld [vmem:[#allocation3 + $0xe2] sm:$0xff]
        %v2052 = vld [vmem:[#allocation3 + $0xf2] sm:$0xff]
        %v2053 = vld [vmem:[#allocation3 + $0xfa] sm:$0xff]
        %v2054 = vld [vmem:[#allocation3 + $0x10a] sm:$0xff]
        %v2055 = vld [vmem:[#allocation3 + $0x112] sm:$0xff]
        %v2056 = vld [vmem:[#allocation3 + $0x122] sm:$0xff]
        %v2057 = vld [vmem:[#allocation3 + $0x12a] sm:$0xff]
        %v2058 = vld [vmem:[#allocation3 + $0x13a] sm:$0xff]
        %v2059 = vld [vmem:[#allocation3 + $0x142] sm:$0xff]
        %v2060 = vld [vmem:[#allocation3 + $0x152] sm:$0xff]
        %v2061 = vld [vmem:[#allocation3 + $0x15a] sm:$0xff]
        %v2062 = vld [vmem:[#allocation3 + $0x16a] sm:$0xff]
        %v2063 = vld [vmem:[#allocation3 + $0x172] sm:$0xff]
        %v2065 = vlaneseq
        %v2066 = vshrl.u32 %v2065, 7
        %v2067 = vsub.s32 0, %v2066
        %v2068 = vrot.slane %v2031, %v2067
        %v2070 = vmul.f32 %v2032, %v2068
        %v2071 = vmul.f32 %v2033, %v2068
        %v2072 = vmul.f32 %v2034, %v2068
        %v2073 = vmul.f32 %v2035, %v2068
        %v2074 = vmul.f32 %v2036, %v2068
        %v2075 = vmul.f32 %v2037, %v2068
        %v2076 = vmul.f32 %v2038, %v2068
        %v2077 = vmul.f32 %v2039, %v2068
        %v2078 = vmul.f32 %v2040, %v2068
        %v2079 = vmul.f32 %v2041, %v2068
        %v2080 = vmul.f32 %v2042, %v2068
        %v2081 = vmul.f32 %v2043, %v2068
        %v2082 = vmul.f32 %v2044, %v2068
        %v2083 = vmul.f32 %v2045, %v2068
        %v2084 = vmul.f32 %v2046, %v2068
        %v2085 = vmul.f32 %v2047, %v2068
        %v2086 = vmul.f32 %v2048, %v2068
        %v2087 = vmul.f32 %v2049, %v2068
        %v2088 = vmul.f32 %v2050, %v2068
        %v2089 = vmul.f32 %v2051, %v2068
        %v2090 = vmul.f32 %v2052, %v2068
        %v2091 = vmul.f32 %v2053, %v2068
        %v2092 = vmul.f32 %v2054, %v2068
        %v2093 = vmul.f32 %v2055, %v2068
        %v2094 = vmul.f32 %v2056, %v2068
        %v2095 = vmul.f32 %v2057, %v2068
        %v2096 = vmul.f32 %v2058, %v2068
        %v2097 = vmul.f32 %v2059, %v2068
        %v2098 = vmul.f32 %v2060, %v2068
        %v2099 = vmul.f32 %v2061, %v2068
        %v2100 = vmul.f32 %v2062, %v2068
        %v2101 = vmul.f32 %v2063, %v2068
        %v2102 = vadd.f32 %v1998, %v2070
        %v2103 = vadd.f32 %v1999, %v2071
        %v2104 = vadd.f32 %v2000, %v2072
        %v2105 = vadd.f32 %v2001, %v2073
        %v2106 = vadd.f32 %v2002, %v2074
        %v2107 = vadd.f32 %v2003, %v2075
        %v2108 = vadd.f32 %v2004, %v2076
        %v2109 = vadd.f32 %v2005, %v2077
        %v2110 = vadd.f32 %v2006, %v2078
        %v2111 = vadd.f32 %v2007, %v2079
        %v2112 = vadd.f32 %v2008, %v2080
        %v2113 = vadd.f32 %v2009, %v2081
        %v2114 = vadd.f32 %v2010, %v2082
        %v2115 = vadd.f32 %v2011, %v2083
        %v2116 = vadd.f32 %v2012, %v2084
        %v2117 = vadd.f32 %v2013, %v2085
        %v2118 = vadd.f32 %v2014, %v2086
        %v2119 = vadd.f32 %v2015, %v2087
        %v2120 = vadd.f32 %v2016, %v2088
        %v2121 = vadd.f32 %v2017, %v2089
        %v2122 = vadd.f32 %v2018, %v2090
        %v2123 = vadd.f32 %v2019, %v2091
        %v2124 = vadd.f32 %v2020, %v2092
        %v2125 = vadd.f32 %v2021, %v2093
        %v2126 = vadd.f32 %v2022, %v2094
        %v2127 = vadd.f32 %v2023, %v2095
        %v2128 = vadd.f32 %v2024, %v2096
        %v2129 = vadd.f32 %v2025, %v2097
        %v2130 = vadd.f32 %v2026, %v2098
        %v2131 = vadd.f32 %v2027, %v2099
        %v2132 = vadd.f32 %v2028, %v2100
        %v2133 = vadd.f32 %v2029, %v2101
        %s2134 = scalar_lea.vmem %s4, 3
        %v2135 = vld [vmem:[%s2134] sm:$0x1]
        %v2136 = vld [vmem:[%s1790] sm:$0xff]
        %v2137 = vld [vmem:[%s1790 + $0x8] sm:$0xff]
        %v2138 = vld [vmem:[%s1790 + $0x18] sm:$0xff]
        %v2139 = vld [vmem:[%s1790 + $0x20] sm:$0xff]
        %v2140 = vld [vmem:[%s1790 + $0x30] sm:$0xff]
        %v2141 = vld [vmem:[%s1790 + $0x38] sm:$0xff]
        %v2142 = vld [vmem:[%s1790 + $0x48] sm:$0xff]
        %v2143 = vld [vmem:[%s1790 + $0x50] sm:$0xff]
        %v2144 = vld [vmem:[%s1790 + $0x60] sm:$0xff]
        %v2145 = vld [vmem:[%s1790 + $0x68] sm:$0xff]
        %v2146 = vld [vmem:[%s1790 + $0x78] sm:$0xff]
        %v2147 = vld [vmem:[%s1790 + $0x80] sm:$0xff]
        %v2148 = vld [vmem:[%s1790 + $0x90] sm:$0xff]
        %v2149 = vld [vmem:[%s1790 + $0x98] sm:$0xff]
        %v2150 = vld [vmem:[%s1790 + $0xa8] sm:$0xff]
        %v2151 = vld [vmem:[%s1790 + $0xb0] sm:$0xff]
        %v2152 = vld [vmem:[%s1790 + $0xc0] sm:$0xff]
        %v2153 = vld [vmem:[%s1790 + $0xc8] sm:$0xff]
        %v2154 = vld [vmem:[%s1790 + $0xd8] sm:$0xff]
        %v2155 = vld [vmem:[%s1790 + $0xe0] sm:$0xff]
        %v2156 = vld [vmem:[%s1790 + $0xf0] sm:$0xff]
        %v2157 = vld [vmem:[%s1790 + $0xf8] sm:$0xff]
        %v2158 = vld [vmem:[%s1790 + $0x108] sm:$0xff]
        %v2159 = vld [vmem:[%s1790 + $0x110] sm:$0xff]
        %v2160 = vld [vmem:[%s1790 + $0x120] sm:$0xff]
        %v2161 = vld [vmem:[%s1790 + $0x128] sm:$0xff]
        %v2162 = vld [vmem:[%s1790 + $0x138] sm:$0xff]
        %v2163 = vld [vmem:[%s1790 + $0x140] sm:$0xff]
        %v2164 = vld [vmem:[%s1790 + $0x150] sm:$0xff]
        %v2165 = vld [vmem:[%s1790 + $0x158] sm:$0xff]
        %v2166 = vld [vmem:[%s1790 + $0x168] sm:$0xff]
        %v2167 = vld [vmem:[%s1790 + $0x170] sm:$0xff]
        %v2169 = vlaneseq
        %v2170 = vshrl.u32 %v2169, 7
        %v2171 = vsub.s32 0, %v2170
        %v2172 = vrot.slane %v2135, %v2171
        %v2174 = vmul.f32 %v2136, %v2172
        %v2175 = vmul.f32 %v2137, %v2172
        %v2176 = vmul.f32 %v2138, %v2172
        %v2177 = vmul.f32 %v2139, %v2172
        %v2178 = vmul.f32 %v2140, %v2172
        %v2179 = vmul.f32 %v2141, %v2172
        %v2180 = vmul.f32 %v2142, %v2172
        %v2181 = vmul.f32 %v2143, %v2172
        %v2182 = vmul.f32 %v2144, %v2172
        %v2183 = vmul.f32 %v2145, %v2172
        %v2184 = vmul.f32 %v2146, %v2172
        %v2185 = vmul.f32 %v2147, %v2172
        %v2186 = vmul.f32 %v2148, %v2172
        %v2187 = vmul.f32 %v2149, %v2172
        %v2188 = vmul.f32 %v2150, %v2172
        %v2189 = vmul.f32 %v2151, %v2172
        %v2190 = vmul.f32 %v2152, %v2172
        %v2191 = vmul.f32 %v2153, %v2172
        %v2192 = vmul.f32 %v2154, %v2172
        %v2193 = vmul.f32 %v2155, %v2172
        %v2194 = vmul.f32 %v2156, %v2172
        %v2195 = vmul.f32 %v2157, %v2172
        %v2196 = vmul.f32 %v2158, %v2172
        %v2197 = vmul.f32 %v2159, %v2172
        %v2198 = vmul.f32 %v2160, %v2172
        %v2199 = vmul.f32 %v2161, %v2172
        %v2200 = vmul.f32 %v2162, %v2172
        %v2201 = vmul.f32 %v2163, %v2172
        %v2202 = vmul.f32 %v2164, %v2172
        %v2203 = vmul.f32 %v2165, %v2172
        %v2204 = vmul.f32 %v2166, %v2172
        %v2205 = vmul.f32 %v2167, %v2172
        %v2206 = vadd.f32 %v2102, %v2174
        %v2207 = vadd.f32 %v2103, %v2175
        %v2208 = vadd.f32 %v2104, %v2176
        %v2209 = vadd.f32 %v2105, %v2177
        %v2210 = vadd.f32 %v2106, %v2178
        %v2211 = vadd.f32 %v2107, %v2179
        %v2212 = vadd.f32 %v2108, %v2180
        %v2213 = vadd.f32 %v2109, %v2181
        %v2214 = vadd.f32 %v2110, %v2182
        %v2215 = vadd.f32 %v2111, %v2183
        %v2216 = vadd.f32 %v2112, %v2184
        %v2217 = vadd.f32 %v2113, %v2185
        %v2218 = vadd.f32 %v2114, %v2186
        %v2219 = vadd.f32 %v2115, %v2187
        %v2220 = vadd.f32 %v2116, %v2188
        %v2221 = vadd.f32 %v2117, %v2189
        %v2222 = vadd.f32 %v2118, %v2190
        %v2223 = vadd.f32 %v2119, %v2191
        %v2224 = vadd.f32 %v2120, %v2192
        %v2225 = vadd.f32 %v2121, %v2193
        %v2226 = vadd.f32 %v2122, %v2194
        %v2227 = vadd.f32 %v2123, %v2195
        %v2228 = vadd.f32 %v2124, %v2196
        %v2229 = vadd.f32 %v2125, %v2197
        %v2230 = vadd.f32 %v2126, %v2198
        %v2231 = vadd.f32 %v2127, %v2199
        %v2232 = vadd.f32 %v2128, %v2200
        %v2233 = vadd.f32 %v2129, %v2201
        %v2234 = vadd.f32 %v2130, %v2202
        %v2235 = vadd.f32 %v2131, %v2203
        %v2236 = vadd.f32 %v2132, %v2204
        %v2237 = vadd.f32 %v2133, %v2205
        %s2238 = scalar_lea.vmem %s4, 4
        %v2239 = vld [vmem:[%s2238] sm:$0x1]
        %v2240 = vld [vmem:[%s1790 + $0x1] sm:$0xff]
        %v2241 = vld [vmem:[%s1790 + $0x9] sm:$0xff]
        %v2242 = vld [vmem:[%s1790 + $0x19] sm:$0xff]
        %v2243 = vld [vmem:[%s1790 + $0x21] sm:$0xff]
        %v2244 = vld [vmem:[%s1790 + $0x31] sm:$0xff]
        %v2245 = vld [vmem:[%s1790 + $0x39] sm:$0xff]
        %v2246 = vld [vmem:[%s1790 + $0x49] sm:$0xff]
        %v2247 = vld [vmem:[%s1790 + $0x51] sm:$0xff]
        %v2248 = vld [vmem:[%s1790 + $0x61] sm:$0xff]
        %v2249 = vld [vmem:[%s1790 + $0x69] sm:$0xff]
        %v2250 = vld [vmem:[%s1790 + $0x79] sm:$0xff]
        %v2251 = vld [vmem:[%s1790 + $0x81] sm:$0xff]
        %v2252 = vld [vmem:[%s1790 + $0x91] sm:$0xff]
        %v2253 = vld [vmem:[%s1790 + $0x99] sm:$0xff]
        %v2254 = vld [vmem:[%s1790 + $0xa9] sm:$0xff]
        %v2255 = vld [vmem:[%s1790 + $0xb1] sm:$0xff]
        %v2256 = vld [vmem:[%s1790 + $0xc1] sm:$0xff]
        %v2257 = vld [vmem:[%s1790 + $0xc9] sm:$0xff]
        %v2258 = vld [vmem:[%s1790 + $0xd9] sm:$0xff]
        %v2259 = vld [vmem:[%s1790 + $0xe1] sm:$0xff]
        %v2260 = vld [vmem:[%s1790 + $0xf1] sm:$0xff]
        %v2261 = vld [vmem:[%s1790 + $0xf9] sm:$0xff]
        %v2262 = vld [vmem:[%s1790 + $0x109] sm:$0xff]
        %v2263 = vld [vmem:[%s1790 + $0x111] sm:$0xff]
        %v2264 = vld [vmem:[%s1790 + $0x121] sm:$0xff]
        %v2265 = vld [vmem:[%s1790 + $0x129] sm:$0xff]
        %v2266 = vld [vmem:[%s1790 + $0x139] sm:$0xff]
        %v2267 = vld [vmem:[%s1790 + $0x141] sm:$0xff]
        %v2268 = vld [vmem:[%s1790 + $0x151] sm:$0xff]
        %v2269 = vld [vmem:[%s1790 + $0x159] sm:$0xff]
        %v2270 = vld [vmem:[%s1790 + $0x169] sm:$0xff]
        %v2271 = vld [vmem:[%s1790 + $0x171] sm:$0xff]
        %v2273 = vlaneseq
        %v2274 = vshrl.u32 %v2273, 7
        %v2275 = vsub.s32 0, %v2274
        %v2276 = vrot.slane %v2239, %v2275
        %v2278 = vmul.f32 %v2240, %v2276
        %v2279 = vmul.f32 %v2241, %v2276
        %v2280 = vmul.f32 %v2242, %v2276
        %v2281 = vmul.f32 %v2243, %v2276
        %v2282 = vmul.f32 %v2244, %v2276
        %v2283 = vmul.f32 %v2245, %v2276
        %v2284 = vmul.f32 %v2246, %v2276
        %v2285 = vmul.f32 %v2247, %v2276
        %v2286 = vmul.f32 %v2248, %v2276
        %v2287 = vmul.f32 %v2249, %v2276
        %v2288 = vmul.f32 %v2250, %v2276
        %v2289 = vmul.f32 %v2251, %v2276
        %v2290 = vmul.f32 %v2252, %v2276
        %v2291 = vmul.f32 %v2253, %v2276
        %v2292 = vmul.f32 %v2254, %v2276
        %v2293 = vmul.f32 %v2255, %v2276
        %v2294 = vmul.f32 %v2256, %v2276
        %v2295 = vmul.f32 %v2257, %v2276
        %v2296 = vmul.f32 %v2258, %v2276
        %v2297 = vmul.f32 %v2259, %v2276
        %v2298 = vmul.f32 %v2260, %v2276
        %v2299 = vmul.f32 %v2261, %v2276
        %v2300 = vmul.f32 %v2262, %v2276
        %v2301 = vmul.f32 %v2263, %v2276
        %v2302 = vmul.f32 %v2264, %v2276
        %v2303 = vmul.f32 %v2265, %v2276
        %v2304 = vmul.f32 %v2266, %v2276
        %v2305 = vmul.f32 %v2267, %v2276
        %v2306 = vmul.f32 %v2268, %v2276
        %v2307 = vmul.f32 %v2269, %v2276
        %v2308 = vmul.f32 %v2270, %v2276
        %v2309 = vmul.f32 %v2271, %v2276
        %v2310 = vadd.f32 %v2206, %v2278
        %v2311 = vadd.f32 %v2207, %v2279
        %v2312 = vadd.f32 %v2208, %v2280
        %v2313 = vadd.f32 %v2209, %v2281
        %v2314 = vadd.f32 %v2210, %v2282
        %v2315 = vadd.f32 %v2211, %v2283
        %v2316 = vadd.f32 %v2212, %v2284
        %v2317 = vadd.f32 %v2213, %v2285
        %v2318 = vadd.f32 %v2214, %v2286
        %v2319 = vadd.f32 %v2215, %v2287
        %v2320 = vadd.f32 %v2216, %v2288
        %v2321 = vadd.f32 %v2217, %v2289
        %v2322 = vadd.f32 %v2218, %v2290
        %v2323 = vadd.f32 %v2219, %v2291
        %v2324 = vadd.f32 %v2220, %v2292
        %v2325 = vadd.f32 %v2221, %v2293
        %v2326 = vadd.f32 %v2222, %v2294
        %v2327 = vadd.f32 %v2223, %v2295
        %v2328 = vadd.f32 %v2224, %v2296
        %v2329 = vadd.f32 %v2225, %v2297
        %v2330 = vadd.f32 %v2226, %v2298
        %v2331 = vadd.f32 %v2227, %v2299
        %v2332 = vadd.f32 %v2228, %v2300
        %v2333 = vadd.f32 %v2229, %v2301
        %v2334 = vadd.f32 %v2230, %v2302
        %v2335 = vadd.f32 %v2231, %v2303
        %v2336 = vadd.f32 %v2232, %v2304
        %v2337 = vadd.f32 %v2233, %v2305
        %v2338 = vadd.f32 %v2234, %v2306
        %v2339 = vadd.f32 %v2235, %v2307
        %v2340 = vadd.f32 %v2236, %v2308
        %v2341 = vadd.f32 %v2237, %v2309
        %s2342 = scalar_lea.vmem %s4, 5
        %v2343 = vld [vmem:[%s2342] sm:$0x1]
        %v2344 = vld [vmem:[%s1790 + $0x2] sm:$0xff]
        %v2345 = vld [vmem:[%s1790 + $0xa] sm:$0xff]
        %v2346 = vld [vmem:[%s1790 + $0x1a] sm:$0xff]
        %v2347 = vld [vmem:[%s1790 + $0x22] sm:$0xff]
        %v2348 = vld [vmem:[%s1790 + $0x32] sm:$0xff]
        %v2349 = vld [vmem:[%s1790 + $0x3a] sm:$0xff]
        %v2350 = vld [vmem:[%s1790 + $0x4a] sm:$0xff]
        %v2351 = vld [vmem:[%s1790 + $0x52] sm:$0xff]
        %v2352 = vld [vmem:[%s1790 + $0x62] sm:$0xff]
        %v2353 = vld [vmem:[%s1790 + $0x6a] sm:$0xff]
        %v2354 = vld [vmem:[%s1790 + $0x7a] sm:$0xff]
        %v2355 = vld [vmem:[%s1790 + $0x82] sm:$0xff]
        %v2356 = vld [vmem:[%s1790 + $0x92] sm:$0xff]
        %v2357 = vld [vmem:[%s1790 + $0x9a] sm:$0xff]
        %v2358 = vld [vmem:[%s1790 + $0xaa] sm:$0xff]
        %v2359 = vld [vmem:[%s1790 + $0xb2] sm:$0xff]
        %v2360 = vld [vmem:[%s1790 + $0xc2] sm:$0xff]
        %v2361 = vld [vmem:[%s1790 + $0xca] sm:$0xff]
        %v2362 = vld [vmem:[%s1790 + $0xda] sm:$0xff]
        %v2363 = vld [vmem:[%s1790 + $0xe2] sm:$0xff]
        %v2364 = vld [vmem:[%s1790 + $0xf2] sm:$0xff]
        %v2365 = vld [vmem:[%s1790 + $0xfa] sm:$0xff]
        %v2366 = vld [vmem:[%s1790 + $0x10a] sm:$0xff]
        %v2367 = vld [vmem:[%s1790 + $0x112] sm:$0xff]
        %v2368 = vld [vmem:[%s1790 + $0x122] sm:$0xff]
        %v2369 = vld [vmem:[%s1790 + $0x12a] sm:$0xff]
        %v2370 = vld [vmem:[%s1790 + $0x13a] sm:$0xff]
        %v2371 = vld [vmem:[%s1790 + $0x142] sm:$0xff]
        %v2372 = vld [vmem:[%s1790 + $0x152] sm:$0xff]
        %v2373 = vld [vmem:[%s1790 + $0x15a] sm:$0xff]
        %v2374 = vld [vmem:[%s1790 + $0x16a] sm:$0xff]
        %v2375 = vld [vmem:[%s1790 + $0x172] sm:$0xff]
        %v2377 = vlaneseq
        %v2378 = vshrl.u32 %v2377, 7
        %v2379 = vsub.s32 0, %v2378
        %v2380 = vrot.slane %v2343, %v2379
        %v2382 = vmul.f32 %v2344, %v2380
        %v2383 = vmul.f32 %v2345, %v2380
        %v2384 = vmul.f32 %v2346, %v2380
        %v2385 = vmul.f32 %v2347, %v2380
        %v2386 = vmul.f32 %v2348, %v2380
        %v2387 = vmul.f32 %v2349, %v2380
        %v2388 = vmul.f32 %v2350, %v2380
        %v2389 = vmul.f32 %v2351, %v2380
        %v2390 = vmul.f32 %v2352, %v2380
        %v2391 = vmul.f32 %v2353, %v2380
        %v2392 = vmul.f32 %v2354, %v2380
        %v2393 = vmul.f32 %v2355, %v2380
        %v2394 = vmul.f32 %v2356, %v2380
        %v2395 = vmul.f32 %v2357, %v2380
        %v2396 = vmul.f32 %v2358, %v2380
        %v2397 = vmul.f32 %v2359, %v2380
        %v2398 = vmul.f32 %v2360, %v2380
        %v2399 = vmul.f32 %v2361, %v2380
        %v2400 = vmul.f32 %v2362, %v2380
        %v2401 = vmul.f32 %v2363, %v2380
        %v2402 = vmul.f32 %v2364, %v2380
        %v2403 = vmul.f32 %v2365, %v2380
        %v2404 = vmul.f32 %v2366, %v2380
        %v2405 = vmul.f32 %v2367, %v2380
        %v2406 = vmul.f32 %v2368, %v2380
        %v2407 = vmul.f32 %v2369, %v2380
        %v2408 = vmul.f32 %v2370, %v2380
        %v2409 = vmul.f32 %v2371, %v2380
        %v2410 = vmul.f32 %v2372, %v2380
        %v2411 = vmul.f32 %v2373, %v2380
        %v2412 = vmul.f32 %v2374, %v2380
        %v2413 = vmul.f32 %v2375, %v2380
        %v2414 = vadd.f32 %v2310, %v2382
        %v2415 = vadd.f32 %v2311, %v2383
        %v2416 = vadd.f32 %v2312, %v2384
        %v2417 = vadd.f32 %v2313, %v2385
        %v2418 = vadd.f32 %v2314, %v2386
        %v2419 = vadd.f32 %v2315, %v2387
        %v2420 = vadd.f32 %v2316, %v2388
        %v2421 = vadd.f32 %v2317, %v2389
        %v2422 = vadd.f32 %v2318, %v2390
        %v2423 = vadd.f32 %v2319, %v2391
        %v2424 = vadd.f32 %v2320, %v2392
        %v2425 = vadd.f32 %v2321, %v2393
        %v2426 = vadd.f32 %v2322, %v2394
        %v2427 = vadd.f32 %v2323, %v2395
        %v2428 = vadd.f32 %v2324, %v2396
        %v2429 = vadd.f32 %v2325, %v2397
        %v2430 = vadd.f32 %v2326, %v2398
        %v2431 = vadd.f32 %v2327, %v2399
        %v2432 = vadd.f32 %v2328, %v2400
        %v2433 = vadd.f32 %v2329, %v2401
        %v2434 = vadd.f32 %v2330, %v2402
        %v2435 = vadd.f32 %v2331, %v2403
        %v2436 = vadd.f32 %v2332, %v2404
        %v2437 = vadd.f32 %v2333, %v2405
        %v2438 = vadd.f32 %v2334, %v2406
        %v2439 = vadd.f32 %v2335, %v2407
        %v2440 = vadd.f32 %v2336, %v2408
        %v2441 = vadd.f32 %v2337, %v2409
        %v2442 = vadd.f32 %v2338, %v2410
        %v2443 = vadd.f32 %v2339, %v2411
        %v2444 = vadd.f32 %v2340, %v2412
        %v2445 = vadd.f32 %v2341, %v2413
        %s2446 = scalar_lea.vmem %s4, 6
        %v2447 = vld [vmem:[%s2446] sm:$0x1]
        %s2448 = scalar_lea.vmem [#allocation3], 48
        %v2449 = vld [vmem:[%s2448] sm:$0xff]
        %v2450 = vld [vmem:[%s2448 + $0x8] sm:$0xff]
        %v2451 = vld [vmem:[%s2448 + $0x18] sm:$0xff]
        %v2452 = vld [vmem:[%s2448 + $0x20] sm:$0xff]
        %v2453 = vld [vmem:[%s2448 + $0x30] sm:$0xff]
        %v2454 = vld [vmem:[%s2448 + $0x38] sm:$0xff]
        %v2455 = vld [vmem:[%s2448 + $0x48] sm:$0xff]
        %v2456 = vld [vmem:[%s2448 + $0x50] sm:$0xff]
        %v2457 = vld [vmem:[%s2448 + $0x60] sm:$0xff]
        %v2458 = vld [vmem:[%s2448 + $0x68] sm:$0xff]
        %v2459 = vld [vmem:[%s2448 + $0x78] sm:$0xff]
        %v2460 = vld [vmem:[%s2448 + $0x80] sm:$0xff]
        %v2461 = vld [vmem:[%s2448 + $0x90] sm:$0xff]
        %v2462 = vld [vmem:[%s2448 + $0x98] sm:$0xff]
        %v2463 = vld [vmem:[%s2448 + $0xa8] sm:$0xff]
        %v2464 = vld [vmem:[%s2448 + $0xb0] sm:$0xff]
        %v2465 = vld [vmem:[%s2448 + $0xc0] sm:$0xff]
        %v2466 = vld [vmem:[%s2448 + $0xc8] sm:$0xff]
        %v2467 = vld [vmem:[%s2448 + $0xd8] sm:$0xff]
        %v2468 = vld [vmem:[%s2448 + $0xe0] sm:$0xff]
        %v2469 = vld [vmem:[%s2448 + $0xf0] sm:$0xff]
        %v2470 = vld [vmem:[%s2448 + $0xf8] sm:$0xff]
        %v2471 = vld [vmem:[%s2448 + $0x108] sm:$0xff]
        %v2472 = vld [vmem:[%s2448 + $0x110] sm:$0xff]
        %v2473 = vld [vmem:[%s2448 + $0x120] sm:$0xff]
        %v2474 = vld [vmem:[%s2448 + $0x128] sm:$0xff]
        %v2475 = vld [vmem:[%s2448 + $0x138] sm:$0xff]
        %v2476 = vld [vmem:[%s2448 + $0x140] sm:$0xff]
        %v2477 = vld [vmem:[%s2448 + $0x150] sm:$0xff]
        %v2478 = vld [vmem:[%s2448 + $0x158] sm:$0xff]
        %v2479 = vld [vmem:[%s2448 + $0x168] sm:$0xff]
        %v2480 = vld [vmem:[%s2448 + $0x170] sm:$0xff]
        %v2482 = vlaneseq
        %v2483 = vshrl.u32 %v2482, 7
        %v2484 = vsub.s32 0, %v2483
        %v2485 = vrot.slane %v2447, %v2484
        %v2487 = vmul.f32 %v2449, %v2485
        %v2488 = vmul.f32 %v2450, %v2485
        %v2489 = vmul.f32 %v2451, %v2485
        %v2490 = vmul.f32 %v2452, %v2485
        %v2491 = vmul.f32 %v2453, %v2485
        %v2492 = vmul.f32 %v2454, %v2485
        %v2493 = vmul.f32 %v2455, %v2485
        %v2494 = vmul.f32 %v2456, %v2485
        %v2495 = vmul.f32 %v2457, %v2485
        %v2496 = vmul.f32 %v2458, %v2485
        %v2497 = vmul.f32 %v2459, %v2485
        %v2498 = vmul.f32 %v2460, %v2485
        %v2499 = vmul.f32 %v2461, %v2485
        %v2500 = vmul.f32 %v2462, %v2485
        %v2501 = vmul.f32 %v2463, %v2485
        %v2502 = vmul.f32 %v2464, %v2485
        %v2503 = vmul.f32 %v2465, %v2485
        %v2504 = vmul.f32 %v2466, %v2485
        %v2505 = vmul.f32 %v2467, %v2485
        %v2506 = vmul.f32 %v2468, %v2485
        %v2507 = vmul.f32 %v2469, %v2485
        %v2508 = vmul.f32 %v2470, %v2485
        %v2509 = vmul.f32 %v2471, %v2485
        %v2510 = vmul.f32 %v2472, %v2485
        %v2511 = vmul.f32 %v2473, %v2485
        %v2512 = vmul.f32 %v2474, %v2485
        %v2513 = vmul.f32 %v2475, %v2485
        %v2514 = vmul.f32 %v2476, %v2485
        %v2515 = vmul.f32 %v2477, %v2485
        %v2516 = vmul.f32 %v2478, %v2485
        %v2517 = vmul.f32 %v2479, %v2485
        %v2518 = vmul.f32 %v2480, %v2485
        %v2519 = vadd.f32 %v2414, %v2487
        %v2520 = vadd.f32 %v2415, %v2488
        %v2521 = vadd.f32 %v2416, %v2489
        %v2522 = vadd.f32 %v2417, %v2490
        %v2523 = vadd.f32 %v2418, %v2491
        %v2524 = vadd.f32 %v2419, %v2492
        %v2525 = vadd.f32 %v2420, %v2493
        %v2526 = vadd.f32 %v2421, %v2494
        %v2527 = vadd.f32 %v2422, %v2495
        %v2528 = vadd.f32 %v2423, %v2496
        %v2529 = vadd.f32 %v2424, %v2497
        %v2530 = vadd.f32 %v2425, %v2498
        %v2531 = vadd.f32 %v2426, %v2499
        %v2532 = vadd.f32 %v2427, %v2500
        %v2533 = vadd.f32 %v2428, %v2501
        %v2534 = vadd.f32 %v2429, %v2502
        %v2535 = vadd.f32 %v2430, %v2503
        %v2536 = vadd.f32 %v2431, %v2504
        %v2537 = vadd.f32 %v2432, %v2505
        %v2538 = vadd.f32 %v2433, %v2506
        %v2539 = vadd.f32 %v2434, %v2507
        %v2540 = vadd.f32 %v2435, %v2508
        %v2541 = vadd.f32 %v2436, %v2509
        %v2542 = vadd.f32 %v2437, %v2510
        %v2543 = vadd.f32 %v2438, %v2511
        %v2544 = vadd.f32 %v2439, %v2512
        %v2545 = vadd.f32 %v2440, %v2513
        %v2546 = vadd.f32 %v2441, %v2514
        %v2547 = vadd.f32 %v2442, %v2515
        %v2548 = vadd.f32 %v2443, %v2516
        %v2549 = vadd.f32 %v2444, %v2517
        %v2550 = vadd.f32 %v2445, %v2518
        %s2551 = scalar_lea.vmem %s4, 7
        %v2552 = vld [vmem:[%s2551] sm:$0x1]
        %v2553 = vld [vmem:[%s2448 + $0x1] sm:$0xff]
        %v2554 = vld [vmem:[%s2448 + $0x9] sm:$0xff]
        %v2555 = vld [vmem:[%s2448 + $0x19] sm:$0xff]
        %v2556 = vld [vmem:[%s2448 + $0x21] sm:$0xff]
        %v2557 = vld [vmem:[%s2448 + $0x31] sm:$0xff]
        %v2558 = vld [vmem:[%s2448 + $0x39] sm:$0xff]
        %v2559 = vld [vmem:[%s2448 + $0x49] sm:$0xff]
        %v2560 = vld [vmem:[%s2448 + $0x51] sm:$0xff]
        %v2561 = vld [vmem:[%s2448 + $0x61] sm:$0xff]
        %v2562 = vld [vmem:[%s2448 + $0x69] sm:$0xff]
        %v2563 = vld [vmem:[%s2448 + $0x79] sm:$0xff]
        %v2564 = vld [vmem:[%s2448 + $0x81] sm:$0xff]
        %v2565 = vld [vmem:[%s2448 + $0x91] sm:$0xff]
        %v2566 = vld [vmem:[%s2448 + $0x99] sm:$0xff]
        %v2567 = vld [vmem:[%s2448 + $0xa9] sm:$0xff]
        %v2568 = vld [vmem:[%s2448 + $0xb1] sm:$0xff]
        %v2569 = vld [vmem:[%s2448 + $0xc1] sm:$0xff]
        %v2570 = vld [vmem:[%s2448 + $0xc9] sm:$0xff]
        %v2571 = vld [vmem:[%s2448 + $0xd9] sm:$0xff]
        %v2572 = vld [vmem:[%s2448 + $0xe1] sm:$0xff]
        %v2573 = vld [vmem:[%s2448 + $0xf1] sm:$0xff]
        %v2574 = vld [vmem:[%s2448 + $0xf9] sm:$0xff]
        %v2575 = vld [vmem:[%s2448 + $0x109] sm:$0xff]
        %v2576 = vld [vmem:[%s2448 + $0x111] sm:$0xff]
        %v2577 = vld [vmem:[%s2448 + $0x121] sm:$0xff]
        %v2578 = vld [vmem:[%s2448 + $0x129] sm:$0xff]
        %v2579 = vld [vmem:[%s2448 + $0x139] sm:$0xff]
        %v2580 = vld [vmem:[%s2448 + $0x141] sm:$0xff]
        %v2581 = vld [vmem:[%s2448 + $0x151] sm:$0xff]
        %v2582 = vld [vmem:[%s2448 + $0x159] sm:$0xff]
        %v2583 = vld [vmem:[%s2448 + $0x169] sm:$0xff]
        %v2584 = vld [vmem:[%s2448 + $0x171] sm:$0xff]
        %v2586 = vlaneseq
        %v2587 = vshrl.u32 %v2586, 7
        %v2588 = vsub.s32 0, %v2587
        %v2589 = vrot.slane %v2552, %v2588
        %v2591 = vmul.f32 %v2553, %v2589
        %v2592 = vmul.f32 %v2554, %v2589
        %v2593 = vmul.f32 %v2555, %v2589
        %v2594 = vmul.f32 %v2556, %v2589
        %v2595 = vmul.f32 %v2557, %v2589
        %v2596 = vmul.f32 %v2558, %v2589
        %v2597 = vmul.f32 %v2559, %v2589
        %v2598 = vmul.f32 %v2560, %v2589
        %v2599 = vmul.f32 %v2561, %v2589
        %v2600 = vmul.f32 %v2562, %v2589
        %v2601 = vmul.f32 %v2563, %v2589
        %v2602 = vmul.f32 %v2564, %v2589
        %v2603 = vmul.f32 %v2565, %v2589
        %v2604 = vmul.f32 %v2566, %v2589
        %v2605 = vmul.f32 %v2567, %v2589
        %v2606 = vmul.f32 %v2568, %v2589
        %v2607 = vmul.f32 %v2569, %v2589
        %v2608 = vmul.f32 %v2570, %v2589
        %v2609 = vmul.f32 %v2571, %v2589
        %v2610 = vmul.f32 %v2572, %v2589
        %v2611 = vmul.f32 %v2573, %v2589
        %v2612 = vmul.f32 %v2574, %v2589
        %v2613 = vmul.f32 %v2575, %v2589
        %v2614 = vmul.f32 %v2576, %v2589
        %v2615 = vmul.f32 %v2577, %v2589
        %v2616 = vmul.f32 %v2578, %v2589
        %v2617 = vmul.f32 %v2579, %v2589
        %v2618 = vmul.f32 %v2580, %v2589
        %v2619 = vmul.f32 %v2581, %v2589
        %v2620 = vmul.f32 %v2582, %v2589
        %v2621 = vmul.f32 %v2583, %v2589
        %v2622 = vmul.f32 %v2584, %v2589
        %v2623 = vadd.f32 %v2519, %v2591
        %v2624 = vadd.f32 %v2520, %v2592
        %v2625 = vadd.f32 %v2521, %v2593
        %v2626 = vadd.f32 %v2522, %v2594
        %v2627 = vadd.f32 %v2523, %v2595
        %v2628 = vadd.f32 %v2524, %v2596
        %v2629 = vadd.f32 %v2525, %v2597
        %v2630 = vadd.f32 %v2526, %v2598
        %v2631 = vadd.f32 %v2527, %v2599
        %v2632 = vadd.f32 %v2528, %v2600
        %v2633 = vadd.f32 %v2529, %v2601
        %v2634 = vadd.f32 %v2530, %v2602
        %v2635 = vadd.f32 %v2531, %v2603
        %v2636 = vadd.f32 %v2532, %v2604
        %v2637 = vadd.f32 %v2533, %v2605
        %v2638 = vadd.f32 %v2534, %v2606
        %v2639 = vadd.f32 %v2535, %v2607
        %v2640 = vadd.f32 %v2536, %v2608
        %v2641 = vadd.f32 %v2537, %v2609
        %v2642 = vadd.f32 %v2538, %v2610
        %v2643 = vadd.f32 %v2539, %v2611
        %v2644 = vadd.f32 %v2540, %v2612
        %v2645 = vadd.f32 %v2541, %v2613
        %v2646 = vadd.f32 %v2542, %v2614
        %v2647 = vadd.f32 %v2543, %v2615
        %v2648 = vadd.f32 %v2544, %v2616
        %v2649 = vadd.f32 %v2545, %v2617
        %v2650 = vadd.f32 %v2546, %v2618
        %v2651 = vadd.f32 %v2547, %v2619
        %v2652 = vadd.f32 %v2548, %v2620
        %v2653 = vadd.f32 %v2549, %v2621
        %v2654 = vadd.f32 %v2550, %v2622
        %s2655 = scalar_lea.vmem %s4, 8
        %v2656 = vld [vmem:[%s2655] sm:$0x1]
        %v2657 = vld [vmem:[%s2448 + $0x2] sm:$0xff]
        %v2658 = vld [vmem:[%s2448 + $0xa] sm:$0xff]
        %v2659 = vld [vmem:[%s2448 + $0x1a] sm:$0xff]
        %v2660 = vld [vmem:[%s2448 + $0x22] sm:$0xff]
        %v2661 = vld [vmem:[%s2448 + $0x32] sm:$0xff]
        %v2662 = vld [vmem:[%s2448 + $0x3a] sm:$0xff]
        %v2663 = vld [vmem:[%s2448 + $0x4a] sm:$0xff]
        %v2664 = vld [vmem:[%s2448 + $0x52] sm:$0xff]
        %v2665 = vld [vmem:[%s2448 + $0x62] sm:$0xff]
        %v2666 = vld [vmem:[%s2448 + $0x6a] sm:$0xff]
        %v2667 = vld [vmem:[%s2448 + $0x7a] sm:$0xff]
        %v2668 = vld [vmem:[%s2448 + $0x82] sm:$0xff]
        %v2669 = vld [vmem:[%s2448 + $0x92] sm:$0xff]
        %v2670 = vld [vmem:[%s2448 + $0x9a] sm:$0xff]
        %v2671 = vld [vmem:[%s2448 + $0xaa] sm:$0xff]
        %v2672 = vld [vmem:[%s2448 + $0xb2] sm:$0xff]
        %v2673 = vld [vmem:[%s2448 + $0xc2] sm:$0xff]
        %v2674 = vld [vmem:[%s2448 + $0xca] sm:$0xff]
        %v2675 = vld [vmem:[%s2448 + $0xda] sm:$0xff]
        %v2676 = vld [vmem:[%s2448 + $0xe2] sm:$0xff]
        %v2677 = vld [vmem:[%s2448 + $0xf2] sm:$0xff]
        %v2678 = vld [vmem:[%s2448 + $0xfa] sm:$0xff]
        %v2679 = vld [vmem:[%s2448 + $0x10a] sm:$0xff]
        %v2680 = vld [vmem:[%s2448 + $0x112] sm:$0xff]
        %v2681 = vld [vmem:[%s2448 + $0x122] sm:$0xff]
        %v2682 = vld [vmem:[%s2448 + $0x12a] sm:$0xff]
        %v2683 = vld [vmem:[%s2448 + $0x13a] sm:$0xff]
        %v2684 = vld [vmem:[%s2448 + $0x142] sm:$0xff]
        %v2685 = vld [vmem:[%s2448 + $0x152] sm:$0xff]
        %v2686 = vld [vmem:[%s2448 + $0x15a] sm:$0xff]
        %v2687 = vld [vmem:[%s2448 + $0x16a] sm:$0xff]
        %v2688 = vld [vmem:[%s2448 + $0x172] sm:$0xff]
        %v2690 = vlaneseq
        %v2691 = vshrl.u32 %v2690, 7
        %v2692 = vsub.s32 0, %v2691
        %v2693 = vrot.slane %v2656, %v2692
        %v2695 = vmul.f32 %v2657, %v2693
        %v2696 = vmul.f32 %v2658, %v2693
        %v2697 = vmul.f32 %v2659, %v2693
        %v2698 = vmul.f32 %v2660, %v2693
        %v2699 = vmul.f32 %v2661, %v2693
        %v2700 = vmul.f32 %v2662, %v2693
        %v2701 = vmul.f32 %v2663, %v2693
        %v2702 = vmul.f32 %v2664, %v2693
        %v2703 = vmul.f32 %v2665, %v2693
        %v2704 = vmul.f32 %v2666, %v2693
        %v2705 = vmul.f32 %v2667, %v2693
        %v2706 = vmul.f32 %v2668, %v2693
        %v2707 = vmul.f32 %v2669, %v2693
        %v2708 = vmul.f32 %v2670, %v2693
        %v2709 = vmul.f32 %v2671, %v2693
        %v2710 = vmul.f32 %v2672, %v2693
        %v2711 = vmul.f32 %v2673, %v2693
        %v2712 = vmul.f32 %v2674, %v2693
        %v2713 = vmul.f32 %v2675, %v2693
        %v2714 = vmul.f32 %v2676, %v2693
        %v2715 = vmul.f32 %v2677, %v2693
        %v2716 = vmul.f32 %v2678, %v2693
        %v2717 = vmul.f32 %v2679, %v2693
        %v2718 = vmul.f32 %v2680, %v2693
        %v2719 = vmul.f32 %v2681, %v2693
        %v2720 = vmul.f32 %v2682, %v2693
        %v2721 = vmul.f32 %v2683, %v2693
        %v2722 = vmul.f32 %v2684, %v2693
        %v2723 = vmul.f32 %v2685, %v2693
        %v2724 = vmul.f32 %v2686, %v2693
        %v2725 = vmul.f32 %v2687, %v2693
        %v2726 = vmul.f32 %v2688, %v2693
        %v2727 = vadd.f32 %v2623, %v2695
        %v2728 = vadd.f32 %v2624, %v2696
        %v2729 = vadd.f32 %v2625, %v2697
        %v2730 = vadd.f32 %v2626, %v2698
        %v2731 = vadd.f32 %v2627, %v2699
        %v2732 = vadd.f32 %v2628, %v2700
        %v2733 = vadd.f32 %v2629, %v2701
        %v2734 = vadd.f32 %v2630, %v2702
        %v2735 = vadd.f32 %v2631, %v2703
        %v2736 = vadd.f32 %v2632, %v2704
        %v2737 = vadd.f32 %v2633, %v2705
        %v2738 = vadd.f32 %v2634, %v2706
        %v2739 = vadd.f32 %v2635, %v2707
        %v2740 = vadd.f32 %v2636, %v2708
        %v2741 = vadd.f32 %v2637, %v2709
        %v2742 = vadd.f32 %v2638, %v2710
        %v2743 = vadd.f32 %v2639, %v2711
        %v2744 = vadd.f32 %v2640, %v2712
        %v2745 = vadd.f32 %v2641, %v2713
        %v2746 = vadd.f32 %v2642, %v2714
        %v2747 = vadd.f32 %v2643, %v2715
        %v2748 = vadd.f32 %v2644, %v2716
        %v2749 = vadd.f32 %v2645, %v2717
        %v2750 = vadd.f32 %v2646, %v2718
        %v2751 = vadd.f32 %v2647, %v2719
        %v2752 = vadd.f32 %v2648, %v2720
        %v2753 = vadd.f32 %v2649, %v2721
        %v2754 = vadd.f32 %v2650, %v2722
        %v2755 = vadd.f32 %v2651, %v2723
        %v2756 = vadd.f32 %v2652, %v2724
        %v2757 = vadd.f32 %v2653, %v2725
        %v2758 = vadd.f32 %v2654, %v2726
        %v2759 = vld [vmem:[%s5] sm:$0xff]
        %v2760 = vld [vmem:[%s6] sm:$0x1]
        %v2762 = vlaneseq
        %v2763 = vshrl.u32 %v2762, 7
        %v2764 = vsub.s32 0, %v2763
        %v2765 = vrot.slane %v2760, %v2764
        %v2768 = vsel %vm1744, %v2727, 0
        %v2771 = vsel %vm1744, %v2728, 0
        %v2774 = vsel %vm1744, %v2729, 0
        %v2777 = vsel %vm1744, %v2730, 0
        %v2780 = vsel %vm1744, %v2731, 0
        %v2783 = vsel %vm1744, %v2732, 0
        %v2786 = vsel %vm1744, %v2733, 0
        %v2789 = vsel %vm1744, %v2734, 0
        %v2792 = vsel %vm1744, %v2735, 0
        %v2795 = vsel %vm1744, %v2736, 0
        %v2798 = vsel %vm1744, %v2737, 0
        %v2801 = vsel %vm1744, %v2738, 0
        %v2804 = vsel %vm1744, %v2739, 0
        %v2807 = vsel %vm1744, %v2740, 0
        %v2810 = vsel %vm1744, %v2741, 0
        %v2813 = vsel %vm1744, %v2742, 0
        %v2816 = vsel %vm1744, %v2743, 0
        %v2819 = vsel %vm1744, %v2744, 0
        %v2822 = vsel %vm1744, %v2745, 0
        %v2825 = vsel %vm1744, %v2746, 0
        %v2828 = vsel %vm1744, %v2747, 0
        %v2831 = vsel %vm1744, %v2748, 0
        %v2834 = vsel %vm1744, %v2749, 0
        %v2837 = vsel %vm1744, %v2750, 0
        %v2840 = vsel %vm1744, %v2751, 0
        %v2843 = vsel %vm1744, %v2752, 0
        %v2846 = vsel %vm1744, %v2753, 0
        %v2849 = vsel %vm1744, %v2754, 0
        %v2852 = vsel %vm1744, %v2755, 0
        %v2855 = vsel %vm1744, %v2756, 0
        %v2858 = vsel %vm1744, %v2757, 0
        %v2861 = vsel %vm1744, %v2758, 0
        %2863 = vmatprep.subr.mxu0 0.0
        %2864 = vmatpush1.msra.mxu0 %v2759
        %2865 = vmatprep.subr.mxu0 0.0
        %2866 = vmatpush1.msra.mxu0 0.0
        %2867 = vmatprep.subr.mxu0 0.0
        %2868 = vmatpush1.msra.mxu0 0.0
        %2869 = vmatprep.subr.mxu0 0.0
        %2870 = vmatpush1.msra.mxu0 0.0
        %2871 = vmatprep.subr.mxu0 0.0
        %2872 = vmatpush1.msra.mxu0 0.0
        %2873 = vmatprep.subr.mxu0 0.0
        %2874 = vmatpush1.msra.mxu0 0.0
        %2875 = vmatprep.subr.mxu0 0.0
        %2876 = vmatpush1.msra.mxu0 0.0
        %2877 = vmatprep.subr.mxu0 0.0
        %2878 = vmatpush1.msra.mxu0 0.0
        %2879 = vmatprep.subr.mxu0 0.0
        %2880 = vmatpush1.msra.mxu0 0.0
        %2881 = vmatprep.subr.mxu0 0.0
        %2882 = vmatpush1.msra.mxu0 0.0
        %2883 = vmatprep.subr.mxu0 0.0
        %2884 = vmatpush1.msra.mxu0 0.0
        %2885 = vmatprep.subr.mxu0 0.0
        %2886 = vmatpush1.msra.mxu0 0.0
        %2887 = vmatprep.subr.mxu0 0.0
        %2888 = vmatpush1.msra.mxu0 0.0
        %2889 = vmatprep.subr.mxu0 0.0
        %2890 = vmatpush1.msra.mxu0 0.0
        %2891 = vmatprep.subr.mxu0 0.0
        %2892 = vmatpush1.msra.mxu0 0.0
        %2893 = vmatprep.subr.mxu0 0.0
        %2894 = vmatpush1.msra.mxu0 0.0
        %2895 = vmatprep.subr.mxu0 0.0
        %2896 = vmatpush1.msra.mxu0 0.0
        %2897 = vmatprep.subr.mxu0 0.0
        %2898 = vmatpush1.msra.mxu0 0.0
        %2899 = vmatprep.subr.mxu0 0.0
        %2900 = vmatpush1.msra.mxu0 0.0
        %2901 = vmatprep.subr.mxu0 0.0
        %2902 = vmatpush1.msra.mxu0 0.0
        %2903 = vmatprep.subr.mxu0 0.0
        %2904 = vmatpush1.msra.mxu0 0.0
        %2905 = vmatprep.subr.mxu0 0.0
        %2906 = vmatpush1.msra.mxu0 0.0
        %2907 = vmatprep.subr.mxu0 0.0
        %2908 = vmatpush1.msra.mxu0 0.0
        %2909 = vmatprep.subr.mxu0 0.0
        %2910 = vmatpush1.msra.mxu0 0.0
        %2911 = vmatprep.subr.mxu0 0.0
        %2912 = vmatpush1.msra.mxu0 0.0
        %2913 = vmatprep.subr.mxu0 0.0
        %2914 = vmatpush1.msra.mxu0 0.0
        %2915 = vmatprep.subr.mxu0 0.0
        %2916 = vmatpush1.msra.mxu0 0.0
        %2917 = vmatprep.subr.mxu0 0.0
        %2918 = vmatpush1.msra.mxu0 0.0
        %2919 = vmatprep.subr.mxu0 0.0
        %2920 = vmatpush1.msra.mxu0 0.0
        %2921 = vmatprep.subr.mxu0 0.0
        %2922 = vmatpush1.msra.mxu0 0.0
        %2923 = vmatprep.subr.mxu0 0.0
        %2924 = vmatpush1.msra.mxu0 0.0
        %2925 = vmatprep.subr.mxu0 0.0
        %2926 = vmatpush1.msra.mxu0 0.0
        %2927 = vmatprep.mubr.f32.mxu0 0.0
        %2928 = vmatmul.mubr.f32.gmra.mrb[0].mxu0 %v2768
        %v2929 = vpop.f32.mrb[0].mxu0
        %v2930 = vadd.f32 %v2765, %v2929
        %v2931 = vpop.f32.mrb[0].mxu0
        %2932 = vmatprep.mubr.f32.mxu0 0.0
        %2933 = vmatmul.mubr.f32.gmra.mrb[0].mxu0 %v2771
        %v2934 = vpop.f32.mrb[0].mxu0
        %v2935 = vadd.f32 %v2765, %v2934
        %v2936 = vpop.f32.mrb[0].mxu0
        %2937 = vmatprep.mubr.f32.mxu0 0.0
        %2938 = vmatmul.mubr.f32.gmra.mrb[0].mxu0 %v2774
        %v2939 = vpop.f32.mrb[0].mxu0
        %v2940 = vadd.f32 %v2765, %v2939
        %v2941 = vpop.f32.mrb[0].mxu0
        %2942 = vmatprep.mubr.f32.mxu0 0.0
        %2943 = vmatmul.mubr.f32.gmra.mrb[0].mxu0 %v2777
        %v2944 = vpop.f32.mrb[0].mxu0
        %v2945 = vadd.f32 %v2765, %v2944
        %v2946 = vpop.f32.mrb[0].mxu0
        %2947 = vmatprep.mubr.f32.mxu0 0.0
        %2948 = vmatmul.mubr.f32.gmra.mrb[0].mxu0 %v2780
        %v2949 = vpop.f32.mrb[0].mxu0
        %v2950 = vadd.f32 %v2765, %v2949
        %v2951 = vpop.f32.mrb[0].mxu0
        %2952 = vmatprep.mubr.f32.mxu0 0.0
        %2953 = vmatmul.mubr.f32.gmra.mrb[0].mxu0 %v2783
        %v2954 = vpop.f32.mrb[0].mxu0
        %v2955 = vadd.f32 %v2765, %v2954
        %v2956 = vpop.f32.mrb[0].mxu0
        %2957 = vmatprep.mubr.f32.mxu0 0.0
        %2958 = vmatmul.mubr.f32.gmra.mrb[0].mxu0 %v2786
        %v2959 = vpop.f32.mrb[0].mxu0
        %v2960 = vadd.f32 %v2765, %v2959
        %v2961 = vpop.f32.mrb[0].mxu0
        %2962 = vmatprep.mubr.f32.mxu0 0.0
        %2963 = vmatmul.mubr.f32.gmra.mrb[0].mxu0 %v2789
        %v2964 = vpop.f32.mrb[0].mxu0
        %v2965 = vadd.f32 %v2765, %v2964
        %v2966 = vpop.f32.mrb[0].mxu0
        %2967 = vmatprep.mubr.f32.mxu0 0.0
        %2968 = vmatmul.mubr.f32.gmra.mrb[0].mxu0 %v2792
        %v2969 = vpop.f32.mrb[0].mxu0
        %v2970 = vadd.f32 %v2765, %v2969
        %v2971 = vpop.f32.mrb[0].mxu0
        %2972 = vmatprep.mubr.f32.mxu0 0.0
        %2973 = vmatmul.mubr.f32.gmra.mrb[0].mxu0 %v2795
        %v2974 = vpop.f32.mrb[0].mxu0
        %v2975 = vadd.f32 %v2765, %v2974
        %v2976 = vpop.f32.mrb[0].mxu0
        %2977 = vmatprep.mubr.f32.mxu0 0.0
        %2978 = vmatmul.mubr.f32.gmra.mrb[0].mxu0 %v2798
        %v2979 = vpop.f32.mrb[0].mxu0
        %v2980 = vadd.f32 %v2765, %v2979
        %v2981 = vpop.f32.mrb[0].mxu0
        %2982 = vmatprep.mubr.f32.mxu0 0.0
        %2983 = vmatmul.mubr.f32.gmra.mrb[0].mxu0 %v2801
        %v2984 = vpop.f32.mrb[0].mxu0
        %v2985 = vadd.f32 %v2765, %v2984
        %v2986 = vpop.f32.mrb[0].mxu0
        %2987 = vmatprep.mubr.f32.mxu0 0.0
        %2988 = vmatmul.mubr.f32.gmra.mrb[0].mxu0 %v2804
        %v2989 = vpop.f32.mrb[0].mxu0
        %v2990 = vadd.f32 %v2765, %v2989
        %v2991 = vpop.f32.mrb[0].mxu0
        %2992 = vmatprep.mubr.f32.mxu0 0.0
        %2993 = vmatmul.mubr.f32.gmra.mrb[0].mxu0 %v2807
        %v2994 = vpop.f32.mrb[0].mxu0
        %v2995 = vadd.f32 %v2765, %v2994
        %v2996 = vpop.f32.mrb[0].mxu0
        %2997 = vmatprep.mubr.f32.mxu0 0.0
        %2998 = vmatmul.mubr.f32.gmra.mrb[0].mxu0 %v2810
        %v2999 = vpop.f32.mrb[0].mxu0
        %v3000 = vadd.f32 %v2765, %v2999
        %v3001 = vpop.f32.mrb[0].mxu0
        %3002 = vmatprep.mubr.f32.mxu0 0.0
        %3003 = vmatmul.mubr.f32.gmra.mrb[0].mxu0 %v2813
        %v3004 = vpop.f32.mrb[0].mxu0
        %v3005 = vadd.f32 %v2765, %v3004
        %v3006 = vpop.f32.mrb[0].mxu0
        %3007 = vmatprep.mubr.f32.mxu0 0.0
        %3008 = vmatmul.mubr.f32.gmra.mrb[0].mxu0 %v2816
        %v3009 = vpop.f32.mrb[0].mxu0
        %v3010 = vadd.f32 %v2765, %v3009
        %v3011 = vpop.f32.mrb[0].mxu0
        %3012 = vmatprep.mubr.f32.mxu0 0.0
        %3013 = vmatmul.mubr.f32.gmra.mrb[0].mxu0 %v2819
        %v3014 = vpop.f32.mrb[0].mxu0
        %v3015 = vadd.f32 %v2765, %v3014
        %v3016 = vpop.f32.mrb[0].mxu0
        %3017 = vmatprep.mubr.f32.mxu0 0.0
        %3018 = vmatmul.mubr.f32.gmra.mrb[0].mxu0 %v2822
        %v3019 = vpop.f32.mrb[0].mxu0
        %v3020 = vadd.f32 %v2765, %v3019
        %v3021 = vpop.f32.mrb[0].mxu0
        %3022 = vmatprep.mubr.f32.mxu0 0.0
        %3023 = vmatmul.mubr.f32.gmra.mrb[0].mxu0 %v2825
        %v3024 = vpop.f32.mrb[0].mxu0
        %v3025 = vadd.f32 %v2765, %v3024
        %v3026 = vpop.f32.mrb[0].mxu0
        %3027 = vmatprep.mubr.f32.mxu0 0.0
        %3028 = vmatmul.mubr.f32.gmra.mrb[0].mxu0 %v2828
        %v3029 = vpop.f32.mrb[0].mxu0
        %v3030 = vadd.f32 %v2765, %v3029
        %v3031 = vpop.f32.mrb[0].mxu0
        %3032 = vmatprep.mubr.f32.mxu0 0.0
        %3033 = vmatmul.mubr.f32.gmra.mrb[0].mxu0 %v2831
        %v3034 = vpop.f32.mrb[0].mxu0
        %v3035 = vadd.f32 %v2765, %v3034
        %v3036 = vpop.f32.mrb[0].mxu0
        %3037 = vmatprep.mubr.f32.mxu0 0.0
        %3038 = vmatmul.mubr.f32.gmra.mrb[0].mxu0 %v2834
        %v3039 = vpop.f32.mrb[0].mxu0
        %v3040 = vadd.f32 %v2765, %v3039
        %v3041 = vpop.f32.mrb[0].mxu0
        %3042 = vmatprep.mubr.f32.mxu0 0.0
        %3043 = vmatmul.mubr.f32.gmra.mrb[0].mxu0 %v2837
        %v3044 = vpop.f32.mrb[0].mxu0
        %v3045 = vadd.f32 %v2765, %v3044
        %v3046 = vpop.f32.mrb[0].mxu0
        %3047 = vmatprep.mubr.f32.mxu0 0.0
        %3048 = vmatmul.mubr.f32.gmra.mrb[0].mxu0 %v2840
        %v3049 = vpop.f32.mrb[0].mxu0
        %v3050 = vadd.f32 %v2765, %v3049
        %v3051 = vpop.f32.mrb[0].mxu0
        %3052 = vmatprep.mubr.f32.mxu0 0.0
        %3053 = vmatmul.mubr.f32.gmra.mrb[0].mxu0 %v2843
        %v3054 = vpop.f32.mrb[0].mxu0
        %v3055 = vadd.f32 %v2765, %v3054
        %v3056 = vpop.f32.mrb[0].mxu0
        %3057 = vmatprep.mubr.f32.mxu0 0.0
        %3058 = vmatmul.mubr.f32.gmra.mrb[0].mxu0 %v2846
        %v3059 = vpop.f32.mrb[0].mxu0
        %v3060 = vadd.f32 %v2765, %v3059
        %v3061 = vpop.f32.mrb[0].mxu0
        %3062 = vmatprep.mubr.f32.mxu0 0.0
        %3063 = vmatmul.mubr.f32.gmra.mrb[0].mxu0 %v2849
        %v3064 = vpop.f32.mrb[0].mxu0
        %v3065 = vadd.f32 %v2765, %v3064
        %v3066 = vpop.f32.mrb[0].mxu0
        %3067 = vmatprep.mubr.f32.mxu0 0.0
        %3068 = vmatmul.mubr.f32.gmra.mrb[0].mxu0 %v2852
        %v3069 = vpop.f32.mrb[0].mxu0
        %v3070 = vadd.f32 %v2765, %v3069
        %v3071 = vpop.f32.mrb[0].mxu0
        %3072 = vmatprep.mubr.f32.mxu0 0.0
        %3073 = vmatmul.mubr.f32.gmra.mrb[0].mxu0 %v2855
        %v3074 = vpop.f32.mrb[0].mxu0
        %v3075 = vadd.f32 %v2765, %v3074
        %v3076 = vpop.f32.mrb[0].mxu0
        %3077 = vmatprep.mubr.f32.mxu0 0.0
        %3078 = vmatmul.mubr.f32.gmra.mrb[0].mxu0 %v2858
        %v3079 = vpop.f32.mrb[0].mxu0
        %v3080 = vadd.f32 %v2765, %v3079
        %v3081 = vpop.f32.mrb[0].mxu0
        %3082 = vmatprep.mubr.f32.mxu0 0.0
        %3083 = vmatmul.mubr.f32.gmra.mrb[0].mxu0 %v2861
        %v3084 = vpop.f32.mrb[0].mxu0
        %v3085 = vadd.f32 %v2765, %v3084
        %v3086 = vpop.f32.mrb[0].mxu0
        %3087 = vdwg.mxu0
        %v3088 = vmax.f32 %v2930, 0.0
        %v3089 = vmax.f32 %v2935, 0.0
        %v3090 = vmax.f32 %v2940, 0.0
        %v3091 = vmax.f32 %v2945, 0.0
        %v3092 = vmax.f32 %v2950, 0.0
        %v3093 = vmax.f32 %v2955, 0.0
        %v3094 = vmax.f32 %v2960, 0.0
        %v3095 = vmax.f32 %v2965, 0.0
        %v3096 = vmax.f32 %v2970, 0.0
        %v3097 = vmax.f32 %v2975, 0.0
        %v3098 = vmax.f32 %v2980, 0.0
        %v3099 = vmax.f32 %v2985, 0.0
        %v3100 = vmax.f32 %v2990, 0.0
        %v3101 = vmax.f32 %v2995, 0.0
        %v3102 = vmax.f32 %v3000, 0.0
        %v3103 = vmax.f32 %v3005, 0.0
        %v3104 = vmax.f32 %v3010, 0.0
        %v3105 = vmax.f32 %v3015, 0.0
        %v3106 = vmax.f32 %v3020, 0.0
        %v3107 = vmax.f32 %v3025, 0.0
        %v3108 = vmax.f32 %v3030, 0.0
        %v3109 = vmax.f32 %v3035, 0.0
        %v3110 = vmax.f32 %v3040, 0.0
        %v3111 = vmax.f32 %v3045, 0.0
        %v3112 = vmax.f32 %v3050, 0.0
        %v3113 = vmax.f32 %v3055, 0.0
        %v3114 = vmax.f32 %v3060, 0.0
        %v3115 = vmax.f32 %v3065, 0.0
        %v3116 = vmax.f32 %v3070, 0.0
        %v3117 = vmax.f32 %v3075, 0.0
        %v3118 = vmax.f32 %v3080, 0.0
        %v3119 = vmax.f32 %v3085, 0.0
        %v3120 = vld [vmem:[%s7] sm:$0x1]
        %v3122 = vlaneseq
        %v3123 = vshrl.u32 %v3122, 7
        %v3124 = vsub.s32 0, %v3123
        %v3125 = vrot.slane %v3120, %v3124
        %v3127 = vmul.f32 %v3088, %v3125
        %v3128 = vmul.f32 %v3089, %v3125
        %v3129 = vmul.f32 %v3090, %v3125
        %v3130 = vmul.f32 %v3091, %v3125
        %v3131 = vmul.f32 %v3092, %v3125
        %v3132 = vmul.f32 %v3093, %v3125
        %v3133 = vmul.f32 %v3094, %v3125
        %v3134 = vmul.f32 %v3095, %v3125
        %v3135 = vmul.f32 %v3096, %v3125
        %v3136 = vmul.f32 %v3097, %v3125
        %v3137 = vmul.f32 %v3098, %v3125
        %v3138 = vmul.f32 %v3099, %v3125
        %v3139 = vmul.f32 %v3100, %v3125
        %v3140 = vmul.f32 %v3101, %v3125
        %v3141 = vmul.f32 %v3102, %v3125
        %v3142 = vmul.f32 %v3103, %v3125
        %v3143 = vmul.f32 %v3104, %v3125
        %v3144 = vmul.f32 %v3105, %v3125
        %v3145 = vmul.f32 %v3106, %v3125
        %v3146 = vmul.f32 %v3107, %v3125
        %v3147 = vmul.f32 %v3108, %v3125
        %v3148 = vmul.f32 %v3109, %v3125
        %v3149 = vmul.f32 %v3110, %v3125
        %v3150 = vmul.f32 %v3111, %v3125
        %v3151 = vmul.f32 %v3112, %v3125
        %v3152 = vmul.f32 %v3113, %v3125
        %v3153 = vmul.f32 %v3114, %v3125
        %v3154 = vmul.f32 %v3115, %v3125
        %v3155 = vmul.f32 %v3116, %v3125
        %v3156 = vmul.f32 %v3117, %v3125
        %v3157 = vmul.f32 %v3118, %v3125
        %v3158 = vmul.f32 %v3119, %v3125
        %v3159 = vsel %vm1744, %v3127, 0.0
        %3160 = vadd.xlane.f32.xlu0 %v3159
        %v3161 = vpop.xlane.xlu0 %3160
        %v3162 = vsel %vm1744, %v3128, 0.0
        %3163 = vadd.xlane.f32.xlu0 %v3162
        %v3164 = vpop.xlane.xlu0 %3163
        %v3165 = vsel %vm1744, %v3129, 0.0
        %3166 = vadd.xlane.f32.xlu0 %v3165
        %v3167 = vpop.xlane.xlu0 %3166
        %v3168 = vsel %vm1744, %v3130, 0.0
        %3169 = vadd.xlane.f32.xlu0 %v3168
        %v3170 = vpop.xlane.xlu0 %3169
        %v3171 = vsel %vm1744, %v3131, 0.0
        %3172 = vadd.xlane.f32.xlu0 %v3171
        %v3173 = vpop.xlane.xlu0 %3172
        %v3174 = vsel %vm1744, %v3132, 0.0
        %3175 = vadd.xlane.f32.xlu0 %v3174
        %v3176 = vpop.xlane.xlu0 %3175
        %v3177 = vsel %vm1744, %v3133, 0.0
        %3178 = vadd.xlane.f32.xlu0 %v3177
        %v3179 = vpop.xlane.xlu0 %3178
        %v3180 = vsel %vm1744, %v3134, 0.0
        %3181 = vadd.xlane.f32.xlu0 %v3180
        %v3182 = vpop.xlane.xlu0 %3181
        %v3183 = vsel %vm1744, %v3135, 0.0
        %3184 = vadd.xlane.f32.xlu0 %v3183
        %v3185 = vpop.xlane.xlu0 %3184
        %v3186 = vsel %vm1744, %v3136, 0.0
        %3187 = vadd.xlane.f32.xlu0 %v3186
        %v3188 = vpop.xlane.xlu0 %3187
        %v3189 = vsel %vm1744, %v3137, 0.0
        %3190 = vadd.xlane.f32.xlu0 %v3189
        %v3191 = vpop.xlane.xlu0 %3190
        %v3192 = vsel %vm1744, %v3138, 0.0
        %3193 = vadd.xlane.f32.xlu0 %v3192
        %v3194 = vpop.xlane.xlu0 %3193
        %v3195 = vsel %vm1744, %v3139, 0.0
        %3196 = vadd.xlane.f32.xlu0 %v3195
        %v3197 = vpop.xlane.xlu0 %3196
        %v3198 = vsel %vm1744, %v3140, 0.0
        %3199 = vadd.xlane.f32.xlu0 %v3198
        %v3200 = vpop.xlane.xlu0 %3199
        %v3201 = vsel %vm1744, %v3141, 0.0
        %3202 = vadd.xlane.f32.xlu0 %v3201
        %v3203 = vpop.xlane.xlu0 %3202
        %v3204 = vsel %vm1744, %v3142, 0.0
        %3205 = vadd.xlane.f32.xlu0 %v3204
        %v3206 = vpop.xlane.xlu0 %3205
        %v3207 = vsel %vm1744, %v3143, 0.0
        %3208 = vadd.xlane.f32.xlu0 %v3207
        %v3209 = vpop.xlane.xlu0 %3208
        %v3210 = vsel %vm1744, %v3144, 0.0
        %3211 = vadd.xlane.f32.xlu0 %v3210
        %v3212 = vpop.xlane.xlu0 %3211
        %v3213 = vsel %vm1744, %v3145, 0.0
        %3214 = vadd.xlane.f32.xlu0 %v3213
        %v3215 = vpop.xlane.xlu0 %3214
        %v3216 = vsel %vm1744, %v3146, 0.0
        %3217 = vadd.xlane.f32.xlu0 %v3216
        %v3218 = vpop.xlane.xlu0 %3217
        %v3219 = vsel %vm1744, %v3147, 0.0
        %3220 = vadd.xlane.f32.xlu0 %v3219
        %v3221 = vpop.xlane.xlu0 %3220
        %v3222 = vsel %vm1744, %v3148, 0.0
        %3223 = vadd.xlane.f32.xlu0 %v3222
        %v3224 = vpop.xlane.xlu0 %3223
        %v3225 = vsel %vm1744, %v3149, 0.0
        %3226 = vadd.xlane.f32.xlu0 %v3225
        %v3227 = vpop.xlane.xlu0 %3226
        %v3228 = vsel %vm1744, %v3150, 0.0
        %3229 = vadd.xlane.f32.xlu0 %v3228
        %v3230 = vpop.xlane.xlu0 %3229
        %v3231 = vsel %vm1744, %v3151, 0.0
        %3232 = vadd.xlane.f32.xlu0 %v3231
        %v3233 = vpop.xlane.xlu0 %3232
        %v3234 = vsel %vm1744, %v3152, 0.0
        %3235 = vadd.xlane.f32.xlu0 %v3234
        %v3236 = vpop.xlane.xlu0 %3235
        %v3237 = vsel %vm1744, %v3153, 0.0
        %3238 = vadd.xlane.f32.xlu0 %v3237
        %v3239 = vpop.xlane.xlu0 %3238
        %v3240 = vsel %vm1744, %v3154, 0.0
        %3241 = vadd.xlane.f32.xlu0 %v3240
        %v3242 = vpop.xlane.xlu0 %3241
        %v3243 = vsel %vm1744, %v3155, 0.0
        %3244 = vadd.xlane.f32.xlu0 %v3243
        %v3245 = vpop.xlane.xlu0 %3244
        %v3246 = vsel %vm1744, %v3156, 0.0
        %3247 = vadd.xlane.f32.xlu0 %v3246
        %v3248 = vpop.xlane.xlu0 %3247
        %v3249 = vsel %vm1744, %v3157, 0.0
        %3250 = vadd.xlane.f32.xlu0 %v3249
        %v3251 = vpop.xlane.xlu0 %3250
        %v3252 = vsel %vm1744, %v3158, 0.0
        %3253 = vadd.xlane.f32.xlu0 %v3252
        %v3254 = vpop.xlane.xlu0 %3253
        %s3255 = sld [smem:[#allocation4]]
        %v3256 = vstv %s3255
        %v3257 = vadd.f32 %v3161, %v3256
        %v3258 = vadd.f32 %v3164, %v3256
        %v3259 = vadd.f32 %v3167, %v3256
        %v3260 = vadd.f32 %v3170, %v3256
        %v3261 = vadd.f32 %v3173, %v3256
        %v3262 = vadd.f32 %v3176, %v3256
        %v3263 = vadd.f32 %v3179, %v3256
        %v3264 = vadd.f32 %v3182, %v3256
        %v3265 = vadd.f32 %v3185, %v3256
        %v3266 = vadd.f32 %v3188, %v3256
        %v3267 = vadd.f32 %v3191, %v3256
        %v3268 = vadd.f32 %v3194, %v3256
        %v3269 = vadd.f32 %v3197, %v3256
        %v3270 = vadd.f32 %v3200, %v3256
        %v3271 = vadd.f32 %v3203, %v3256
        %v3272 = vadd.f32 %v3206, %v3256
        %v3273 = vadd.f32 %v3209, %v3256
        %v3274 = vadd.f32 %v3212, %v3256
        %v3275 = vadd.f32 %v3215, %v3256
        %v3276 = vadd.f32 %v3218, %v3256
        %v3277 = vadd.f32 %v3221, %v3256
        %v3278 = vadd.f32 %v3224, %v3256
        %v3279 = vadd.f32 %v3227, %v3256
        %v3280 = vadd.f32 %v3230, %v3256
        %v3281 = vadd.f32 %v3233, %v3256
        %v3282 = vadd.f32 %v3236, %v3256
        %v3283 = vadd.f32 %v3239, %v3256
        %v3284 = vadd.f32 %v3242, %v3256
        %v3285 = vadd.f32 %v3245, %v3256
        %v3286 = vadd.f32 %v3248, %v3256
        %v3287 = vadd.f32 %v3251, %v3256
        %v3288 = vadd.f32 %v3254, %v3256
        %v3289 = vsub.f32 0.0, %v3257
        %v3290 = vsub.f32 0.0, %v3258
        %v3291 = vsub.f32 0.0, %v3259
        %v3292 = vsub.f32 0.0, %v3260
        %v3293 = vsub.f32 0.0, %v3261
        %v3294 = vsub.f32 0.0, %v3262
        %v3295 = vsub.f32 0.0, %v3263
        %v3296 = vsub.f32 0.0, %v3264
        %v3297 = vsub.f32 0.0, %v3265
        %v3298 = vsub.f32 0.0, %v3266
        %v3299 = vsub.f32 0.0, %v3267
        %v3300 = vsub.f32 0.0, %v3268
        %v3301 = vsub.f32 0.0, %v3269
        %v3302 = vsub.f32 0.0, %v3270
        %v3303 = vsub.f32 0.0, %v3271
        %v3304 = vsub.f32 0.0, %v3272
        %v3305 = vsub.f32 0.0, %v3273
        %v3306 = vsub.f32 0.0, %v3274
        %v3307 = vsub.f32 0.0, %v3275
        %v3308 = vsub.f32 0.0, %v3276
        %v3309 = vsub.f32 0.0, %v3277
        %v3310 = vsub.f32 0.0, %v3278
        %v3311 = vsub.f32 0.0, %v3279
        %v3312 = vsub.f32 0.0, %v3280
        %v3313 = vsub.f32 0.0, %v3281
        %v3314 = vsub.f32 0.0, %v3282
        %v3315 = vsub.f32 0.0, %v3283
        %v3316 = vsub.f32 0.0, %v3284
        %v3317 = vsub.f32 0.0, %v3285
        %v3318 = vsub.f32 0.0, %v3286
        %v3319 = vsub.f32 0.0, %v3287
        %v3320 = vsub.f32 0.0, %v3288
        %v3321 = vmul.f32 %v3289, 1.442695
        %v3322 = vpow.pop %v3321
        %v3323 = vmul.f32 %v3290, 1.442695
        %v3324 = vpow.pop %v3323
        %v3325 = vmul.f32 %v3291, 1.442695
        %v3326 = vpow.pop %v3325
        %v3327 = vmul.f32 %v3292, 1.442695
        %v3328 = vpow.pop %v3327
        %v3329 = vmul.f32 %v3293, 1.442695
        %v3330 = vpow.pop %v3329
        %v3331 = vmul.f32 %v3294, 1.442695
        %v3332 = vpow.pop %v3331
        %v3333 = vmul.f32 %v3295, 1.442695
        %v3334 = vpow.pop %v3333
        %v3335 = vmul.f32 %v3296, 1.442695
        %v3336 = vpow.pop %v3335
        %v3337 = vmul.f32 %v3297, 1.442695
        %v3338 = vpow.pop %v3337
        %v3339 = vmul.f32 %v3298, 1.442695
        %v3340 = vpow.pop %v3339
        %v3341 = vmul.f32 %v3299, 1.442695
        %v3342 = vpow.pop %v3341
        %v3343 = vmul.f32 %v3300, 1.442695
        %v3344 = vpow.pop %v3343
        %v3345 = vmul.f32 %v3301, 1.442695
        %v3346 = vpow.pop %v3345
        %v3347 = vmul.f32 %v3302, 1.442695
        %v3348 = vpow.pop %v3347
        %v3349 = vmul.f32 %v3303, 1.442695
        %v3350 = vpow.pop %v3349
        %v3351 = vmul.f32 %v3304, 1.442695
        %v3352 = vpow.pop %v3351
        %v3353 = vmul.f32 %v3305, 1.442695
        %v3354 = vpow.pop %v3353
        %v3355 = vmul.f32 %v3306, 1.442695
        %v3356 = vpow.pop %v3355
        %v3357 = vmul.f32 %v3307, 1.442695
        %v3358 = vpow.pop %v3357
        %v3359 = vmul.f32 %v3308, 1.442695
        %v3360 = vpow.pop %v3359
        %v3361 = vmul.f32 %v3309, 1.442695
        %v3362 = vpow.pop %v3361
        %v3363 = vmul.f32 %v3310, 1.442695
        %v3364 = vpow.pop %v3363
        %v3365 = vmul.f32 %v3311, 1.442695
        %v3366 = vpow.pop %v3365
        %v3367 = vmul.f32 %v3312, 1.442695
        %v3368 = vpow.pop %v3367
        %v3369 = vmul.f32 %v3313, 1.442695
        %v3370 = vpow.pop %v3369
        %v3371 = vmul.f32 %v3314, 1.442695
        %v3372 = vpow.pop %v3371
        %v3373 = vmul.f32 %v3315, 1.442695
        %v3374 = vpow.pop %v3373
        %v3375 = vmul.f32 %v3316, 1.442695
        %v3376 = vpow.pop %v3375
        %v3377 = vmul.f32 %v3317, 1.442695
        %v3378 = vpow.pop %v3377
        %v3379 = vmul.f32 %v3318, 1.442695
        %v3380 = vpow.pop %v3379
        %v3381 = vmul.f32 %v3319, 1.442695
        %v3382 = vpow.pop %v3381
        %v3383 = vmul.f32 %v3320, 1.442695
        %v3384 = vpow.pop %v3383
        %v3385 = vadd.f32 %v3322, 1.0
        %v3386 = vadd.f32 %v3324, 1.0
        %v3387 = vadd.f32 %v3326, 1.0
        %v3388 = vadd.f32 %v3328, 1.0
        %v3389 = vadd.f32 %v3330, 1.0
        %v3390 = vadd.f32 %v3332, 1.0
        %v3391 = vadd.f32 %v3334, 1.0
        %v3392 = vadd.f32 %v3336, 1.0
        %v3393 = vadd.f32 %v3338, 1.0
        %v3394 = vadd.f32 %v3340, 1.0
        %v3395 = vadd.f32 %v3342, 1.0
        %v3396 = vadd.f32 %v3344, 1.0
        %v3397 = vadd.f32 %v3346, 1.0
        %v3398 = vadd.f32 %v3348, 1.0
        %v3399 = vadd.f32 %v3350, 1.0
        %v3400 = vadd.f32 %v3352, 1.0
        %v3401 = vadd.f32 %v3354, 1.0
        %v3402 = vadd.f32 %v3356, 1.0
        %v3403 = vadd.f32 %v3358, 1.0
        %v3404 = vadd.f32 %v3360, 1.0
        %v3405 = vadd.f32 %v3362, 1.0
        %v3406 = vadd.f32 %v3364, 1.0
        %v3407 = vadd.f32 %v3366, 1.0
        %v3408 = vadd.f32 %v3368, 1.0
        %v3409 = vadd.f32 %v3370, 1.0
        %v3410 = vadd.f32 %v3372, 1.0
        %v3411 = vadd.f32 %v3374, 1.0
        %v3412 = vadd.f32 %v3376, 1.0
        %v3413 = vadd.f32 %v3378, 1.0
        %v3414 = vadd.f32 %v3380, 1.0
        %v3415 = vadd.f32 %v3382, 1.0
        %v3416 = vadd.f32 %v3384, 1.0
        %v3417 = vrcp.pop %v3385
        %v3418 = vrcp.pop %v3386
        %v3419 = vrcp.pop %v3387
        %v3420 = vrcp.pop %v3388
        %v3421 = vrcp.pop %v3389
        %v3422 = vrcp.pop %v3390
        %v3423 = vrcp.pop %v3391
        %v3424 = vrcp.pop %v3392
        %v3425 = vrcp.pop %v3393
        %v3426 = vrcp.pop %v3394
        %v3427 = vrcp.pop %v3395
        %v3428 = vrcp.pop %v3396
        %v3429 = vrcp.pop %v3397
        %v3430 = vrcp.pop %v3398
        %v3431 = vrcp.pop %v3399
        %v3432 = vrcp.pop %v3400
        %v3433 = vrcp.pop %v3401
        %v3434 = vrcp.pop %v3402
        %v3435 = vrcp.pop %v3403
        %v3436 = vrcp.pop %v3404
        %v3437 = vrcp.pop %v3405
        %v3438 = vrcp.pop %v3406
        %v3439 = vrcp.pop %v3407
        %v3440 = vrcp.pop %v3408
        %v3441 = vrcp.pop %v3409
        %v3442 = vrcp.pop %v3410
        %v3443 = vrcp.pop %v3411
        %v3444 = vrcp.pop %v3412
        %v3445 = vrcp.pop %v3413
        %v3446 = vrcp.pop %v3414
        %v3447 = vrcp.pop %v3415
        %v3448 = vrcp.pop %v3416
        %v3481 = vlaneseq
        %v3482 = vand.u32 %v3481, 127
        %v3483 = vlaneseq
        %v3484 = vshrl.u32 %v3483, 7
        %v3485 = vsub.s32 %v3482, %v3484
        %v3486 = vrot.slane %v3417, %v3485
        %v3487 = vadd.s32 %v3482, 4294967288
        %v3488 = vlaneseq
        %v3489 = vshrl.u32 %v3488, 7
        %v3490 = vsub.s32 %v3487, %v3489
        %v3491 = vrot.slane %v3418, %v3490
        %vm3492 = vcmask 130112
        %v3493 = vsel %vm3492, %v3491, %v3486
        %v3494 = vlaneseq
        %v3495 = vshrl.u32 %v3494, 7
        %v3496 = vsub.s32 %v3482, %v3495
        %v3497 = vrot.slane %v3419, %v3496
        %v3498 = vlaneseq
        %v3499 = vshrl.u32 %v3498, 7
        %v3500 = vsub.s32 %v3487, %v3499
        %v3501 = vrot.slane %v3420, %v3500
        %v3502 = vsel %vm3492, %v3501, %v3497
        %v3503 = vlaneseq
        %v3504 = vshrl.u32 %v3503, 7
        %v3505 = vsub.s32 %v3482, %v3504
        %v3506 = vrot.slane %v3421, %v3505
        %v3507 = vlaneseq
        %v3508 = vshrl.u32 %v3507, 7
        %v3509 = vsub.s32 %v3487, %v3508
        %v3510 = vrot.slane %v3422, %v3509
        %v3511 = vsel %vm3492, %v3510, %v3506
        %v3512 = vlaneseq
        %v3513 = vshrl.u32 %v3512, 7
        %v3514 = vsub.s32 %v3482, %v3513
        %v3515 = vrot.slane %v3423, %v3514
        %v3516 = vlaneseq
        %v3517 = vshrl.u32 %v3516, 7
        %v3518 = vsub.s32 %v3487, %v3517
        %v3519 = vrot.slane %v3424, %v3518
        %v3520 = vsel %vm3492, %v3519, %v3515
        %v3521 = vlaneseq
        %v3522 = vshrl.u32 %v3521, 7
        %v3523 = vsub.s32 %v3482, %v3522
        %v3524 = vrot.slane %v3425, %v3523
        %v3525 = vlaneseq
        %v3526 = vshrl.u32 %v3525, 7
        %v3527 = vsub.s32 %v3487, %v3526
        %v3528 = vrot.slane %v3426, %v3527
        %v3529 = vsel %vm3492, %v3528, %v3524
        %v3530 = vlaneseq
        %v3531 = vshrl.u32 %v3530, 7
        %v3532 = vsub.s32 %v3482, %v3531
        %v3533 = vrot.slane %v3427, %v3532
        %v3534 = vlaneseq
        %v3535 = vshrl.u32 %v3534, 7
        %v3536 = vsub.s32 %v3487, %v3535
        %v3537 = vrot.slane %v3428, %v3536
        %v3538 = vsel %vm3492, %v3537, %v3533
        %v3539 = vlaneseq
        %v3540 = vshrl.u32 %v3539, 7
        %v3541 = vsub.s32 %v3482, %v3540
        %v3542 = vrot.slane %v3429, %v3541
        %v3543 = vlaneseq
        %v3544 = vshrl.u32 %v3543, 7
        %v3545 = vsub.s32 %v3487, %v3544
        %v3546 = vrot.slane %v3430, %v3545
        %v3547 = vsel %vm3492, %v3546, %v3542
        %v3548 = vlaneseq
        %v3549 = vshrl.u32 %v3548, 7
        %v3550 = vsub.s32 %v3482, %v3549
        %v3551 = vrot.slane %v3431, %v3550
        %v3552 = vlaneseq
        %v3553 = vshrl.u32 %v3552, 7
        %v3554 = vsub.s32 %v3487, %v3553
        %v3555 = vrot.slane %v3432, %v3554
        %v3556 = vsel %vm3492, %v3555, %v3551
        %v3557 = vlaneseq
        %v3558 = vshrl.u32 %v3557, 7
        %v3559 = vsub.s32 %v3482, %v3558
        %v3560 = vrot.slane %v3433, %v3559
        %v3561 = vlaneseq
        %v3562 = vshrl.u32 %v3561, 7
        %v3563 = vsub.s32 %v3487, %v3562
        %v3564 = vrot.slane %v3434, %v3563
        %v3565 = vsel %vm3492, %v3564, %v3560
        %v3566 = vlaneseq
        %v3567 = vshrl.u32 %v3566, 7
        %v3568 = vsub.s32 %v3482, %v3567
        %v3569 = vrot.slane %v3435, %v3568
        %v3570 = vlaneseq
        %v3571 = vshrl.u32 %v3570, 7
        %v3572 = vsub.s32 %v3487, %v3571
        %v3573 = vrot.slane %v3436, %v3572
        %v3574 = vsel %vm3492, %v3573, %v3569
        %v3575 = vlaneseq
        %v3576 = vshrl.u32 %v3575, 7
        %v3577 = vsub.s32 %v3482, %v3576
        %v3578 = vrot.slane %v3437, %v3577
        %v3579 = vlaneseq
        %v3580 = vshrl.u32 %v3579, 7
        %v3581 = vsub.s32 %v3487, %v3580
        %v3582 = vrot.slane %v3438, %v3581
        %v3583 = vsel %vm3492, %v3582, %v3578
        %v3584 = vlaneseq
        %v3585 = vshrl.u32 %v3584, 7
        %v3586 = vsub.s32 %v3482, %v3585
        %v3587 = vrot.slane %v3439, %v3586
        %v3588 = vlaneseq
        %v3589 = vshrl.u32 %v3588, 7
        %v3590 = vsub.s32 %v3487, %v3589
        %v3591 = vrot.slane %v3440, %v3590
        %v3592 = vsel %vm3492, %v3591, %v3587
        %v3593 = vlaneseq
        %v3594 = vshrl.u32 %v3593, 7
        %v3595 = vsub.s32 %v3482, %v3594
        %v3596 = vrot.slane %v3441, %v3595
        %v3597 = vlaneseq
        %v3598 = vshrl.u32 %v3597, 7
        %v3599 = vsub.s32 %v3487, %v3598
        %v3600 = vrot.slane %v3442, %v3599
        %v3601 = vsel %vm3492, %v3600, %v3596
        %v3602 = vlaneseq
        %v3603 = vshrl.u32 %v3602, 7
        %v3604 = vsub.s32 %v3482, %v3603
        %v3605 = vrot.slane %v3443, %v3604
        %v3606 = vlaneseq
        %v3607 = vshrl.u32 %v3606, 7
        %v3608 = vsub.s32 %v3487, %v3607
        %v3609 = vrot.slane %v3444, %v3608
        %v3610 = vsel %vm3492, %v3609, %v3605
        %v3611 = vlaneseq
        %v3612 = vshrl.u32 %v3611, 7
        %v3613 = vsub.s32 %v3482, %v3612
        %v3614 = vrot.slane %v3445, %v3613
        %v3615 = vlaneseq
        %v3616 = vshrl.u32 %v3615, 7
        %v3617 = vsub.s32 %v3487, %v3616
        %v3618 = vrot.slane %v3446, %v3617
        %v3619 = vsel %vm3492, %v3618, %v3614
        %v3620 = vlaneseq
        %v3621 = vshrl.u32 %v3620, 7
        %v3622 = vsub.s32 %v3482, %v3621
        %v3623 = vrot.slane %v3447, %v3622
        %v3624 = vlaneseq
        %v3625 = vshrl.u32 %v3624, 7
        %v3626 = vsub.s32 %v3487, %v3625
        %v3627 = vrot.slane %v3448, %v3626
        %v3628 = vsel %vm3492, %v3627, %v3623
        %vm3629 = vcmask 1041409
        %v3630 = vsel %vm3629, %v3502, %v3493
        %vm3631 = vcmask 1042434
        %v3632 = vsel %vm3631, %v3511, %v3630
        %vm3633 = vcmask 1043459
        %v3634 = vsel %vm3633, %v3520, %v3632
        %vm3635 = vcmask 1044484
        %v3636 = vsel %vm3635, %v3529, %v3634
        %vm3637 = vcmask 1045509
        %v3638 = vsel %vm3637, %v3538, %v3636
        %vm3639 = vcmask 1046534
        %v3640 = vsel %vm3639, %v3547, %v3638
        %vm3641 = vcmask 1047559
        %v3642 = vsel %vm3641, %v3556, %v3640
        %v3643 = vsel %vm3629, %v3574, %v3565
        %v3644 = vsel %vm3631, %v3583, %v3643
        %v3645 = vsel %vm3633, %v3592, %v3644
        %v3646 = vsel %vm3635, %v3601, %v3645
        %v3647 = vsel %vm3637, %v3610, %v3646
        %v3648 = vsel %vm3639, %v3619, %v3647
        %v3649 = vsel %vm3641, %v3628, %v3648
        %vm3652 = vcmask 130048
        %3653 = vst.msk [vmem:[%s326] sm:$0xff] %vm3652, %v3642
        %3654 = vst.msk [vmem:[%s326 + $0x8] sm:$0xff] %vm3652, %v3649
        %s3655 = sand.u32 %s226, 1
        %s3656 = scalar_lea.sflag [#allocation6], %s3655
        %s3657 = sand.u32 %s226, 1
        %s3658 = smul.addr %s3657, 16
        %s3659 = scalar_lea.vmem [#allocation5], %s3658
        // Predicated region
        $region57: #{kan_discriminator_forward.1} parent=55 // pred_check
          %p3660 = pneg %p236
        $region58: #{kan_discriminator_forward.1} parent=55 // pred_check_branch
          %3662 = sbr.rel (%p3660) target = $region60
        $region59: #{kan_discriminator_forward.1} parent=55 // pred_region
          %s3664 = ssub.s32 256, 256
          %3665 = vsyncadd %s3656, %s3664
          %s3666 = smul.addr %s24, 2
          %s3667 = smul.addr %s3666, 128
          %s3668 = scalar_lea.hbm %s9, %s3667
          %s3669 = sshll.u32 %s3659, 4
          %s3670 = int_to_ptr.vmem [resolvable:$true] %s3669
          %3675 = dma.vmem_to_hbm [thread:$0]  %s3670, 256, %s3668, %s3656, 128, 128, 8
        $region60: #{kan_discriminator_forward.1} parent=55 // pred_fallthru
          _
      $region56: #{kan_discriminator_forward.1} parent=5 // pred_fallthru
        _
      %p3676 = scmp.le.s32.totalorder 2, %s19
      // Predicated region
      $region61: #{kan_discriminator_forward.1} parent=5 // pred_check
        %p3677 = pneg %p3676
      $region62: #{kan_discriminator_forward.1} parent=5 // pred_check_branch
        %3679 = sbr.rel (%p3677) target = $region64
      $region63: #{kan_discriminator_forward.1} parent=5 // pred_region
        %s3680 = ssub.s32 %s19, 2
        // Predicated region
        $region65: #{kan_discriminator_forward.1} parent=63 // pred_check
          %p3681 = pneg %p242
        $region66: #{kan_discriminator_forward.1} parent=63 // pred_check_branch
          %3683 = sbr.rel (%p3681) target = $region68
        $region67: #{kan_discriminator_forward.1} parent=63 // pred_region
          %s3684 = sand.u32 %s227, 1
          %s3685 = scalar_lea.sflag [#allocation6], %s3684
          %s3686 = sand.u32 %s227, 1
          %s3687 = smul.addr %s3686, 16
          %s3688 = scalar_lea.vmem [#allocation5], %s3687
          %3689 = dma.done %s3685, 256
        $region68: #{kan_discriminator_forward.1} parent=63 // pred_fallthru
          _
      $region64: #{kan_discriminator_forward.1} parent=5 // pred_fallthru
        _
    $region6: #{kan_discriminator_forward.1} parent=1 // loop_footer
      %s23 = sadd.s32 1, %s19
    $region7: #{kan_discriminator_forward.1} parent=1 // loop_footer_branch
      %18 = sbr.rel target = $region3
    $region8: #{kan_discriminator_forward.1} parent=1 // loop_exit
      _
    %3690 = vsyncpa [#allocation6], 1
    %s3691 = scalar_lea.sflag [#allocation6], 1
    %3692 = vsyncpa %s3691, 1

</llo_original>
